<compile_context>
chip_gen: v6e
topology: v6e:2x2x1
jax: 0.10.0
libtpu: 0.0.40
codegen_flags: <defaults>
</compile_context>

<pallas_src>
import numpy as np
import jax
import jax.numpy as jnp
from jax import lax
from jax.experimental import pallas as pl
from jax.experimental.pallas import tpu as pltpu

SEQ_LEN = 8
DIM_AUD = 32
CONV_CHANNELS = [DIM_AUD, 16, 8, 4, 2, 1]
NEG_SLOPE = 0.02
N_CONV = 5


# --------------------------------------------------------------------------- #
# Kernel: one grid step processes BLOCK_M = batch_block * SEQ_LEN rows.
# --------------------------------------------------------------------------- #
def audio_att_kernel(x_ref, w_ref, b_ref, a_ref, m8_ref, r_ref, rt_ref, out_ref):
    D, L = DIM_AUD, SEQ_LEN
    x = x_ref[...]                      # [BM, d_full]  rows = (batch, seq) flattened
    BM = x.shape[0]

    # Per-sequence 'same'-padding masks (generalized to batched rows):
    # row % 8 == 0  -> first element of its sequence (kill rolled "prev" tap)
    # row % 8 == 7  -> last  element of its sequence (kill rolled "next" tap)
    row = lax.broadcasted_iota(jnp.int32, (BM, D), 0)
    pos = row & (L - 1)                 # row % SEQ_LEN (SEQ_LEN is a power of 2)
    not_first = pos != 0
    not_last = pos != (L - 1)

    y = x[:, :D]                        # [BM, 32] channels on lanes
    for li in range(N_CONV):
        # One fused MXU matmul computes all 3 taps of Conv1d(k=3) at once:
        # t[m, k*D + co] = sum_ci y[m, ci] * w[co, ci, k]
        t = jnp.dot(y, w_ref[li], preferred_element_type=jnp.float32)   # [BM, 3D]
        # 'same' padding via XLU rolls along the sequence (sublane) axis.
        c_prev = jnp.where(not_first, pltpu.roll(t[:, 0:D], shift=1, axis=0), 0.0)
        c_next = jnp.where(not_last, pltpu.roll(t[:, 2 * D:3 * D], shift=BM - 1, axis=0), 0.0)
        z = c_prev + t[:, D:2 * D] + c_next + b_ref[li]   # bias pre-broadcast [BM, D]
        y = jnp.maximum(z, NEG_SLOPE * z)                 # LeakyReLU(0.02)

    # Per-sequence Linear(seq->seq) + Softmax, done with M = batch_block matmuls.
    # v_col[m] = conv output channel for row m (lane 0).
    v_col = y[:, 0:1]                                           # [BM, 1]
    # Spread each row's value to its within-sequence lane, then gather the 8
    # values of every sequence onto one row with an exact 0/1 matmul:
    q = v_col * m8_ref[...]                                     # [BM, 8]
    v_seq = jnp.dot(rt_ref[...], q, preferred_element_type=jnp.float32)   # [Bt, 8]
    wl_t = a_ref[0:L, :]                                        # [8, 8] = wl.T
    bl = a_ref[L:L + 1, :]                                      # [1, 8]
    logits = jnp.dot(v_seq, wl_t, preferred_element_type=jnp.float32) + bl
    m = jnp.max(logits, axis=1, keepdims=True)
    e = jnp.exp(logits - m)
    att = e / jnp.sum(e, axis=1, keepdims=True)                 # [Bt, 8] exact softmax

    # Scatter attention back to rows (exact 0/1 ops), weight x, and reduce each
    # sequence with ONE well-shaped matmul (M=Bt, K=BM, N=d_full) — no M=1 dots.
    spread = jnp.dot(r_ref[...], att, preferred_element_type=jnp.float32)   # [BM, 8]
    att_col = jnp.sum(m8_ref[...] * spread, axis=1, keepdims=True)          # [BM, 1]
    out_ref[...] = jnp.dot(rt_ref[...], x * att_col,
                           preferred_element_type=jnp.float32)              # [Bt, d_full]


# --------------------------------------------------------------------------- #
# One-time host-side parameter packing (numpy; NOT in the per-call path).
# --------------------------------------------------------------------------- #
def pack_params(params, batch_block):
    D, L = DIM_AUD, SEQ_LEN
    BM = batch_block * L

    # Conv weight slab: w_blob[li, ci, k*D + co] = w_li[co, ci, k], zero padded.
    w_blob = np.zeros((N_CONV, D, 3 * D), np.float32)
    # Bias slab pre-broadcast across all BM rows of a block (same-shape VPU add).
    bias_blob = np.zeros((N_CONV, BM, D), np.float32)
    for li, (w, b) in enumerate(params["convs"]):
        w = np.asarray(w, np.float32)
        b = np.asarray(b, np.float32)
        cout, cin, _ = w.shape
        for k in range(3):
            w_blob[li, :cin, k * D:k * D + cout] = w[:, :, k].T
        bias_blob[li, :, :cout] = b[None, :]

    # wl stored pre-transposed + bl.
    attn_small = np.zeros((L + 1, L), np.float32)
    attn_small[:L, :] = np.asarray(params["wl"], np.float32).T
    attn_small[L, :] = np.asarray(params["bl"], np.float32)

    # Exact 0/1 selection matrices for row-layout <-> sequence-layout moves.
    rows = np.arange(BM)
    m8 = (rows[:, None] % L == np.arange(L)[None, :]).astype(np.float32)        # [BM, 8]
    r = (rows[:, None] // L == np.arange(batch_block)[None, :]).astype(np.float32)  # [BM, Bt]
    rt = np.ascontiguousarray(r.T)                                               # [Bt, BM]

    return dict(w=jnp.asarray(w_blob), b=jnp.asarray(bias_blob),
                attn=jnp.asarray(attn_small), m8=jnp.asarray(m8),
                r=jnp.asarray(r), rt=jnp.asarray(rt))


# --------------------------------------------------------------------------- #
# Wrappers.
# --------------------------------------------------------------------------- #
@jax.jit
def _run_packed(x_flat, w, b, attn, m8, r, rt):
    Bt, BM = rt.shape
    n_rows, d_full = x_flat.shape
    grid = (n_rows // BM,)
    return pl.pallas_call(
        audio_att_kernel,
        out_shape=jax.ShapeDtypeStruct((n_rows // SEQ_LEN, d_full), jnp.float32),
        grid=grid,
        in_specs=[
            pl.BlockSpec((BM, d_full), lambda i: (i, 0)),
            pl.BlockSpec((N_CONV, DIM_AUD, 3 * DIM_AUD), lambda i: (0, 0, 0)),
            pl.BlockSpec((N_CONV, BM, DIM_AUD), lambda i: (0, 0, 0)),
            pl.BlockSpec((SEQ_LEN + 1, SEQ_LEN), lambda i: (0, 0)),
            pl.BlockSpec((BM, SEQ_LEN), lambda i: (0, 0)),
            pl.BlockSpec((BM, Bt), lambda i: (0, 0)),
            pl.BlockSpec((Bt, BM), lambda i: (0, 0)),
        ],
        out_specs=pl.BlockSpec((Bt, d_full), lambda i: (i, 0)),
        compiler_params=pltpu.CompilerParams(dimension_semantics=("parallel",)),
    )(x_flat, w, b, attn, m8, r, rt)


def audio_att_net_batched(x, packed):
    """x: [B, SEQ_LEN, d_full] -> [B, d_full] (== torch.sum(att * x, dim=0) per seq)."""
    B, L, d_full = x.shape
    assert L == SEQ_LEN and d_full >= DIM_AUD
    Bt = packed["rt"].shape[0]
    pad = (-B) % Bt
    if pad:
        x = jnp.concatenate([x, jnp.zeros((pad, L, d_full), x.dtype)], axis=0)
    x_flat = x.reshape((B + pad) * L, d_full).astype(jnp.float32)
    out = _run_packed(x_flat, packed["w"], packed["b"], packed["attn"],
                      packed["m8"], packed["r"], packed["rt"])
    return out[:B]


def audio_att_net(x, packed):
    """Single-sequence convenience path (pads to one batch block internally)."""
    return audio_att_net_batched(x[None, ...], packed)[0]


# --------------------------------------------------------------------------- #
# Parameters + pure-JAX reference of the PyTorch forward.
# --------------------------------------------------------------------------- #
def make_params(key):
    keys = jax.random.split(key, 6)
    convs = []
    for li in range(N_CONV):
        cin, cout = CONV_CHANNELS[li], CONV_CHANNELS[li + 1]
        kw, kb = jax.random.split(keys[li])
        bound = 1.0 / float(np.sqrt(cin * 3))
        w = jax.random.uniform(kw, (cout, cin, 3), jnp.float32, -bound, bound)
        b = jax.random.uniform(kb, (cout,), jnp.float32, -bound, bound)
        convs.append((w, b))
    klw, klb = jax.random.split(keys[5])
    bound = 1.0 / float(np.sqrt(SEQ_LEN))
    wl = jax.random.uniform(klw, (SEQ_LEN, SEQ_LEN), jnp.float32, -bound, bound)
    bl = jax.random.uniform(klb, (SEQ_LEN,), jnp.float32, -bound, bound)
    return {"convs": convs, "wl": wl, "bl": bl}


def reference(x, params):
    y = x[:, :DIM_AUD].T                              # [D, L]
    for (w, b) in params["convs"]:
        cout = w.shape[0]
        L = y.shape[1]
        yp = jnp.pad(y, ((0, 0), (1, 1)))
        z = jnp.zeros((cout, L), jnp.float32)
        for k in range(3):
            z = z + jnp.dot(w[:, :, k], yp[:, k:k + L])
        z = z + b[:, None]
        y = jnp.where(z > 0, z, NEG_SLOPE * z)
    v = y.reshape(1, SEQ_LEN)
    logits = v @ params["wl"].T + params["bl"][None, :]
    att = jax.nn.softmax(logits, axis=1).reshape(SEQ_LEN, 1)
    return jnp.sum(att * x, axis=0)


if __name__ == "__main__":
    key = jax.random.PRNGKey(0)
    kx, kp = jax.random.split(key)
    params = make_params(kp)

    BATCH = 32          # demo batch; raise freely — grid scales, VMEM is ~200 KiB/step
    BATCH_BLOCK = 16    # 16 sequences * 8 rows = 128 sublane rows per grid step

    # One-time packing (host-side numpy, hoisted out of the per-call path).
    packed = pack_params(params, BATCH_BLOCK)

    x = jax.random.normal(kx, (BATCH, SEQ_LEN, DIM_AUD), jnp.float32)

    out = jax.block_until_ready(audio_att_net_batched(x, packed))
    assert out.shape == (BATCH, DIM_AUD)

    ref = jax.vmap(lambda xi: reference(xi, params))(x)
    np.testing.assert_allclose(np.asarray(out), np.asarray(ref), rtol=1e-4, atol=1e-5)

    # Single-sequence PyTorch-style API still works (padded to one block).
    out1 = jax.block_until_ready(audio_att_net(x[0], packed))
    np.testing.assert_allclose(np.asarray(out1), np.asarray(ref[0]), rtol=1e-4, atol=1e-5)

    print("KERNEL_OK")
</pallas_src>

<mosaic_0001>
module attributes {stable_mosaic.version = 11 : i64} {
  func.func @audio_att_kernel(%arg0: i32, %arg1: memref<128x32xf32, #tpu.memory_space<vmem>>, %arg2: memref<5x32x96xf32, #tpu.memory_space<vmem>>, %arg3: memref<5x128x32xf32, #tpu.memory_space<vmem>>, %arg4: memref<9x8xf32, #tpu.memory_space<vmem>>, %arg5: memref<128x8xf32, #tpu.memory_space<vmem>>, %arg6: memref<128x16xf32, #tpu.memory_space<vmem>>, %arg7: memref<16x128xf32, #tpu.memory_space<vmem>>, %arg8: memref<16x32xf32, #tpu.memory_space<vmem>>) attributes {dimension_semantics = [#tpu.dimension_semantics<parallel>], iteration_bounds = array<i64: 2>, scalar_prefetch = 0 : i64, scratch_operands = 0 : i64, tpu.core_type = #tpu.core_type<tc>, window_params = [{transform_indices = @transform_0, window_bounds = array<i64: 128, 32>}, {pipeline_mode = #tpu.pipeline_mode<synchronous>, transform_indices = @transform_1, window_bounds = array<i64: 5, 32, 96>}, {pipeline_mode = #tpu.pipeline_mode<synchronous>, transform_indices = @transform_2, window_bounds = array<i64: 5, 128, 32>}, {pipeline_mode = #tpu.pipeline_mode<synchronous>, transform_indices = @transform_3, window_bounds = array<i64: 9, 8>}, {pipeline_mode = #tpu.pipeline_mode<synchronous>, transform_indices = @transform_4, window_bounds = array<i64: 128, 8>}, {pipeline_mode = #tpu.pipeline_mode<synchronous>, transform_indices = @transform_5, window_bounds = array<i64: 128, 16>}, {pipeline_mode = #tpu.pipeline_mode<synchronous>, transform_indices = @transform_6, window_bounds = array<i64: 16, 128>}, {transform_indices = @transform_7, window_bounds = array<i64: 16, 32>}]} {
    %c0 = arith.constant 0 : index
    %c0_0 = arith.constant 0 : index
    %0 = vector.load %arg1[%c0, %c0_0] : memref<128x32xf32, #tpu.memory_space<vmem>>, vector<128x32xf32>
    %1 = tpu.iota {dimensions = array<i32: 0>} : vector<128x32xi32>
    %c7_i32 = arith.constant 7 : i32
    %2 = vector.broadcast %c7_i32 : i32 to vector<128x32xi32>
    %3 = arith.andi %1, %2 : vector<128x32xi32>
    %c0_i32 = arith.constant 0 : i32
    %4 = vector.broadcast %c0_i32 : i32 to vector<128x32xi32>
    %5 = arith.cmpi ne, %3, %4 : vector<128x32xi32>
    %c7_i32_1 = arith.constant 7 : i32
    %6 = vector.broadcast %c7_i32_1 : i32 to vector<128x32xi32>
    %7 = arith.cmpi ne, %3, %6 : vector<128x32xi32>
    %c0_2 = arith.constant 0 : index
    %c0_3 = arith.constant 0 : index
    %c0_4 = arith.constant 0 : index
    %8 = vector.load %arg2[%c0_2, %c0_3, %c0_4] : memref<5x32x96xf32, #tpu.memory_space<vmem>>, vector<1x32x96xf32>
    %9 = vector.shape_cast %8 : vector<1x32x96xf32> to vector<32x96xf32>
    %cst = arith.constant dense<0.000000e+00> : vector<128x96xf32>
    %10 = tpu.matmul %0, %9, %cst {dimension_numbers = #tpu.dot_dimension_numbers<[1], [0], [0], [1], [0, 0, 1, 1], [], []>} : vector<128x32xf32>, vector<32x96xf32>, vector<128x96xf32> -> vector<128x96xf32>
    %11 = vector.extract_strided_slice %10 {offsets = [0, 0], sizes = [128, 32], strides = [1, 1]} : vector<128x96xf32> to vector<128x32xf32>
    %c1_i32 = arith.constant 1 : i32
    %12 = tpu.dynamic_rotate %11 by %c1_i32 dim 0 : vector<128x32xf32>, i32 -> vector<128x32xf32>
    %cst_5 = arith.constant 0.000000e+00 : f32
    %13 = vector.broadcast %cst_5 : f32 to vector<128x32xf32>
    %14 = arith.select %5, %12, %13 : vector<128x32xi1>, vector<128x32xf32>
    %15 = vector.extract_strided_slice %10 {offsets = [0, 64], sizes = [128, 32], strides = [1, 1]} : vector<128x96xf32> to vector<128x32xf32>
    %c127_i32 = arith.constant 127 : i32
    %16 = tpu.dynamic_rotate %15 by %c127_i32 dim 0 : vector<128x32xf32>, i32 -> vector<128x32xf32>
    %cst_6 = arith.constant 0.000000e+00 : f32
    %17 = vector.broadcast %cst_6 : f32 to vector<128x32xf32>
    %18 = arith.select %7, %16, %17 : vector<128x32xi1>, vector<128x32xf32>
    %19 = vector.extract_strided_slice %10 {offsets = [0, 32], sizes = [128, 32], strides = [1, 1]} : vector<128x96xf32> to vector<128x32xf32>
    %20 = arith.addf %14, %19 : vector<128x32xf32>
    %21 = arith.addf %20, %18 : vector<128x32xf32>
    %c0_7 = arith.constant 0 : index
    %c0_8 = arith.constant 0 : index
    %c0_9 = arith.constant 0 : index
    %22 = vector.load %arg3[%c0_7, %c0_8, %c0_9] : memref<5x128x32xf32, #tpu.memory_space<vmem>>, vector<1x128x32xf32>
    %23 = vector.shape_cast %22 : vector<1x128x32xf32> to vector<128x32xf32>
    %24 = arith.addf %21, %23 : vector<128x32xf32>
    %cst_10 = arith.constant 2.000000e-02 : f32
    %25 = vector.broadcast %cst_10 : f32 to vector<128x32xf32>
    %26 = arith.mulf %25, %24 : vector<128x32xf32>
    %27 = arith.maximumf %24, %26 : vector<128x32xf32>
    %c1 = arith.constant 1 : index
    %c0_11 = arith.constant 0 : index
    %c0_12 = arith.constant 0 : index
    %28 = vector.load %arg2[%c1, %c0_11, %c0_12] : memref<5x32x96xf32, #tpu.memory_space<vmem>>, vector<1x32x96xf32>
    %29 = vector.shape_cast %28 : vector<1x32x96xf32> to vector<32x96xf32>
    %cst_13 = arith.constant dense<0.000000e+00> : vector<128x96xf32>
    %30 = tpu.matmul %27, %29, %cst_13 {dimension_numbers = #tpu.dot_dimension_numbers<[1], [0], [0], [1], [0, 0, 1, 1], [], []>} : vector<128x32xf32>, vector<32x96xf32>, vector<128x96xf32> -> vector<128x96xf32>
    %31 = vector.extract_strided_slice %30 {offsets = [0, 0], sizes = [128, 32], strides = [1, 1]} : vector<128x96xf32> to vector<128x32xf32>
    %c1_i32_14 = arith.constant 1 : i32
    %32 = tpu.dynamic_rotate %31 by %c1_i32_14 dim 0 : vector<128x32xf32>, i32 -> vector<128x32xf32>
    %cst_15 = arith.constant 0.000000e+00 : f32
    %33 = vector.broadcast %cst_15 : f32 to vector<128x32xf32>
    %34 = arith.select %5, %32, %33 : vector<128x32xi1>, vector<128x32xf32>
    %35 = vector.extract_strided_slice %30 {offsets = [0, 64], sizes = [128, 32], strides = [1, 1]} : vector<128x96xf32> to vector<128x32xf32>
    %c127_i32_16 = arith.constant 127 : i32
    %36 = tpu.dynamic_rotate %35 by %c127_i32_16 dim 0 : vector<128x32xf32>, i32 -> vector<128x32xf32>
    %cst_17 = arith.constant 0.000000e+00 : f32
    %37 = vector.broadcast %cst_17 : f32 to vector<128x32xf32>
    %38 = arith.select %7, %36, %37 : vector<128x32xi1>, vector<128x32xf32>
    %39 = vector.extract_strided_slice %30 {offsets = [0, 32], sizes = [128, 32], strides = [1, 1]} : vector<128x96xf32> to vector<128x32xf32>
    %40 = arith.addf %34, %39 : vector<128x32xf32>
    %41 = arith.addf %40, %38 : vector<128x32xf32>
    %c1_18 = arith.constant 1 : index
    %c0_19 = arith.constant 0 : index
    %c0_20 = arith.constant 0 : index
    %42 = vector.load %arg3[%c1_18, %c0_19, %c0_20] : memref<5x128x32xf32, #tpu.memory_space<vmem>>, vector<1x128x32xf32>
    %43 = vector.shape_cast %42 : vector<1x128x32xf32> to vector<128x32xf32>
    %44 = arith.addf %41, %43 : vector<128x32xf32>
    %cst_21 = arith.constant 2.000000e-02 : f32
    %45 = vector.broadcast %cst_21 : f32 to vector<128x32xf32>
    %46 = arith.mulf %45, %44 : vector<128x32xf32>
    %47 = arith.maximumf %44, %46 : vector<128x32xf32>
    %c2 = arith.constant 2 : index
    %c0_22 = arith.constant 0 : index
    %c0_23 = arith.constant 0 : index
    %48 = vector.load %arg2[%c2, %c0_22, %c0_23] : memref<5x32x96xf32, #tpu.memory_space<vmem>>, vector<1x32x96xf32>
    %49 = vector.shape_cast %48 : vector<1x32x96xf32> to vector<32x96xf32>
    %cst_24 = arith.constant dense<0.000000e+00> : vector<128x96xf32>
    %50 = tpu.matmul %47, %49, %cst_24 {dimension_numbers = #tpu.dot_dimension_numbers<[1], [0], [0], [1], [0, 0, 1, 1], [], []>} : vector<128x32xf32>, vector<32x96xf32>, vector<128x96xf32> -> vector<128x96xf32>
    %51 = vector.extract_strided_slice %50 {offsets = [0, 0], sizes = [128, 32], strides = [1, 1]} : vector<128x96xf32> to vector<128x32xf32>
    %c1_i32_25 = arith.constant 1 : i32
    %52 = tpu.dynamic_rotate %51 by %c1_i32_25 dim 0 : vector<128x32xf32>, i32 -> vector<128x32xf32>
    %cst_26 = arith.constant 0.000000e+00 : f32
    %53 = vector.broadcast %cst_26 : f32 to vector<128x32xf32>
    %54 = arith.select %5, %52, %53 : vector<128x32xi1>, vector<128x32xf32>
    %55 = vector.extract_strided_slice %50 {offsets = [0, 64], sizes = [128, 32], strides = [1, 1]} : vector<128x96xf32> to vector<128x32xf32>
    %c127_i32_27 = arith.constant 127 : i32
    %56 = tpu.dynamic_rotate %55 by %c127_i32_27 dim 0 : vector<128x32xf32>, i32 -> vector<128x32xf32>
    %cst_28 = arith.constant 0.000000e+00 : f32
    %57 = vector.broadcast %cst_28 : f32 to vector<128x32xf32>
    %58 = arith.select %7, %56, %57 : vector<128x32xi1>, vector<128x32xf32>
    %59 = vector.extract_strided_slice %50 {offsets = [0, 32], sizes = [128, 32], strides = [1, 1]} : vector<128x96xf32> to vector<128x32xf32>
    %60 = arith.addf %54, %59 : vector<128x32xf32>
    %61 = arith.addf %60, %58 : vector<128x32xf32>
    %c2_29 = arith.constant 2 : index
    %c0_30 = arith.constant 0 : index
    %c0_31 = arith.constant 0 : index
    %62 = vector.load %arg3[%c2_29, %c0_30, %c0_31] : memref<5x128x32xf32, #tpu.memory_space<vmem>>, vector<1x128x32xf32>
    %63 = vector.shape_cast %62 : vector<1x128x32xf32> to vector<128x32xf32>
    %64 = arith.addf %61, %63 : vector<128x32xf32>
    %cst_32 = arith.constant 2.000000e-02 : f32
    %65 = vector.broadcast %cst_32 : f32 to vector<128x32xf32>
    %66 = arith.mulf %65, %64 : vector<128x32xf32>
    %67 = arith.maximumf %64, %66 : vector<128x32xf32>
    %c3 = arith.constant 3 : index
    %c0_33 = arith.constant 0 : index
    %c0_34 = arith.constant 0 : index
    %68 = vector.load %arg2[%c3, %c0_33, %c0_34] : memref<5x32x96xf32, #tpu.memory_space<vmem>>, vector<1x32x96xf32>
    %69 = vector.shape_cast %68 : vector<1x32x96xf32> to vector<32x96xf32>
    %cst_35 = arith.constant dense<0.000000e+00> : vector<128x96xf32>
    %70 = tpu.matmul %67, %69, %cst_35 {dimension_numbers = #tpu.dot_dimension_numbers<[1], [0], [0], [1], [0, 0, 1, 1], [], []>} : vector<128x32xf32>, vector<32x96xf32>, vector<128x96xf32> -> vector<128x96xf32>
    %71 = vector.extract_strided_slice %70 {offsets = [0, 0], sizes = [128, 32], strides = [1, 1]} : vector<128x96xf32> to vector<128x32xf32>
    %c1_i32_36 = arith.constant 1 : i32
    %72 = tpu.dynamic_rotate %71 by %c1_i32_36 dim 0 : vector<128x32xf32>, i32 -> vector<128x32xf32>
    %cst_37 = arith.constant 0.000000e+00 : f32
    %73 = vector.broadcast %cst_37 : f32 to vector<128x32xf32>
    %74 = arith.select %5, %72, %73 : vector<128x32xi1>, vector<128x32xf32>
    %75 = vector.extract_strided_slice %70 {offsets = [0, 64], sizes = [128, 32], strides = [1, 1]} : vector<128x96xf32> to vector<128x32xf32>
    %c127_i32_38 = arith.constant 127 : i32
    %76 = tpu.dynamic_rotate %75 by %c127_i32_38 dim 0 : vector<128x32xf32>, i32 -> vector<128x32xf32>
    %cst_39 = arith.constant 0.000000e+00 : f32
    %77 = vector.broadcast %cst_39 : f32 to vector<128x32xf32>
    %78 = arith.select %7, %76, %77 : vector<128x32xi1>, vector<128x32xf32>
    %79 = vector.extract_strided_slice %70 {offsets = [0, 32], sizes = [128, 32], strides = [1, 1]} : vector<128x96xf32> to vector<128x32xf32>
    %80 = arith.addf %74, %79 : vector<128x32xf32>
    %81 = arith.addf %80, %78 : vector<128x32xf32>
    %c3_40 = arith.constant 3 : index
    %c0_41 = arith.constant 0 : index
    %c0_42 = arith.constant 0 : index
    %82 = vector.load %arg3[%c3_40, %c0_41, %c0_42] : memref<5x128x32xf32, #tpu.memory_space<vmem>>, vector<1x128x32xf32>
    %83 = vector.shape_cast %82 : vector<1x128x32xf32> to vector<128x32xf32>
    %84 = arith.addf %81, %83 : vector<128x32xf32>
    %cst_43 = arith.constant 2.000000e-02 : f32
    %85 = vector.broadcast %cst_43 : f32 to vector<128x32xf32>
    %86 = arith.mulf %85, %84 : vector<128x32xf32>
    %87 = arith.maximumf %84, %86 : vector<128x32xf32>
    %c4 = arith.constant 4 : index
    %c0_44 = arith.constant 0 : index
    %c0_45 = arith.constant 0 : index
    %88 = vector.load %arg2[%c4, %c0_44, %c0_45] : memref<5x32x96xf32, #tpu.memory_space<vmem>>, vector<1x32x96xf32>
    %89 = vector.shape_cast %88 : vector<1x32x96xf32> to vector<32x96xf32>
    %cst_46 = arith.constant dense<0.000000e+00> : vector<128x96xf32>
    %90 = tpu.matmul %87, %89, %cst_46 {dimension_numbers = #tpu.dot_dimension_numbers<[1], [0], [0], [1], [0, 0, 1, 1], [], []>} : vector<128x32xf32>, vector<32x96xf32>, vector<128x96xf32> -> vector<128x96xf32>
    %91 = vector.extract_strided_slice %90 {offsets = [0, 0], sizes = [128, 32], strides = [1, 1]} : vector<128x96xf32> to vector<128x32xf32>
    %c1_i32_47 = arith.constant 1 : i32
    %92 = tpu.dynamic_rotate %91 by %c1_i32_47 dim 0 : vector<128x32xf32>, i32 -> vector<128x32xf32>
    %cst_48 = arith.constant 0.000000e+00 : f32
    %93 = vector.broadcast %cst_48 : f32 to vector<128x32xf32>
    %94 = arith.select %5, %92, %93 : vector<128x32xi1>, vector<128x32xf32>
    %95 = vector.extract_strided_slice %90 {offsets = [0, 64], sizes = [128, 32], strides = [1, 1]} : vector<128x96xf32> to vector<128x32xf32>
    %c127_i32_49 = arith.constant 127 : i32
    %96 = tpu.dynamic_rotate %95 by %c127_i32_49 dim 0 : vector<128x32xf32>, i32 -> vector<128x32xf32>
    %cst_50 = arith.constant 0.000000e+00 : f32
    %97 = vector.broadcast %cst_50 : f32 to vector<128x32xf32>
    %98 = arith.select %7, %96, %97 : vector<128x32xi1>, vector<128x32xf32>
    %99 = vector.extract_strided_slice %90 {offsets = [0, 32], sizes = [128, 32], strides = [1, 1]} : vector<128x96xf32> to vector<128x32xf32>
    %100 = arith.addf %94, %99 : vector<128x32xf32>
    %101 = arith.addf %100, %98 : vector<128x32xf32>
    %c4_51 = arith.constant 4 : index
    %c0_52 = arith.constant 0 : index
    %c0_53 = arith.constant 0 : index
    %102 = vector.load %arg3[%c4_51, %c0_52, %c0_53] : memref<5x128x32xf32, #tpu.memory_space<vmem>>, vector<1x128x32xf32>
    %103 = vector.shape_cast %102 : vector<1x128x32xf32> to vector<128x32xf32>
    %104 = arith.addf %101, %103 : vector<128x32xf32>
    %cst_54 = arith.constant 2.000000e-02 : f32
    %105 = vector.broadcast %cst_54 : f32 to vector<128x32xf32>
    %106 = arith.mulf %105, %104 : vector<128x32xf32>
    %107 = arith.maximumf %104, %106 : vector<128x32xf32>
    %108 = vector.extract_strided_slice %107 {offsets = [0, 0], sizes = [128, 1], strides = [1, 1]} : vector<128x32xf32> to vector<128x1xf32>
    %c0_55 = arith.constant 0 : index
    %c0_56 = arith.constant 0 : index
    %109 = vector.load %arg5[%c0_55, %c0_56] : memref<128x8xf32, #tpu.memory_space<vmem>>, vector<128x8xf32>
    %110 = vector.broadcast %108 : vector<128x1xf32> to vector<128x8xf32>
    %111 = arith.mulf %110, %109 : vector<128x8xf32>
    %c0_57 = arith.constant 0 : index
    %c0_58 = arith.constant 0 : index
    %112 = vector.load %arg7[%c0_57, %c0_58] : memref<16x128xf32, #tpu.memory_space<vmem>>, vector<16x128xf32>
    %cst_59 = arith.constant dense<0.000000e+00> : vector<16x8xf32>
    %113 = tpu.matmul %112, %111, %cst_59 {dimension_numbers = #tpu.dot_dimension_numbers<[1], [0], [0], [1], [0, 0, 1, 1], [], []>} : vector<16x128xf32>, vector<128x8xf32>, vector<16x8xf32> -> vector<16x8xf32>
    %c0_60 = arith.constant 0 : index
    %c0_61 = arith.constant 0 : index
    %114 = vector.load %arg4[%c0_60, %c0_61] : memref<9x8xf32, #tpu.memory_space<vmem>>, vector<8x8xf32>
    %c8 = arith.constant 8 : index
    %c0_62 = arith.constant 0 : index
    %115 = vector.load %arg4[%c8, %c0_62] : memref<9x8xf32, #tpu.memory_space<vmem>>, vector<1x8xf32>
    %cst_63 = arith.constant dense<0.000000e+00> : vector<16x8xf32>
    %116 = tpu.matmul %113, %114, %cst_63 {dimension_numbers = #tpu.dot_dimension_numbers<[1], [0], [0], [1], [0, 0, 1, 1], [], []>} : vector<16x8xf32>, vector<8x8xf32>, vector<16x8xf32> -> vector<16x8xf32>
    %117 = vector.broadcast %115 : vector<1x8xf32> to vector<16x8xf32>
    %118 = arith.addf %116, %117 : vector<16x8xf32>
    %cst_64 = arith.constant dense<0xFF800000> : vector<16xf32>
    %119 = vector.multi_reduction <maximumf>, %118, %cst_64 [1] : vector<16x8xf32> to vector<16xf32>
    %120 = vector.shape_cast %119 : vector<16xf32> to vector<16x1xf32>
    %121 = vector.broadcast %120 : vector<16x1xf32> to vector<16x8xf32>
    %122 = arith.subf %118, %121 : vector<16x8xf32>
    %123 = math.exp %122 : vector<16x8xf32>
    %cst_65 = arith.constant dense<0.000000e+00> : vector<16xf32>
    %124 = vector.multi_reduction <add>, %123, %cst_65 [1] : vector<16x8xf32> to vector<16xf32>
    %125 = vector.shape_cast %124 : vector<16xf32> to vector<16x1xf32>
    %126 = vector.broadcast %125 : vector<16x1xf32> to vector<16x8xf32>
    %127 = arith.divf %123, %126 : vector<16x8xf32>
    %c0_66 = arith.constant 0 : index
    %c0_67 = arith.constant 0 : index
    %128 = vector.load %arg6[%c0_66, %c0_67] : memref<128x16xf32, #tpu.memory_space<vmem>>, vector<128x16xf32>
    %cst_68 = arith.constant dense<0.000000e+00> : vector<128x8xf32>
    %129 = tpu.matmul %128, %127, %cst_68 {dimension_numbers = #tpu.dot_dimension_numbers<[1], [0], [0], [1], [0, 0, 1, 1], [], []>} : vector<128x16xf32>, vector<16x8xf32>, vector<128x8xf32> -> vector<128x8xf32>
    %c0_69 = arith.constant 0 : index
    %c0_70 = arith.constant 0 : index
    %130 = vector.load %arg5[%c0_69, %c0_70] : memref<128x8xf32, #tpu.memory_space<vmem>>, vector<128x8xf32>
    %131 = arith.mulf %130, %129 : vector<128x8xf32>
    %cst_71 = arith.constant dense<0.000000e+00> : vector<128xf32>
    %132 = vector.multi_reduction <add>, %131, %cst_71 [1] : vector<128x8xf32> to vector<128xf32>
    %133 = vector.shape_cast %132 : vector<128xf32> to vector<128x1xf32>
    %c0_72 = arith.constant 0 : index
    %c0_73 = arith.constant 0 : index
    %134 = vector.load %arg7[%c0_72, %c0_73] : memref<16x128xf32, #tpu.memory_space<vmem>>, vector<16x128xf32>
    %135 = vector.broadcast %133 : vector<128x1xf32> to vector<128x32xf32>
    %136 = arith.mulf %0, %135 : vector<128x32xf32>
    %cst_74 = arith.constant dense<0.000000e+00> : vector<16x32xf32>
    %137 = tpu.matmul %134, %136, %cst_74 {dimension_numbers = #tpu.dot_dimension_numbers<[1], [0], [0], [1], [0, 0, 1, 1], [], []>} : vector<16x128xf32>, vector<128x32xf32>, vector<16x32xf32> -> vector<16x32xf32>
    %c0_75 = arith.constant 0 : index
    %c0_76 = arith.constant 0 : index
    %138 = vector.load %arg8[%c0_75, %c0_76] : memref<16x32xf32, #tpu.memory_space<vmem>>, vector<16x32xf32>
    tpu.vector_store %arg8[%c0_75, %c0_76], %137 {strides = array<i32>} : memref<16x32xf32, #tpu.memory_space<vmem>>, vector<16x32xf32>,
    return
  }
  func.func @transform_0(%arg0: i32) -> (i32, i32) {
    %c0_i32 = arith.constant 0 : i32
    %c0_i32_0 = arith.constant 0 : i32
    return %arg0, %c0_i32 : i32, i32
  }
  func.func @transform_1(%arg0: i32) -> (i32, i32, i32) {
    %c0_i32 = arith.constant 0 : i32
    %c0_i32_0 = arith.constant 0 : i32
    %c0_i32_1 = arith.constant 0 : i32
    %c0_i32_2 = arith.constant 0 : i32
    return %c0_i32, %c0_i32_0, %c0_i32_1 : i32, i32, i32
  }
  func.func @transform_2(%arg0: i32) -> (i32, i32, i32) {
    %c0_i32 = arith.constant 0 : i32
    %c0_i32_0 = arith.constant 0 : i32
    %c0_i32_1 = arith.constant 0 : i32
    %c0_i32_2 = arith.constant 0 : i32
    return %c0_i32, %c0_i32_0, %c0_i32_1 : i32, i32, i32
  }
  func.func @transform_3(%arg0: i32) -> (i32, i32) {
    %c0_i32 = arith.constant 0 : i32
    %c0_i32_0 = arith.constant 0 : i32
    %c0_i32_1 = arith.constant 0 : i32
    return %c0_i32, %c0_i32_0 : i32, i32
  }
  func.func @transform_4(%arg0: i32) -> (i32, i32) {
    %c0_i32 = arith.constant 0 : i32
    %c0_i32_0 = arith.constant 0 : i32
    %c0_i32_1 = arith.constant 0 : i32
    return %c0_i32, %c0_i32_0 : i32, i32
  }
  func.func @transform_5(%arg0: i32) -> (i32, i32) {
    %c0_i32 = arith.constant 0 : i32
    %c0_i32_0 = arith.constant 0 : i32
    %c0_i32_1 = arith.constant 0 : i32
    return %c0_i32, %c0_i32_0 : i32, i32
  }
  func.func @transform_6(%arg0: i32) -> (i32, i32) {
    %c0_i32 = arith.constant 0 : i32
    %c0_i32_0 = arith.constant 0 : i32
    %c0_i32_1 = arith.constant 0 : i32
    return %c0_i32, %c0_i32_0 : i32, i32
  }
  func.func @transform_7(%arg0: i32) -> (i32, i32) {
    %c0_i32 = arith.constant 0 : i32
    %c0_i32_0 = arith.constant 0 : i32
    return %arg0, %c0_i32 : i32, i32
  }
}

</mosaic_0001>

<llo_original>
// kernel: _run_packed.1
$region0: #{_run_packed.1}
  #allocation0 [shape = 'u32[]', space=smem, size = 0x4, offset = 0x4, fixed_abs, tag = 'smem constant byte address 0x4 - core index']
  #allocation1 [shape = 'u32[144,128]{1,0:T(1,128)}', space=vmem, size = 0x12000, scoped, tag = 'internal scratch']
  %s0 = inlined_call_operand.vmem [shape: f32[256,32], index: 0, kind: input, shape index: {}]
  %s1 = inlined_call_operand.vmem [shape: f32[5,32,96], index: 1, kind: input, shape index: {}]
  %s2 = inlined_call_operand.vmem [shape: f32[5,128,32], index: 2, kind: input, shape index: {}]
  %s3 = inlined_call_operand.vmem [shape: f32[9,8], index: 3, kind: input, shape index: {}]
  %s4 = inlined_call_operand.vmem [shape: f32[128,8], index: 4, kind: input, shape index: {}]
  %s5 = inlined_call_operand.vmem [shape: f32[128,16], index: 5, kind: input, shape index: {}]
  %s6 = inlined_call_operand.vmem [shape: f32[16,128], index: 6, kind: input, shape index: {}]
  %s7 = inlined_call_operand.hbm [shape: f32[32,32], index: 7, kind: output, shape index: {}]
  %s8 = sld [smem:[#allocation0]]
  $region61: #{_run_packed.1} parent=0
    _
  %s10 = ssub.s32 1, %s8
  %s11 = scalar_select 0, %s10, %s8
  $region1: #{_run_packed.1} parent=0
    #allocation2 [shape = 'u8[16384]{0}', space=vmem, size = 0x4000, scoped, tag = 'output window, operand 0']
    #allocation3 [shape = 's32[2]{0}', space=sflag, size = 0x8, scoped, tag = 'scoped memory for _run_packed.1']
    %12 = vsyncpa [#allocation3], 0
    %s13 = scalar_lea.sflag [#allocation3], 1
    %14 = vsyncpa %s13, 0
    loop: start=0, step=1, limit=4
    $region2: #{_run_packed.1} parent=1 // loop_pre_header
      _
    $region3: #{_run_packed.1} parent=1 // loop_header
      %s16 = sphi 0, %s20
      %p17 = scmp.ge.s32.totalorder %s16, 4
      %s26 = sphi 0, %s28
      %s29 = sphi 0, %s26
      %s30 = sphi 0, %s29
      %s46 = sphi 0, %s30
      %s50 = sphi 0, %s50
      %s52 = sphi 0, %s50
      %s53 = sphi 0, %s52
      %s67 = sphi 0, %s53
      %s71 = sphi 0, %s71
      %s73 = sphi 0, %s71
      %s74 = sphi 0, %s73
      %s88 = sphi 0, %s74
      %s92 = sphi 0, %s92
      %s94 = sphi 0, %s92
      %s95 = sphi 0, %s94
      %s109 = sphi 0, %s95
      %s113 = sphi 0, %s113
      %s115 = sphi 0, %s113
      %s116 = sphi 0, %s115
      %s130 = sphi 0, %s116
      %s134 = sphi 0, %s134
      %s136 = sphi 0, %s134
      %s137 = sphi 0, %s136
      %s151 = sphi 0, %s137
      %s155 = sphi 0, %s155
      %s157 = sphi 0, %s155
      %s158 = sphi 0, %s157
      %s172 = sphi 0, %s158
      %s178 = sphi 0, %s180
      %s181 = sphi 0, %s178
      %s182 = sphi 0, %s181
      %s198 = sphi 0, %s182
    $region4: #{_run_packed.1} parent=1 // loop_header_branch
      %19 = sbr.rel (%p17) target = $region8
    $region5: #{_run_packed.1} parent=1 // loop_body
      %s21 = ssub.s32 %s16, 1
      %s22 = ssub.s32 %s16, 2
      %s23 = sadd.s32 %s16, 1
      %s24 = ssub.s32 %s16, %s23
      %p25 = scmp.eq.s32.totalorder %s24, 0
      %s27 = sadd.s32 %s26, 1
      %s28 = scalar_select %p25, %s26, %s27
      %p31 = pneg %p25
      %p32 = scmp.eq.s32.totalorder %s16, 1
      %p33 = por %p31, %p32
      %p34 = scmp.ne.s32.totalorder %s26, %s29
      %p35 = scmp.eq.s32.totalorder %s16, 0
      %p36 = por %p34, %p35
      %p37 = scmp.ne.s32.totalorder %s26, %s29
      %p38 = scmp.eq.s32.totalorder %s21, 1
      %p39 = por %p37, %p38
      %p40 = scmp.ne.s32.totalorder %s29, %s30
      %p41 = scmp.eq.s32.totalorder %s21, 0
      %p42 = por %p40, %p41
      %p43 = scmp.ne.s32.totalorder %s29, %s30
      %p44 = scmp.eq.s32.totalorder %s22, 1
      %p45 = por %p43, %p44
      %p47 = scmp.ne.s32.totalorder %s30, %s46
      %p48 = scmp.eq.s32.totalorder %s22, 0
      %p49 = por %p47, %p48
      %s51 = sadd.s32 %s50, 1
      %p54 = scmp.eq.s32.totalorder %s16, 1
      %p55 = scmp.ne.s32.totalorder %s50, %s52
      %p56 = scmp.eq.s32.totalorder %s16, 0
      %p57 = por %p55, %p56
      %p58 = scmp.ne.s32.totalorder %s50, %s52
      %p59 = scmp.eq.s32.totalorder %s21, 1
      %p60 = por %p58, %p59
      %p61 = scmp.ne.s32.totalorder %s52, %s53
      %p62 = scmp.eq.s32.totalorder %s21, 0
      %p63 = por %p61, %p62
      %p64 = scmp.ne.s32.totalorder %s52, %s53
      %p65 = scmp.eq.s32.totalorder %s22, 1
      %p66 = por %p64, %p65
      %p68 = scmp.ne.s32.totalorder %s53, %s67
      %p69 = scmp.eq.s32.totalorder %s22, 0
      %p70 = por %p68, %p69
      %s72 = sadd.s32 %s71, 1
      %p75 = scmp.eq.s32.totalorder %s16, 1
      %p76 = scmp.ne.s32.totalorder %s71, %s73
      %p77 = scmp.eq.s32.totalorder %s16, 0
      %p78 = por %p76, %p77
      %p79 = scmp.ne.s32.totalorder %s71, %s73
      %p80 = scmp.eq.s32.totalorder %s21, 1
      %p81 = por %p79, %p80
      %p82 = scmp.ne.s32.totalorder %s73, %s74
      %p83 = scmp.eq.s32.totalorder %s21, 0
      %p84 = por %p82, %p83
      %p85 = scmp.ne.s32.totalorder %s73, %s74
      %p86 = scmp.eq.s32.totalorder %s22, 1
      %p87 = por %p85, %p86
      %p89 = scmp.ne.s32.totalorder %s74, %s88
      %p90 = scmp.eq.s32.totalorder %s22, 0
      %p91 = por %p89, %p90
      %s93 = sadd.s32 %s92, 1
      %p96 = scmp.eq.s32.totalorder %s16, 1
      %p97 = scmp.ne.s32.totalorder %s92, %s94
      %p98 = scmp.eq.s32.totalorder %s16, 0
      %p99 = por %p97, %p98
      %p100 = scmp.ne.s32.totalorder %s92, %s94
      %p101 = scmp.eq.s32.totalorder %s21, 1
      %p102 = por %p100, %p101
      %p103 = scmp.ne.s32.totalorder %s94, %s95
      %p104 = scmp.eq.s32.totalorder %s21, 0
      %p105 = por %p103, %p104
      %p106 = scmp.ne.s32.totalorder %s94, %s95
      %p107 = scmp.eq.s32.totalorder %s22, 1
      %p108 = por %p106, %p107
      %p110 = scmp.ne.s32.totalorder %s95, %s109
      %p111 = scmp.eq.s32.totalorder %s22, 0
      %p112 = por %p110, %p111
      %s114 = sadd.s32 %s113, 1
      %p117 = scmp.eq.s32.totalorder %s16, 1
      %p118 = scmp.ne.s32.totalorder %s113, %s115
      %p119 = scmp.eq.s32.totalorder %s16, 0
      %p120 = por %p118, %p119
      %p121 = scmp.ne.s32.totalorder %s113, %s115
      %p122 = scmp.eq.s32.totalorder %s21, 1
      %p123 = por %p121, %p122
      %p124 = scmp.ne.s32.totalorder %s115, %s116
      %p125 = scmp.eq.s32.totalorder %s21, 0
      %p126 = por %p124, %p125
      %p127 = scmp.ne.s32.totalorder %s115, %s116
      %p128 = scmp.eq.s32.totalorder %s22, 1
      %p129 = por %p127, %p128
      %p131 = scmp.ne.s32.totalorder %s116, %s130
      %p132 = scmp.eq.s32.totalorder %s22, 0
      %p133 = por %p131, %p132
      %s135 = sadd.s32 %s134, 1
      %p138 = scmp.eq.s32.totalorder %s16, 1
      %p139 = scmp.ne.s32.totalorder %s134, %s136
      %p140 = scmp.eq.s32.totalorder %s16, 0
      %p141 = por %p139, %p140
      %p142 = scmp.ne.s32.totalorder %s134, %s136
      %p143 = scmp.eq.s32.totalorder %s21, 1
      %p144 = por %p142, %p143
      %p145 = scmp.ne.s32.totalorder %s136, %s137
      %p146 = scmp.eq.s32.totalorder %s21, 0
      %p147 = por %p145, %p146
      %p148 = scmp.ne.s32.totalorder %s136, %s137
      %p149 = scmp.eq.s32.totalorder %s22, 1
      %p150 = por %p148, %p149
      %p152 = scmp.ne.s32.totalorder %s137, %s151
      %p153 = scmp.eq.s32.totalorder %s22, 0
      %p154 = por %p152, %p153
      %s156 = sadd.s32 %s155, 1
      %p159 = scmp.eq.s32.totalorder %s16, 1
      %p160 = scmp.ne.s32.totalorder %s155, %s157
      %p161 = scmp.eq.s32.totalorder %s16, 0
      %p162 = por %p160, %p161
      %p163 = scmp.ne.s32.totalorder %s155, %s157
      %p164 = scmp.eq.s32.totalorder %s21, 1
      %p165 = por %p163, %p164
      %p166 = scmp.ne.s32.totalorder %s157, %s158
      %p167 = scmp.eq.s32.totalorder %s21, 0
      %p168 = por %p166, %p167
      %p169 = scmp.ne.s32.totalorder %s157, %s158
      %p170 = scmp.eq.s32.totalorder %s22, 1
      %p171 = por %p169, %p170
      %p173 = scmp.ne.s32.totalorder %s158, %s172
      %p174 = scmp.eq.s32.totalorder %s22, 0
      %p175 = por %p173, %p174
      %s176 = ssub.s32 %s16, %s23
      %p177 = scmp.eq.s32.totalorder %s176, 0
      %s179 = sadd.s32 %s178, 1
      %s180 = scalar_select %p177, %s178, %s179
      %p183 = pneg %p177
      %p184 = scmp.eq.s32.totalorder %s16, 1
      %p185 = por %p183, %p184
      %p186 = scmp.ne.s32.totalorder %s178, %s181
      %p187 = scmp.eq.s32.totalorder %s16, 0
      %p188 = por %p186, %p187
      %p189 = scmp.ne.s32.totalorder %s178, %s181
      %p190 = scmp.eq.s32.totalorder %s21, 1
      %p191 = por %p189, %p190
      %p192 = scmp.ne.s32.totalorder %s181, %s182
      %p193 = scmp.eq.s32.totalorder %s21, 0
      %p194 = por %p192, %p193
      %p195 = scmp.ne.s32.totalorder %s181, %s182
      %p196 = scmp.eq.s32.totalorder %s22, 1
      %p197 = por %p195, %p196
      %p199 = scmp.ne.s32.totalorder %s182, %s198
      %p200 = scmp.eq.s32.totalorder %s22, 0
      %p201 = por %p199, %p200
      %p202 = scmp.le.s32.totalorder 1, %s16
      %p203 = scmp.lt.s32.totalorder %s16, 3
      %p204 = pnand %p202, %p203
      %p205 = pneg %p204
      // Predicated region
      $region9: #{_run_packed.1} parent=5 // pred_check
        _
      $region10: #{_run_packed.1} parent=5 // pred_check_branch
        %207 = sbr.rel (%p204) target = $region12
      $region11: #{_run_packed.1} parent=5 // pred_region
        %s208 = ssub.s32 %s16, 1
        // Predicated region
        $region13: #{_run_packed.1} parent=11 // pred_check
          %p209 = pneg %p63
        $region14: #{_run_packed.1} parent=11 // pred_check_branch
          %211 = sbr.rel (%p209) target = $region16
        $region15: #{_run_packed.1} parent=11 // pred_region
          _
        $region16: #{_run_packed.1} parent=11 // pred_fallthru
          _
        // Predicated region
        $region17: #{_run_packed.1} parent=11 // pred_check
          %p212 = pneg %p84
        $region18: #{_run_packed.1} parent=11 // pred_check_branch
          %214 = sbr.rel (%p212) target = $region20
        $region19: #{_run_packed.1} parent=11 // pred_region
          _
        $region20: #{_run_packed.1} parent=11 // pred_fallthru
          _
        // Predicated region
        $region21: #{_run_packed.1} parent=11 // pred_check
          %p215 = pneg %p105
        $region22: #{_run_packed.1} parent=11 // pred_check_branch
          %217 = sbr.rel (%p215) target = $region24
        $region23: #{_run_packed.1} parent=11 // pred_region
          _
        $region24: #{_run_packed.1} parent=11 // pred_fallthru
          _
        // Predicated region
        $region25: #{_run_packed.1} parent=11 // pred_check
          %p218 = pneg %p126
        $region26: #{_run_packed.1} parent=11 // pred_check_branch
          %220 = sbr.rel (%p218) target = $region28
        $region27: #{_run_packed.1} parent=11 // pred_region
          _
        $region28: #{_run_packed.1} parent=11 // pred_fallthru
          _
        // Predicated region
        $region29: #{_run_packed.1} parent=11 // pred_check
          %p221 = pneg %p147
        $region30: #{_run_packed.1} parent=11 // pred_check_branch
          %223 = sbr.rel (%p221) target = $region32
        $region31: #{_run_packed.1} parent=11 // pred_region
          _
        $region32: #{_run_packed.1} parent=11 // pred_fallthru
          _
        // Predicated region
        $region33: #{_run_packed.1} parent=11 // pred_check
          %p224 = pneg %p168
        $region34: #{_run_packed.1} parent=11 // pred_check_branch
          %226 = sbr.rel (%p224) target = $region36
        $region35: #{_run_packed.1} parent=11 // pred_region
          _
        $region36: #{_run_packed.1} parent=11 // pred_fallthru
          _
      $region12: #{_run_packed.1} parent=5 // pred_fallthru
        _
      %p227 = scmp.lt.s32.totalorder %s16, 2
      // Predicated region
      $region37: #{_run_packed.1} parent=5 // pred_check
        %p228 = pneg %p227
      $region38: #{_run_packed.1} parent=5 // pred_check_branch
        %230 = sbr.rel (%p228) target = $region40
      $region39: #{_run_packed.1} parent=5 // pred_region
        // Predicated region
        $region41: #{_run_packed.1} parent=39 // pred_check
          %p231 = pneg %p36
        $region42: #{_run_packed.1} parent=39 // pred_check_branch
          %233 = sbr.rel (%p231) target = $region44
        $region43: #{_run_packed.1} parent=39 // pred_region
          %s234 = smul.u32 16, %s16
          %p235 = scmp.lt.s32.totalorder %s234, 31
          %s236 = scalar_select %p235, %s234, 31
          %s237 = smul.addr %s236, 8
          %s238 = scalar_lea.vmem %s0, %s237
          %s239 = smul.u32 16, %s16
        $region44: #{_run_packed.1} parent=39 // pred_fallthru
          _
      $region40: #{_run_packed.1} parent=5 // pred_fallthru
        _
      %p240 = scmp.le.s32.totalorder 1, %s16
      %p241 = scmp.lt.s32.totalorder %s16, 3
      %p242 = pnand %p240, %p241
      %p243 = pneg %p242
      // Predicated region
      $region45: #{_run_packed.1} parent=5 // pred_check
        _
      $region46: #{_run_packed.1} parent=5 // pred_check_branch
        %245 = sbr.rel (%p242) target = $region48
      $region47: #{_run_packed.1} parent=5 // pred_region
        %s246 = ssub.s32 %s16, 1
        %s247 = smul.u32 16, %s21
        %p248 = scmp.lt.s32.totalorder %s247, 31
        %s249 = scalar_select %p248, %s247, 31
        %s250 = smul.addr %s249, 8
        %s251 = scalar_lea.vmem %s0, %s250
        %p252 = pneg %p42
        %p253 = pneg %p39
        %p254 = pneg %p63
        %p255 = pneg %p60
        %p256 = pneg %p84
        %p257 = pneg %p81
        %p258 = pneg %p105
        %p259 = pneg %p102
        %p260 = pneg %p126
        %p261 = pneg %p123
        %p262 = pneg %p147
        %p263 = pneg %p144
        %p264 = pneg %p168
        %p265 = pneg %p165
        %p266 = pneg %p194
        %p267 = pneg %p191
        %s268 = sand.u32 %s181, 1
        %s269 = scalar_lea.sflag [#allocation3], %s268
        %s270 = sand.u32 %s181, 1
        %s271 = smul.addr %s270, 16
        %s272 = scalar_lea.vmem [#allocation2], %s271
        %s273 = smul.u32 16, %s21
        %p274 = scmp.lt.s32.totalorder %s273, 31
        %s275 = scalar_select %p274, %s273, 31
        %s276 = smul.addr %s275, 8
        %s277 = scalar_lea.vmem %s0, %s276
        %s278 = smul.u32 16, %s21
        %s279 = smul.u32 2, %s21
        %v280 = vld [vmem:[%s277] sm:$0xff]
        %v281 = vld [vmem:[%s277 + $0x8] sm:$0xff]
        %v282 = vld [vmem:[%s277 + $0x10] sm:$0xff]
        %v283 = vld [vmem:[%s277 + $0x18] sm:$0xff]
        %v284 = vld [vmem:[%s277 + $0x20] sm:$0xff]
        %v285 = vld [vmem:[%s277 + $0x28] sm:$0xff]
        %v286 = vld [vmem:[%s277 + $0x30] sm:$0xff]
        %v287 = vld [vmem:[%s277 + $0x38] sm:$0xff]
        %v288 = vld [vmem:[%s277 + $0x40] sm:$0xff]
        %v289 = vld [vmem:[%s277 + $0x48] sm:$0xff]
        %v290 = vld [vmem:[%s277 + $0x50] sm:$0xff]
        %v291 = vld [vmem:[%s277 + $0x58] sm:$0xff]
        %v292 = vld [vmem:[%s277 + $0x60] sm:$0xff]
        %v293 = vld [vmem:[%s277 + $0x68] sm:$0xff]
        %v294 = vld [vmem:[%s277 + $0x70] sm:$0xff]
        %v295 = vld [vmem:[%s277 + $0x78] sm:$0xff]
        %v296 = vlaneseq
        %v297 = vshrl.u32 %v296, 7
        %v298 = vadd.s32 %v297, 8
        %v299 = vadd.s32 %v297, 16
        %v300 = vadd.s32 %v297, 24
        %v301 = vadd.s32 %v297, 32
        %v302 = vadd.s32 %v297, 40
        %v303 = vadd.s32 %v297, 48
        %v304 = vadd.s32 %v297, 56
        %v305 = vadd.s32 %v297, 64
        %v306 = vadd.s32 %v297, 72
        %v307 = vadd.s32 %v297, 80
        %v308 = vadd.s32 %v297, 88
        %v309 = vadd.s32 %v297, 96
        %v310 = vadd.s32 %v297, 104
        %v311 = vadd.s32 %v297, 112
        %v312 = vadd.s32 %v297, 120
        %v313 = vand.u32 %v297, 7
        %v314 = vand.u32 %v298, 7
        %v315 = vand.u32 %v299, 7
        %v316 = vand.u32 %v300, 7
        %v317 = vand.u32 %v301, 7
        %v318 = vand.u32 %v302, 7
        %v319 = vand.u32 %v303, 7
        %v320 = vand.u32 %v304, 7
        %v321 = vand.u32 %v305, 7
        %v322 = vand.u32 %v306, 7
        %v323 = vand.u32 %v307, 7
        %v324 = vand.u32 %v308, 7
        %v325 = vand.u32 %v309, 7
        %v326 = vand.u32 %v310, 7
        %v327 = vand.u32 %v311, 7
        %v328 = vand.u32 %v312, 7
        %vm329 = vcmp.ne.s32.totalorder %v313, 0
        %vm330 = vcmp.ne.s32.totalorder %v314, 0
        %vm331 = vcmp.ne.s32.totalorder %v315, 0
        %vm332 = vcmp.ne.s32.totalorder %v316, 0
        %vm333 = vcmp.ne.s32.totalorder %v317, 0
        %vm334 = vcmp.ne.s32.totalorder %v318, 0
        %vm335 = vcmp.ne.s32.totalorder %v319, 0
        %vm336 = vcmp.ne.s32.totalorder %v320, 0
        %vm337 = vcmp.ne.s32.totalorder %v321, 0
        %vm338 = vcmp.ne.s32.totalorder %v322, 0
        %vm339 = vcmp.ne.s32.totalorder %v323, 0
        %vm340 = vcmp.ne.s32.totalorder %v324, 0
        %vm341 = vcmp.ne.s32.totalorder %v325, 0
        %vm342 = vcmp.ne.s32.totalorder %v326, 0
        %vm343 = vcmp.ne.s32.totalorder %v327, 0
        %vm344 = vcmp.ne.s32.totalorder %v328, 0
        %vm345 = vcmp.ne.s32.totalorder %v313, 7
        %vm346 = vcmp.ne.s32.totalorder %v314, 7
        %vm347 = vcmp.ne.s32.totalorder %v315, 7
        %vm348 = vcmp.ne.s32.totalorder %v316, 7
        %vm349 = vcmp.ne.s32.totalorder %v317, 7
        %vm350 = vcmp.ne.s32.totalorder %v318, 7
        %vm351 = vcmp.ne.s32.totalorder %v319, 7
        %vm352 = vcmp.ne.s32.totalorder %v320, 7
        %vm353 = vcmp.ne.s32.totalorder %v321, 7
        %vm354 = vcmp.ne.s32.totalorder %v322, 7
        %vm355 = vcmp.ne.s32.totalorder %v323, 7
        %vm356 = vcmp.ne.s32.totalorder %v324, 7
        %vm357 = vcmp.ne.s32.totalorder %v325, 7
        %vm358 = vcmp.ne.s32.totalorder %v326, 7
        %vm359 = vcmp.ne.s32.totalorder %v327, 7
        %vm360 = vcmp.ne.s32.totalorder %v328, 7
        %v361 = vld [vmem:[%s1] sm:$0xff]
        %v362 = vld [vmem:[%s1 + $0x8] sm:$0xff]
        %v363 = vld [vmem:[%s1 + $0x10] sm:$0xff]
        %v364 = vld [vmem:[%s1 + $0x18] sm:$0xff]
        %vm365 = vcmask 261120
        %v367 = vsel %vm365, %v280, 0
        %v370 = vsel %vm365, %v281, 0
        %v373 = vsel %vm365, %v282, 0
        %v376 = vsel %vm365, %v283, 0
        %v379 = vsel %vm365, %v284, 0
        %v382 = vsel %vm365, %v285, 0
        %v385 = vsel %vm365, %v286, 0
        %v388 = vsel %vm365, %v287, 0
        %v391 = vsel %vm365, %v288, 0
        %v394 = vsel %vm365, %v289, 0
        %v397 = vsel %vm365, %v290, 0
        %v400 = vsel %vm365, %v291, 0
        %v403 = vsel %vm365, %v292, 0
        %v406 = vsel %vm365, %v293, 0
        %v409 = vsel %vm365, %v294, 0
        %v412 = vsel %vm365, %v295, 0
        %414 = vmatprep.subr.mxu0 0.0
        %415 = vmatpush1.msra.mxu0 0.0
        %416 = vmatprep.subr.mxu0 0.0
        %417 = vmatpush1.msra.mxu0 0.0
        %418 = vmatprep.subr.mxu0 0.0
        %419 = vmatpush1.msra.mxu0 0.0
        %420 = vmatprep.subr.mxu0 0.0
        %421 = vmatpush1.msra.mxu0 0.0
        %422 = vmatprep.subr.mxu0 0.0
        %423 = vmatpush1.msra.mxu0 0.0
        %424 = vmatprep.subr.mxu0 0.0
        %425 = vmatpush1.msra.mxu0 0.0
        %426 = vmatprep.subr.mxu0 0.0
        %427 = vmatpush1.msra.mxu0 0.0
        %428 = vmatprep.subr.mxu0 0.0
        %429 = vmatpush1.msra.mxu0 0.0
        %430 = vmatprep.subr.mxu0 0.0
        %431 = vmatpush1.msra.mxu0 0.0
        %432 = vmatprep.subr.mxu0 0.0
        %433 = vmatpush1.msra.mxu0 0.0
        %434 = vmatprep.subr.mxu0 0.0
        %435 = vmatpush1.msra.mxu0 0.0
        %436 = vmatprep.subr.mxu0 0.0
        %437 = vmatpush1.msra.mxu0 0.0
        %438 = vmatprep.subr.mxu0 0.0
        %439 = vmatpush1.msra.mxu0 %v364
        %440 = vmatprep.subr.mxu0 0.0
        %441 = vmatpush1.msra.mxu0 %v363
        %442 = vmatprep.subr.mxu0 0.0
        %443 = vmatpush1.msra.mxu0 %v362
        %444 = vmatprep.subr.mxu0 0.0
        %445 = vmatpush1.msra.mxu0 %v361
        %446 = vmatprep.subr.mxu0 0.0
        %447 = vmatpush2.msra.mxu0 0.0
        %448 = vmatprep.subr.mxu0 0.0
        %449 = vmatpush2.msra.mxu0 0.0
        %450 = vmatprep.subr.mxu0 0.0
        %451 = vmatpush2.msra.mxu0 0.0
        %452 = vmatprep.subr.mxu0 0.0
        %453 = vmatpush2.msra.mxu0 0.0
        %454 = vmatprep.subr.mxu0 0.0
        %455 = vmatpush2.msra.mxu0 0.0
        %456 = vmatprep.subr.mxu0 0.0
        %457 = vmatpush2.msra.mxu0 0.0
        %458 = vmatprep.subr.mxu0 0.0
        %459 = vmatpush2.msra.mxu0 0.0
        %460 = vmatprep.subr.mxu0 0.0
        %461 = vmatpush2.msra.mxu0 0.0
        %462 = vmatprep.subr.mxu0 0.0
        %463 = vmatpush2.msra.mxu0 0.0
        %464 = vmatprep.subr.mxu0 0.0
        %465 = vmatpush2.msra.mxu0 0.0
        %466 = vmatprep.subr.mxu0 0.0
        %467 = vmatpush2.msra.mxu0 0.0
        %468 = vmatprep.subr.mxu0 0.0
        %469 = vmatpush2.msra.mxu0 0.0
        %470 = vmatprep.subr.mxu0 0.0
        %471 = vmatpush2.msra.mxu0 0.0
        %472 = vmatprep.subr.mxu0 0.0
        %473 = vmatpush2.msra.mxu0 0.0
        %474 = vmatprep.subr.mxu0 0.0
        %475 = vmatpush2.msra.mxu0 0.0
        %476 = vmatprep.subr.mxu0 0.0
        %477 = vmatpush2.msra.mxu0 0.0
        %478 = vmatprep.mubr.f32.mxu0 0.0
        %479 = vmatmul.mubr.f32.gmra.mxu0 %v367
        %v480 = vpop.f32.mrf.mxu0
        %v481 = vadd.f32 0.0, %v480
        %v482 = vpop.f32.mrf.mxu0
        %483 = vmatprep.mubr.f32.mxu0 0.0
        %484 = vmatmul.mubr.f32.gmra.mxu0 %v370
        %v485 = vpop.f32.mrf.mxu0
        %v486 = vadd.f32 0.0, %v485
        %v487 = vpop.f32.mrf.mxu0
        %488 = vmatprep.mubr.f32.mxu0 0.0
        %489 = vmatmul.mubr.f32.gmra.mxu0 %v373
        %v490 = vpop.f32.mrf.mxu0
        %v491 = vadd.f32 0.0, %v490
        %v492 = vpop.f32.mrf.mxu0
        %493 = vmatprep.mubr.f32.mxu0 0.0
        %494 = vmatmul.mubr.f32.gmra.mxu0 %v376
        %v495 = vpop.f32.mrf.mxu0
        %v496 = vadd.f32 0.0, %v495
        %v497 = vpop.f32.mrf.mxu0
        %498 = vmatprep.mubr.f32.mxu0 0.0
        %499 = vmatmul.mubr.f32.gmra.mxu0 %v379
        %v500 = vpop.f32.mrf.mxu0
        %v501 = vadd.f32 0.0, %v500
        %v502 = vpop.f32.mrf.mxu0
        %503 = vmatprep.mubr.f32.mxu0 0.0
        %504 = vmatmul.mubr.f32.gmra.mxu0 %v382
        %v505 = vpop.f32.mrf.mxu0
        %v506 = vadd.f32 0.0, %v505
        %v507 = vpop.f32.mrf.mxu0
        %508 = vmatprep.mubr.f32.mxu0 0.0
        %509 = vmatmul.mubr.f32.gmra.mxu0 %v385
        %v510 = vpop.f32.mrf.mxu0
        %v511 = vadd.f32 0.0, %v510
        %v512 = vpop.f32.mrf.mxu0
        %513 = vmatprep.mubr.f32.mxu0 0.0
        %514 = vmatmul.mubr.f32.gmra.mxu0 %v388
        %v515 = vpop.f32.mrf.mxu0
        %v516 = vadd.f32 0.0, %v515
        %v517 = vpop.f32.mrf.mxu0
        %518 = vmatprep.mubr.f32.mxu0 0.0
        %519 = vmatmul.mubr.f32.gmra.mxu0 %v391
        %v520 = vpop.f32.mrf.mxu0
        %v521 = vadd.f32 0.0, %v520
        %v522 = vpop.f32.mrf.mxu0
        %523 = vmatprep.mubr.f32.mxu0 0.0
        %524 = vmatmul.mubr.f32.gmra.mxu0 %v394
        %v525 = vpop.f32.mrf.mxu0
        %v526 = vadd.f32 0.0, %v525
        %v527 = vpop.f32.mrf.mxu0
        %528 = vmatprep.mubr.f32.mxu0 0.0
        %529 = vmatmul.mubr.f32.gmra.mxu0 %v397
        %v530 = vpop.f32.mrf.mxu0
        %v531 = vadd.f32 0.0, %v530
        %v532 = vpop.f32.mrf.mxu0
        %533 = vmatprep.mubr.f32.mxu0 0.0
        %534 = vmatmul.mubr.f32.gmra.mxu0 %v400
        %v535 = vpop.f32.mrf.mxu0
        %v536 = vadd.f32 0.0, %v535
        %v537 = vpop.f32.mrf.mxu0
        %538 = vmatprep.mubr.f32.mxu0 0.0
        %539 = vmatmul.mubr.f32.gmra.mxu0 %v403
        %v540 = vpop.f32.mrf.mxu0
        %v541 = vadd.f32 0.0, %v540
        %v542 = vpop.f32.mrf.mxu0
        %543 = vmatprep.mubr.f32.mxu0 0.0
        %544 = vmatmul.mubr.f32.gmra.mxu0 %v406
        %v545 = vpop.f32.mrf.mxu0
        %v546 = vadd.f32 0.0, %v545
        %v547 = vpop.f32.mrf.mxu0
        %548 = vmatprep.mubr.f32.mxu0 0.0
        %549 = vmatmul.mubr.f32.gmra.mxu0 %v409
        %v550 = vpop.f32.mrf.mxu0
        %v551 = vadd.f32 0.0, %v550
        %v552 = vpop.f32.mrf.mxu0
        %553 = vmatprep.mubr.f32.mxu0 0.0
        %554 = vmatmul.mubr.f32.gmra.mxu0 %v412
        %v555 = vpop.f32.mrf.mxu0
        %v556 = vadd.f32 0.0, %v555
        %v557 = vpop.f32.mrf.mxu0
        %558 = vdwg.mxu0
        %v559 = vrot.slane %v481, 7
        %v560 = vrot.slane %v486, 7
        %v561 = vrot.slane %v491, 7
        %v562 = vrot.slane %v496, 7
        %v563 = vrot.slane %v501, 7
        %v564 = vrot.slane %v506, 7
        %v565 = vrot.slane %v511, 7
        %v566 = vrot.slane %v516, 7
        %v567 = vrot.slane %v521, 7
        %v568 = vrot.slane %v526, 7
        %v569 = vrot.slane %v531, 7
        %v570 = vrot.slane %v536, 7
        %v571 = vrot.slane %v541, 7
        %v572 = vrot.slane %v546, 7
        %v573 = vrot.slane %v551, 7
        %v574 = vrot.slane %v556, 7
        %vm575 = vcmp.lt.s32.totalorder %v297, 1
        %v576 = vsel %vm575, %v573, %v574
        %v577 = vsel %vm575, %v572, %v573
        %v578 = vsel %vm575, %v571, %v572
        %v579 = vsel %vm575, %v570, %v571
        %v580 = vsel %vm575, %v569, %v570
        %v581 = vsel %vm575, %v568, %v569
        %v582 = vsel %vm575, %v567, %v568
        %v583 = vsel %vm575, %v566, %v567
        %v584 = vsel %vm575, %v565, %v566
        %v585 = vsel %vm575, %v564, %v565
        %v586 = vsel %vm575, %v563, %v564
        %v587 = vsel %vm575, %v562, %v563
        %v588 = vsel %vm575, %v561, %v562
        %v589 = vsel %vm575, %v560, %v561
        %v590 = vsel %vm575, %v559, %v560
        %v591 = vsel %vm575, %v574, %v559
        %v592 = vsel %vm329, %v591, 0.0
        %v593 = vsel %vm330, %v590, 0.0
        %v594 = vsel %vm331, %v589, 0.0
        %v595 = vsel %vm332, %v588, 0.0
        %v596 = vsel %vm333, %v587, 0.0
        %v597 = vsel %vm334, %v586, 0.0
        %v598 = vsel %vm335, %v585, 0.0
        %v599 = vsel %vm336, %v584, 0.0
        %v600 = vsel %vm337, %v583, 0.0
        %v601 = vsel %vm338, %v582, 0.0
        %v602 = vsel %vm339, %v581, 0.0
        %v603 = vsel %vm340, %v580, 0.0
        %v604 = vsel %vm341, %v579, 0.0
        %v605 = vsel %vm342, %v578, 0.0
        %v606 = vsel %vm343, %v577, 0.0
        %v607 = vsel %vm344, %v576, 0.0
        %624 = vrot.lane.b32.xlu0 %v481, 64
        %v625 = vpop.permute.xlu0 %624
        %626 = vrot.lane.b32.xlu0 %v486, 64
        %v627 = vpop.permute.xlu0 %626
        %628 = vrot.lane.b32.xlu0 %v491, 64
        %v629 = vpop.permute.xlu0 %628
        %630 = vrot.lane.b32.xlu0 %v496, 64
        %v631 = vpop.permute.xlu0 %630
        %632 = vrot.lane.b32.xlu0 %v501, 64
        %v633 = vpop.permute.xlu0 %632
        %634 = vrot.lane.b32.xlu0 %v506, 64
        %v635 = vpop.permute.xlu0 %634
        %636 = vrot.lane.b32.xlu0 %v511, 64
        %v637 = vpop.permute.xlu0 %636
        %638 = vrot.lane.b32.xlu0 %v516, 64
        %v639 = vpop.permute.xlu0 %638
        %640 = vrot.lane.b32.xlu0 %v521, 64
        %v641 = vpop.permute.xlu0 %640
        %642 = vrot.lane.b32.xlu0 %v526, 64
        %v643 = vpop.permute.xlu0 %642
        %644 = vrot.lane.b32.xlu0 %v531, 64
        %v645 = vpop.permute.xlu0 %644
        %646 = vrot.lane.b32.xlu0 %v536, 64
        %v647 = vpop.permute.xlu0 %646
        %648 = vrot.lane.b32.xlu0 %v541, 64
        %v649 = vpop.permute.xlu0 %648
        %650 = vrot.lane.b32.xlu0 %v546, 64
        %v651 = vpop.permute.xlu0 %650
        %652 = vrot.lane.b32.xlu0 %v551, 64
        %v653 = vpop.permute.xlu0 %652
        %654 = vrot.lane.b32.xlu0 %v556, 64
        %v655 = vpop.permute.xlu0 %654
        %v672 = vrot.slane %v625, 1
        %v673 = vrot.slane %v627, 1
        %v674 = vrot.slane %v629, 1
        %v675 = vrot.slane %v631, 1
        %v676 = vrot.slane %v633, 1
        %v677 = vrot.slane %v635, 1
        %v678 = vrot.slane %v637, 1
        %v679 = vrot.slane %v639, 1
        %v680 = vrot.slane %v641, 1
        %v681 = vrot.slane %v643, 1
        %v682 = vrot.slane %v645, 1
        %v683 = vrot.slane %v647, 1
        %v684 = vrot.slane %v649, 1
        %v685 = vrot.slane %v651, 1
        %v686 = vrot.slane %v653, 1
        %v687 = vrot.slane %v655, 1
        %vm688 = vcmp.lt.s32.totalorder %v297, 7
        %v689 = vsel %vm688, %v686, %v687
        %v690 = vsel %vm688, %v685, %v686
        %v691 = vsel %vm688, %v684, %v685
        %v692 = vsel %vm688, %v683, %v684
        %v693 = vsel %vm688, %v682, %v683
        %v694 = vsel %vm688, %v681, %v682
        %v695 = vsel %vm688, %v680, %v681
        %v696 = vsel %vm688, %v679, %v680
        %v697 = vsel %vm688, %v678, %v679
        %v698 = vsel %vm688, %v677, %v678
        %v699 = vsel %vm688, %v676, %v677
        %v700 = vsel %vm688, %v675, %v676
        %v701 = vsel %vm688, %v674, %v675
        %v702 = vsel %vm688, %v673, %v674
        %v703 = vsel %vm688, %v672, %v673
        %v704 = vsel %vm688, %v687, %v672
        %v705 = vsel %vm345, %v703, 0.0
        %v706 = vsel %vm346, %v702, 0.0
        %v707 = vsel %vm347, %v701, 0.0
        %v708 = vsel %vm348, %v700, 0.0
        %v709 = vsel %vm349, %v699, 0.0
        %v710 = vsel %vm350, %v698, 0.0
        %v711 = vsel %vm351, %v697, 0.0
        %v712 = vsel %vm352, %v696, 0.0
        %v713 = vsel %vm353, %v695, 0.0
        %v714 = vsel %vm354, %v694, 0.0
        %v715 = vsel %vm355, %v693, 0.0
        %v716 = vsel %vm356, %v692, 0.0
        %v717 = vsel %vm357, %v691, 0.0
        %v718 = vsel %vm358, %v690, 0.0
        %v719 = vsel %vm359, %v689, 0.0
        %v720 = vsel %vm360, %v704, 0.0
        %721 = vrot.lane.b32.xlu0 %v481, 96
        %v722 = vpop.permute.xlu0 %721
        %723 = vrot.lane.b32.xlu0 %v486, 96
        %v724 = vpop.permute.xlu0 %723
        %725 = vrot.lane.b32.xlu0 %v491, 96
        %v726 = vpop.permute.xlu0 %725
        %727 = vrot.lane.b32.xlu0 %v496, 96
        %v728 = vpop.permute.xlu0 %727
        %729 = vrot.lane.b32.xlu0 %v501, 96
        %v730 = vpop.permute.xlu0 %729
        %731 = vrot.lane.b32.xlu0 %v506, 96
        %v732 = vpop.permute.xlu0 %731
        %733 = vrot.lane.b32.xlu0 %v511, 96
        %v734 = vpop.permute.xlu0 %733
        %735 = vrot.lane.b32.xlu0 %v516, 96
        %v736 = vpop.permute.xlu0 %735
        %737 = vrot.lane.b32.xlu0 %v521, 96
        %v738 = vpop.permute.xlu0 %737
        %739 = vrot.lane.b32.xlu0 %v526, 96
        %v740 = vpop.permute.xlu0 %739
        %741 = vrot.lane.b32.xlu0 %v531, 96
        %v742 = vpop.permute.xlu0 %741
        %743 = vrot.lane.b32.xlu0 %v536, 96
        %v744 = vpop.permute.xlu0 %743
        %745 = vrot.lane.b32.xlu0 %v541, 96
        %v746 = vpop.permute.xlu0 %745
        %747 = vrot.lane.b32.xlu0 %v546, 96
        %v748 = vpop.permute.xlu0 %747
        %749 = vrot.lane.b32.xlu0 %v551, 96
        %v750 = vpop.permute.xlu0 %749
        %751 = vrot.lane.b32.xlu0 %v556, 96
        %v752 = vpop.permute.xlu0 %751
        %v769 = vadd.f32 %v592, %v722
        %v770 = vadd.f32 %v593, %v724
        %v771 = vadd.f32 %v594, %v726
        %v772 = vadd.f32 %v595, %v728
        %v773 = vadd.f32 %v596, %v730
        %v774 = vadd.f32 %v597, %v732
        %v775 = vadd.f32 %v598, %v734
        %v776 = vadd.f32 %v599, %v736
        %v777 = vadd.f32 %v600, %v738
        %v778 = vadd.f32 %v601, %v740
        %v779 = vadd.f32 %v602, %v742
        %v780 = vadd.f32 %v603, %v744
        %v781 = vadd.f32 %v604, %v746
        %v782 = vadd.f32 %v605, %v748
        %v783 = vadd.f32 %v606, %v750
        %v784 = vadd.f32 %v607, %v752
        %v785 = vadd.f32 %v769, %v705
        %v786 = vadd.f32 %v770, %v706
        %v787 = vadd.f32 %v771, %v707
        %v788 = vadd.f32 %v772, %v708
        %v789 = vadd.f32 %v773, %v709
        %v790 = vadd.f32 %v774, %v710
        %v791 = vadd.f32 %v775, %v711
        %v792 = vadd.f32 %v776, %v712
        %v793 = vadd.f32 %v777, %v713
        %v794 = vadd.f32 %v778, %v714
        %v795 = vadd.f32 %v779, %v715
        %v796 = vadd.f32 %v780, %v716
        %v797 = vadd.f32 %v781, %v717
        %v798 = vadd.f32 %v782, %v718
        %v799 = vadd.f32 %v783, %v719
        %v800 = vadd.f32 %v784, %v720
        %v801 = vld [vmem:[%s2] sm:$0xff]
        %v802 = vld [vmem:[%s2 + $0x8] sm:$0xff]
        %v803 = vld [vmem:[%s2 + $0x10] sm:$0xff]
        %v804 = vld [vmem:[%s2 + $0x18] sm:$0xff]
        %v805 = vld [vmem:[%s2 + $0x20] sm:$0xff]
        %v806 = vld [vmem:[%s2 + $0x28] sm:$0xff]
        %v807 = vld [vmem:[%s2 + $0x30] sm:$0xff]
        %v808 = vld [vmem:[%s2 + $0x38] sm:$0xff]
        %v809 = vld [vmem:[%s2 + $0x40] sm:$0xff]
        %v810 = vld [vmem:[%s2 + $0x48] sm:$0xff]
        %v811 = vld [vmem:[%s2 + $0x50] sm:$0xff]
        %v812 = vld [vmem:[%s2 + $0x58] sm:$0xff]
        %v813 = vld [vmem:[%s2 + $0x60] sm:$0xff]
        %v814 = vld [vmem:[%s2 + $0x68] sm:$0xff]
        %v815 = vld [vmem:[%s2 + $0x70] sm:$0xff]
        %v816 = vld [vmem:[%s2 + $0x78] sm:$0xff]
        %v817 = vadd.f32 %v785, %v801
        %v818 = vadd.f32 %v786, %v802
        %v819 = vadd.f32 %v787, %v803
        %v820 = vadd.f32 %v788, %v804
        %v821 = vadd.f32 %v789, %v805
        %v822 = vadd.f32 %v790, %v806
        %v823 = vadd.f32 %v791, %v807
        %v824 = vadd.f32 %v792, %v808
        %v825 = vadd.f32 %v793, %v809
        %v826 = vadd.f32 %v794, %v810
        %v827 = vadd.f32 %v795, %v811
        %v828 = vadd.f32 %v796, %v812
        %v829 = vadd.f32 %v797, %v813
        %v830 = vadd.f32 %v798, %v814
        %v831 = vadd.f32 %v799, %v815
        %v832 = vadd.f32 %v800, %v816
        %v833 = vmul.f32 %v817, 0.02
        %v834 = vmul.f32 %v818, 0.02
        %v835 = vmul.f32 %v819, 0.02
        %v836 = vmul.f32 %v820, 0.02
        %v837 = vmul.f32 %v821, 0.02
        %v838 = vmul.f32 %v822, 0.02
        %v839 = vmul.f32 %v823, 0.02
        %v840 = vmul.f32 %v824, 0.02
        %v841 = vmul.f32 %v825, 0.02
        %v842 = vmul.f32 %v826, 0.02
        %v843 = vmul.f32 %v827, 0.02
        %v844 = vmul.f32 %v828, 0.02
        %v845 = vmul.f32 %v829, 0.02
        %v846 = vmul.f32 %v830, 0.02
        %v847 = vmul.f32 %v831, 0.02
        %v848 = vmul.f32 %v832, 0.02
        %v849 = vmax.f32 %v817, %v833
        %v850 = vmax.f32 %v818, %v834
        %v851 = vmax.f32 %v819, %v835
        %v852 = vmax.f32 %v820, %v836
        %v853 = vmax.f32 %v821, %v837
        %v854 = vmax.f32 %v822, %v838
        %v855 = vmax.f32 %v823, %v839
        %v856 = vmax.f32 %v824, %v840
        %v857 = vmax.f32 %v825, %v841
        %v858 = vmax.f32 %v826, %v842
        %v859 = vmax.f32 %v827, %v843
        %v860 = vmax.f32 %v828, %v844
        %v861 = vmax.f32 %v829, %v845
        %v862 = vmax.f32 %v830, %v846
        %v863 = vmax.f32 %v831, %v847
        %v864 = vmax.f32 %v832, %v848
        %s865 = scalar_lea.vmem %s1, 32
        %v866 = vld [vmem:[%s865] sm:$0xff]
        %v867 = vld [vmem:[%s865 + $0x8] sm:$0xff]
        %v868 = vld [vmem:[%s865 + $0x10] sm:$0xff]
        %v869 = vld [vmem:[%s865 + $0x18] sm:$0xff]
        %v871 = vsel %vm365, %v849, 0
        %v874 = vsel %vm365, %v850, 0
        %v877 = vsel %vm365, %v851, 0
        %v880 = vsel %vm365, %v852, 0
        %v883 = vsel %vm365, %v853, 0
        %v886 = vsel %vm365, %v854, 0
        %v889 = vsel %vm365, %v855, 0
        %v892 = vsel %vm365, %v856, 0
        %v895 = vsel %vm365, %v857, 0
        %v898 = vsel %vm365, %v858, 0
        %v901 = vsel %vm365, %v859, 0
        %v904 = vsel %vm365, %v860, 0
        %v907 = vsel %vm365, %v861, 0
        %v910 = vsel %vm365, %v862, 0
        %v913 = vsel %vm365, %v863, 0
        %v916 = vsel %vm365, %v864, 0
        %918 = vmatprep.subr.mxu0 0.0
        %919 = vmatpush1.msra.mxu0 0.0
        %920 = vmatprep.subr.mxu0 0.0
        %921 = vmatpush1.msra.mxu0 0.0
        %922 = vmatprep.subr.mxu0 0.0
        %923 = vmatpush1.msra.mxu0 0.0
        %924 = vmatprep.subr.mxu0 0.0
        %925 = vmatpush1.msra.mxu0 0.0
        %926 = vmatprep.subr.mxu0 0.0
        %927 = vmatpush1.msra.mxu0 0.0
        %928 = vmatprep.subr.mxu0 0.0
        %929 = vmatpush1.msra.mxu0 0.0
        %930 = vmatprep.subr.mxu0 0.0
        %931 = vmatpush1.msra.mxu0 0.0
        %932 = vmatprep.subr.mxu0 0.0
        %933 = vmatpush1.msra.mxu0 0.0
        %934 = vmatprep.subr.mxu0 0.0
        %935 = vmatpush1.msra.mxu0 0.0
        %936 = vmatprep.subr.mxu0 0.0
        %937 = vmatpush1.msra.mxu0 0.0
        %938 = vmatprep.subr.mxu0 0.0
        %939 = vmatpush1.msra.mxu0 0.0
        %940 = vmatprep.subr.mxu0 0.0
        %941 = vmatpush1.msra.mxu0 0.0
        %942 = vmatprep.subr.mxu0 0.0
        %943 = vmatpush1.msra.mxu0 %v869
        %944 = vmatprep.subr.mxu0 0.0
        %945 = vmatpush1.msra.mxu0 %v868
        %946 = vmatprep.subr.mxu0 0.0
        %947 = vmatpush1.msra.mxu0 %v867
        %948 = vmatprep.subr.mxu0 0.0
        %949 = vmatpush1.msra.mxu0 %v866
        %950 = vmatprep.subr.mxu0 0.0
        %951 = vmatpush2.msra.mxu0 0.0
        %952 = vmatprep.subr.mxu0 0.0
        %953 = vmatpush2.msra.mxu0 0.0
        %954 = vmatprep.subr.mxu0 0.0
        %955 = vmatpush2.msra.mxu0 0.0
        %956 = vmatprep.subr.mxu0 0.0
        %957 = vmatpush2.msra.mxu0 0.0
        %958 = vmatprep.subr.mxu0 0.0
        %959 = vmatpush2.msra.mxu0 0.0
        %960 = vmatprep.subr.mxu0 0.0
        %961 = vmatpush2.msra.mxu0 0.0
        %962 = vmatprep.subr.mxu0 0.0
        %963 = vmatpush2.msra.mxu0 0.0
        %964 = vmatprep.subr.mxu0 0.0
        %965 = vmatpush2.msra.mxu0 0.0
        %966 = vmatprep.subr.mxu0 0.0
        %967 = vmatpush2.msra.mxu0 0.0
        %968 = vmatprep.subr.mxu0 0.0
        %969 = vmatpush2.msra.mxu0 0.0
        %970 = vmatprep.subr.mxu0 0.0
        %971 = vmatpush2.msra.mxu0 0.0
        %972 = vmatprep.subr.mxu0 0.0
        %973 = vmatpush2.msra.mxu0 0.0
        %974 = vmatprep.subr.mxu0 0.0
        %975 = vmatpush2.msra.mxu0 0.0
        %976 = vmatprep.subr.mxu0 0.0
        %977 = vmatpush2.msra.mxu0 0.0
        %978 = vmatprep.subr.mxu0 0.0
        %979 = vmatpush2.msra.mxu0 0.0
        %980 = vmatprep.subr.mxu0 0.0
        %981 = vmatpush2.msra.mxu0 0.0
        %982 = vmatprep.mubr.f32.mxu0 0.0
        %983 = vmatmul.mubr.f32.gmra.mxu0 %v871
        %v984 = vpop.f32.mrf.mxu0
        %v985 = vadd.f32 0.0, %v984
        %v986 = vpop.f32.mrf.mxu0
        %987 = vmatprep.mubr.f32.mxu0 0.0
        %988 = vmatmul.mubr.f32.gmra.mxu0 %v874
        %v989 = vpop.f32.mrf.mxu0
        %v990 = vadd.f32 0.0, %v989
        %v991 = vpop.f32.mrf.mxu0
        %992 = vmatprep.mubr.f32.mxu0 0.0
        %993 = vmatmul.mubr.f32.gmra.mxu0 %v877
        %v994 = vpop.f32.mrf.mxu0
        %v995 = vadd.f32 0.0, %v994
        %v996 = vpop.f32.mrf.mxu0
        %997 = vmatprep.mubr.f32.mxu0 0.0
        %998 = vmatmul.mubr.f32.gmra.mxu0 %v880
        %v999 = vpop.f32.mrf.mxu0
        %v1000 = vadd.f32 0.0, %v999
        %v1001 = vpop.f32.mrf.mxu0
        %1002 = vmatprep.mubr.f32.mxu0 0.0
        %1003 = vmatmul.mubr.f32.gmra.mxu0 %v883
        %v1004 = vpop.f32.mrf.mxu0
        %v1005 = vadd.f32 0.0, %v1004
        %v1006 = vpop.f32.mrf.mxu0
        %1007 = vmatprep.mubr.f32.mxu0 0.0
        %1008 = vmatmul.mubr.f32.gmra.mxu0 %v886
        %v1009 = vpop.f32.mrf.mxu0
        %v1010 = vadd.f32 0.0, %v1009
        %v1011 = vpop.f32.mrf.mxu0
        %1012 = vmatprep.mubr.f32.mxu0 0.0
        %1013 = vmatmul.mubr.f32.gmra.mxu0 %v889
        %v1014 = vpop.f32.mrf.mxu0
        %v1015 = vadd.f32 0.0, %v1014
        %v1016 = vpop.f32.mrf.mxu0
        %1017 = vmatprep.mubr.f32.mxu0 0.0
        %1018 = vmatmul.mubr.f32.gmra.mxu0 %v892
        %v1019 = vpop.f32.mrf.mxu0
        %v1020 = vadd.f32 0.0, %v1019
        %v1021 = vpop.f32.mrf.mxu0
        %1022 = vmatprep.mubr.f32.mxu0 0.0
        %1023 = vmatmul.mubr.f32.gmra.mxu0 %v895
        %v1024 = vpop.f32.mrf.mxu0
        %v1025 = vadd.f32 0.0, %v1024
        %v1026 = vpop.f32.mrf.mxu0
        %1027 = vmatprep.mubr.f32.mxu0 0.0
        %1028 = vmatmul.mubr.f32.gmra.mxu0 %v898
        %v1029 = vpop.f32.mrf.mxu0
        %v1030 = vadd.f32 0.0, %v1029
        %v1031 = vpop.f32.mrf.mxu0
        %1032 = vmatprep.mubr.f32.mxu0 0.0
        %1033 = vmatmul.mubr.f32.gmra.mxu0 %v901
        %v1034 = vpop.f32.mrf.mxu0
        %v1035 = vadd.f32 0.0, %v1034
        %v1036 = vpop.f32.mrf.mxu0
        %1037 = vmatprep.mubr.f32.mxu0 0.0
        %1038 = vmatmul.mubr.f32.gmra.mxu0 %v904
        %v1039 = vpop.f32.mrf.mxu0
        %v1040 = vadd.f32 0.0, %v1039
        %v1041 = vpop.f32.mrf.mxu0
        %1042 = vmatprep.mubr.f32.mxu0 0.0
        %1043 = vmatmul.mubr.f32.gmra.mxu0 %v907
        %v1044 = vpop.f32.mrf.mxu0
        %v1045 = vadd.f32 0.0, %v1044
        %v1046 = vpop.f32.mrf.mxu0
        %1047 = vmatprep.mubr.f32.mxu0 0.0
        %1048 = vmatmul.mubr.f32.gmra.mxu0 %v910
        %v1049 = vpop.f32.mrf.mxu0
        %v1050 = vadd.f32 0.0, %v1049
        %v1051 = vpop.f32.mrf.mxu0
        %1052 = vmatprep.mubr.f32.mxu0 0.0
        %1053 = vmatmul.mubr.f32.gmra.mxu0 %v913
        %v1054 = vpop.f32.mrf.mxu0
        %v1055 = vadd.f32 0.0, %v1054
        %v1056 = vpop.f32.mrf.mxu0
        %1057 = vmatprep.mubr.f32.mxu0 0.0
        %1058 = vmatmul.mubr.f32.gmra.mxu0 %v916
        %v1059 = vpop.f32.mrf.mxu0
        %v1060 = vadd.f32 0.0, %v1059
        %v1061 = vpop.f32.mrf.mxu0
        %1062 = vdwg.mxu0
        %v1063 = vrot.slane %v985, 7
        %v1064 = vrot.slane %v990, 7
        %v1065 = vrot.slane %v995, 7
        %v1066 = vrot.slane %v1000, 7
        %v1067 = vrot.slane %v1005, 7
        %v1068 = vrot.slane %v1010, 7
        %v1069 = vrot.slane %v1015, 7
        %v1070 = vrot.slane %v1020, 7
        %v1071 = vrot.slane %v1025, 7
        %v1072 = vrot.slane %v1030, 7
        %v1073 = vrot.slane %v1035, 7
        %v1074 = vrot.slane %v1040, 7
        %v1075 = vrot.slane %v1045, 7
        %v1076 = vrot.slane %v1050, 7
        %v1077 = vrot.slane %v1055, 7
        %v1078 = vrot.slane %v1060, 7
        %v1079 = vsel %vm575, %v1077, %v1078
        %v1080 = vsel %vm575, %v1076, %v1077
        %v1081 = vsel %vm575, %v1075, %v1076
        %v1082 = vsel %vm575, %v1074, %v1075
        %v1083 = vsel %vm575, %v1073, %v1074
        %v1084 = vsel %vm575, %v1072, %v1073
        %v1085 = vsel %vm575, %v1071, %v1072
        %v1086 = vsel %vm575, %v1070, %v1071
        %v1087 = vsel %vm575, %v1069, %v1070
        %v1088 = vsel %vm575, %v1068, %v1069
        %v1089 = vsel %vm575, %v1067, %v1068
        %v1090 = vsel %vm575, %v1066, %v1067
        %v1091 = vsel %vm575, %v1065, %v1066
        %v1092 = vsel %vm575, %v1064, %v1065
        %v1093 = vsel %vm575, %v1063, %v1064
        %v1094 = vsel %vm575, %v1078, %v1063
        %v1095 = vsel %vm329, %v1094, 0.0
        %v1096 = vsel %vm330, %v1093, 0.0
        %v1097 = vsel %vm331, %v1092, 0.0
        %v1098 = vsel %vm332, %v1091, 0.0
        %v1099 = vsel %vm333, %v1090, 0.0
        %v1100 = vsel %vm334, %v1089, 0.0
        %v1101 = vsel %vm335, %v1088, 0.0
        %v1102 = vsel %vm336, %v1087, 0.0
        %v1103 = vsel %vm337, %v1086, 0.0
        %v1104 = vsel %vm338, %v1085, 0.0
        %v1105 = vsel %vm339, %v1084, 0.0
        %v1106 = vsel %vm340, %v1083, 0.0
        %v1107 = vsel %vm341, %v1082, 0.0
        %v1108 = vsel %vm342, %v1081, 0.0
        %v1109 = vsel %vm343, %v1080, 0.0
        %v1110 = vsel %vm344, %v1079, 0.0
        %1127 = vrot.lane.b32.xlu0 %v985, 64
        %v1128 = vpop.permute.xlu0 %1127
        %1129 = vrot.lane.b32.xlu0 %v990, 64
        %v1130 = vpop.permute.xlu0 %1129
        %1131 = vrot.lane.b32.xlu0 %v995, 64
        %v1132 = vpop.permute.xlu0 %1131
        %1133 = vrot.lane.b32.xlu0 %v1000, 64
        %v1134 = vpop.permute.xlu0 %1133
        %1135 = vrot.lane.b32.xlu0 %v1005, 64
        %v1136 = vpop.permute.xlu0 %1135
        %1137 = vrot.lane.b32.xlu0 %v1010, 64
        %v1138 = vpop.permute.xlu0 %1137
        %1139 = vrot.lane.b32.xlu0 %v1015, 64
        %v1140 = vpop.permute.xlu0 %1139
        %1141 = vrot.lane.b32.xlu0 %v1020, 64
        %v1142 = vpop.permute.xlu0 %1141
        %1143 = vrot.lane.b32.xlu0 %v1025, 64
        %v1144 = vpop.permute.xlu0 %1143
        %1145 = vrot.lane.b32.xlu0 %v1030, 64
        %v1146 = vpop.permute.xlu0 %1145
        %1147 = vrot.lane.b32.xlu0 %v1035, 64
        %v1148 = vpop.permute.xlu0 %1147
        %1149 = vrot.lane.b32.xlu0 %v1040, 64
        %v1150 = vpop.permute.xlu0 %1149
        %1151 = vrot.lane.b32.xlu0 %v1045, 64
        %v1152 = vpop.permute.xlu0 %1151
        %1153 = vrot.lane.b32.xlu0 %v1050, 64
        %v1154 = vpop.permute.xlu0 %1153
        %1155 = vrot.lane.b32.xlu0 %v1055, 64
        %v1156 = vpop.permute.xlu0 %1155
        %1157 = vrot.lane.b32.xlu0 %v1060, 64
        %v1158 = vpop.permute.xlu0 %1157
        %v1175 = vrot.slane %v1128, 1
        %v1176 = vrot.slane %v1130, 1
        %v1177 = vrot.slane %v1132, 1
        %v1178 = vrot.slane %v1134, 1
        %v1179 = vrot.slane %v1136, 1
        %v1180 = vrot.slane %v1138, 1
        %v1181 = vrot.slane %v1140, 1
        %v1182 = vrot.slane %v1142, 1
        %v1183 = vrot.slane %v1144, 1
        %v1184 = vrot.slane %v1146, 1
        %v1185 = vrot.slane %v1148, 1
        %v1186 = vrot.slane %v1150, 1
        %v1187 = vrot.slane %v1152, 1
        %v1188 = vrot.slane %v1154, 1
        %v1189 = vrot.slane %v1156, 1
        %v1190 = vrot.slane %v1158, 1
        %v1191 = vsel %vm688, %v1189, %v1190
        %v1192 = vsel %vm688, %v1188, %v1189
        %v1193 = vsel %vm688, %v1187, %v1188
        %v1194 = vsel %vm688, %v1186, %v1187
        %v1195 = vsel %vm688, %v1185, %v1186
        %v1196 = vsel %vm688, %v1184, %v1185
        %v1197 = vsel %vm688, %v1183, %v1184
        %v1198 = vsel %vm688, %v1182, %v1183
        %v1199 = vsel %vm688, %v1181, %v1182
        %v1200 = vsel %vm688, %v1180, %v1181
        %v1201 = vsel %vm688, %v1179, %v1180
        %v1202 = vsel %vm688, %v1178, %v1179
        %v1203 = vsel %vm688, %v1177, %v1178
        %v1204 = vsel %vm688, %v1176, %v1177
        %v1205 = vsel %vm688, %v1175, %v1176
        %v1206 = vsel %vm688, %v1190, %v1175
        %v1207 = vsel %vm345, %v1205, 0.0
        %v1208 = vsel %vm346, %v1204, 0.0
        %v1209 = vsel %vm347, %v1203, 0.0
        %v1210 = vsel %vm348, %v1202, 0.0
        %v1211 = vsel %vm349, %v1201, 0.0
        %v1212 = vsel %vm350, %v1200, 0.0
        %v1213 = vsel %vm351, %v1199, 0.0
        %v1214 = vsel %vm352, %v1198, 0.0
        %v1215 = vsel %vm353, %v1197, 0.0
        %v1216 = vsel %vm354, %v1196, 0.0
        %v1217 = vsel %vm355, %v1195, 0.0
        %v1218 = vsel %vm356, %v1194, 0.0
        %v1219 = vsel %vm357, %v1193, 0.0
        %v1220 = vsel %vm358, %v1192, 0.0
        %v1221 = vsel %vm359, %v1191, 0.0
        %v1222 = vsel %vm360, %v1206, 0.0
        %1223 = vrot.lane.b32.xlu0 %v985, 96
        %v1224 = vpop.permute.xlu0 %1223
        %1225 = vrot.lane.b32.xlu0 %v990, 96
        %v1226 = vpop.permute.xlu0 %1225
        %1227 = vrot.lane.b32.xlu0 %v995, 96
        %v1228 = vpop.permute.xlu0 %1227
        %1229 = vrot.lane.b32.xlu0 %v1000, 96
        %v1230 = vpop.permute.xlu0 %1229
        %1231 = vrot.lane.b32.xlu0 %v1005, 96
        %v1232 = vpop.permute.xlu0 %1231
        %1233 = vrot.lane.b32.xlu0 %v1010, 96
        %v1234 = vpop.permute.xlu0 %1233
        %1235 = vrot.lane.b32.xlu0 %v1015, 96
        %v1236 = vpop.permute.xlu0 %1235
        %1237 = vrot.lane.b32.xlu0 %v1020, 96
        %v1238 = vpop.permute.xlu0 %1237
        %1239 = vrot.lane.b32.xlu0 %v1025, 96
        %v1240 = vpop.permute.xlu0 %1239
        %1241 = vrot.lane.b32.xlu0 %v1030, 96
        %v1242 = vpop.permute.xlu0 %1241
        %1243 = vrot.lane.b32.xlu0 %v1035, 96
        %v1244 = vpop.permute.xlu0 %1243
        %1245 = vrot.lane.b32.xlu0 %v1040, 96
        %v1246 = vpop.permute.xlu0 %1245
        %1247 = vrot.lane.b32.xlu0 %v1045, 96
        %v1248 = vpop.permute.xlu0 %1247
        %1249 = vrot.lane.b32.xlu0 %v1050, 96
        %v1250 = vpop.permute.xlu0 %1249
        %1251 = vrot.lane.b32.xlu0 %v1055, 96
        %v1252 = vpop.permute.xlu0 %1251
        %1253 = vrot.lane.b32.xlu0 %v1060, 96
        %v1254 = vpop.permute.xlu0 %1253
        %v1271 = vadd.f32 %v1095, %v1224
        %v1272 = vadd.f32 %v1096, %v1226
        %v1273 = vadd.f32 %v1097, %v1228
        %v1274 = vadd.f32 %v1098, %v1230
        %v1275 = vadd.f32 %v1099, %v1232
        %v1276 = vadd.f32 %v1100, %v1234
        %v1277 = vadd.f32 %v1101, %v1236
        %v1278 = vadd.f32 %v1102, %v1238
        %v1279 = vadd.f32 %v1103, %v1240
        %v1280 = vadd.f32 %v1104, %v1242
        %v1281 = vadd.f32 %v1105, %v1244
        %v1282 = vadd.f32 %v1106, %v1246
        %v1283 = vadd.f32 %v1107, %v1248
        %v1284 = vadd.f32 %v1108, %v1250
        %v1285 = vadd.f32 %v1109, %v1252
        %v1286 = vadd.f32 %v1110, %v1254
        %v1287 = vadd.f32 %v1271, %v1207
        %v1288 = vadd.f32 %v1272, %v1208
        %v1289 = vadd.f32 %v1273, %v1209
        %v1290 = vadd.f32 %v1274, %v1210
        %v1291 = vadd.f32 %v1275, %v1211
        %v1292 = vadd.f32 %v1276, %v1212
        %v1293 = vadd.f32 %v1277, %v1213
        %v1294 = vadd.f32 %v1278, %v1214
        %v1295 = vadd.f32 %v1279, %v1215
        %v1296 = vadd.f32 %v1280, %v1216
        %v1297 = vadd.f32 %v1281, %v1217
        %v1298 = vadd.f32 %v1282, %v1218
        %v1299 = vadd.f32 %v1283, %v1219
        %v1300 = vadd.f32 %v1284, %v1220
        %v1301 = vadd.f32 %v1285, %v1221
        %v1302 = vadd.f32 %v1286, %v1222
        %s1303 = scalar_lea.vmem %s2, 128
        %v1304 = vld [vmem:[%s1303] sm:$0xff]
        %v1305 = vld [vmem:[%s1303 + $0x8] sm:$0xff]
        %v1306 = vld [vmem:[%s1303 + $0x10] sm:$0xff]
        %v1307 = vld [vmem:[%s1303 + $0x18] sm:$0xff]
        %v1308 = vld [vmem:[%s1303 + $0x20] sm:$0xff]
        %v1309 = vld [vmem:[%s1303 + $0x28] sm:$0xff]
        %v1310 = vld [vmem:[%s1303 + $0x30] sm:$0xff]
        %v1311 = vld [vmem:[%s1303 + $0x38] sm:$0xff]
        %v1312 = vld [vmem:[%s1303 + $0x40] sm:$0xff]
        %v1313 = vld [vmem:[%s1303 + $0x48] sm:$0xff]
        %v1314 = vld [vmem:[%s1303 + $0x50] sm:$0xff]
        %v1315 = vld [vmem:[%s1303 + $0x58] sm:$0xff]
        %v1316 = vld [vmem:[%s1303 + $0x60] sm:$0xff]
        %v1317 = vld [vmem:[%s1303 + $0x68] sm:$0xff]
        %v1318 = vld [vmem:[%s1303 + $0x70] sm:$0xff]
        %v1319 = vld [vmem:[%s1303 + $0x78] sm:$0xff]
        %v1320 = vadd.f32 %v1287, %v1304
        %v1321 = vadd.f32 %v1288, %v1305
        %v1322 = vadd.f32 %v1289, %v1306
        %v1323 = vadd.f32 %v1290, %v1307
        %v1324 = vadd.f32 %v1291, %v1308
        %v1325 = vadd.f32 %v1292, %v1309
        %v1326 = vadd.f32 %v1293, %v1310
        %v1327 = vadd.f32 %v1294, %v1311
        %v1328 = vadd.f32 %v1295, %v1312
        %v1329 = vadd.f32 %v1296, %v1313
        %v1330 = vadd.f32 %v1297, %v1314
        %v1331 = vadd.f32 %v1298, %v1315
        %v1332 = vadd.f32 %v1299, %v1316
        %v1333 = vadd.f32 %v1300, %v1317
        %v1334 = vadd.f32 %v1301, %v1318
        %v1335 = vadd.f32 %v1302, %v1319
        %v1336 = vmul.f32 %v1320, 0.02
        %v1337 = vmul.f32 %v1321, 0.02
        %v1338 = vmul.f32 %v1322, 0.02
        %v1339 = vmul.f32 %v1323, 0.02
        %v1340 = vmul.f32 %v1324, 0.02
        %v1341 = vmul.f32 %v1325, 0.02
        %v1342 = vmul.f32 %v1326, 0.02
        %v1343 = vmul.f32 %v1327, 0.02
        %v1344 = vmul.f32 %v1328, 0.02
        %v1345 = vmul.f32 %v1329, 0.02
        %v1346 = vmul.f32 %v1330, 0.02
        %v1347 = vmul.f32 %v1331, 0.02
        %v1348 = vmul.f32 %v1332, 0.02
        %v1349 = vmul.f32 %v1333, 0.02
        %v1350 = vmul.f32 %v1334, 0.02
        %v1351 = vmul.f32 %v1335, 0.02
        %v1352 = vmax.f32 %v1320, %v1336
        %v1353 = vmax.f32 %v1321, %v1337
        %v1354 = vmax.f32 %v1322, %v1338
        %v1355 = vmax.f32 %v1323, %v1339
        %v1356 = vmax.f32 %v1324, %v1340
        %v1357 = vmax.f32 %v1325, %v1341
        %v1358 = vmax.f32 %v1326, %v1342
        %v1359 = vmax.f32 %v1327, %v1343
        %v1360 = vmax.f32 %v1328, %v1344
        %v1361 = vmax.f32 %v1329, %v1345
        %v1362 = vmax.f32 %v1330, %v1346
        %v1363 = vmax.f32 %v1331, %v1347
        %v1364 = vmax.f32 %v1332, %v1348
        %v1365 = vmax.f32 %v1333, %v1349
        %v1366 = vmax.f32 %v1334, %v1350
        %v1367 = vmax.f32 %v1335, %v1351
        %s1368 = scalar_lea.vmem %s1, 64
        %v1369 = vld [vmem:[%s1368] sm:$0xff]
        %v1370 = vld [vmem:[%s1368 + $0x8] sm:$0xff]
        %v1371 = vld [vmem:[%s1368 + $0x10] sm:$0xff]
        %v1372 = vld [vmem:[%s1368 + $0x18] sm:$0xff]
        %v1374 = vsel %vm365, %v1352, 0
        %v1377 = vsel %vm365, %v1353, 0
        %v1380 = vsel %vm365, %v1354, 0
        %v1383 = vsel %vm365, %v1355, 0
        %v1386 = vsel %vm365, %v1356, 0
        %v1389 = vsel %vm365, %v1357, 0
        %v1392 = vsel %vm365, %v1358, 0
        %v1395 = vsel %vm365, %v1359, 0
        %v1398 = vsel %vm365, %v1360, 0
        %v1401 = vsel %vm365, %v1361, 0
        %v1404 = vsel %vm365, %v1362, 0
        %v1407 = vsel %vm365, %v1363, 0
        %v1410 = vsel %vm365, %v1364, 0
        %v1413 = vsel %vm365, %v1365, 0
        %v1416 = vsel %vm365, %v1366, 0
        %v1419 = vsel %vm365, %v1367, 0
        %1421 = vmatprep.subr.mxu0 0.0
        %1422 = vmatpush1.msra.mxu0 0.0
        %1423 = vmatprep.subr.mxu0 0.0
        %1424 = vmatpush1.msra.mxu0 0.0
        %1425 = vmatprep.subr.mxu0 0.0
        %1426 = vmatpush1.msra.mxu0 0.0
        %1427 = vmatprep.subr.mxu0 0.0
        %1428 = vmatpush1.msra.mxu0 0.0
        %1429 = vmatprep.subr.mxu0 0.0
        %1430 = vmatpush1.msra.mxu0 0.0
        %1431 = vmatprep.subr.mxu0 0.0
        %1432 = vmatpush1.msra.mxu0 0.0
        %1433 = vmatprep.subr.mxu0 0.0
        %1434 = vmatpush1.msra.mxu0 0.0
        %1435 = vmatprep.subr.mxu0 0.0
        %1436 = vmatpush1.msra.mxu0 0.0
        %1437 = vmatprep.subr.mxu0 0.0
        %1438 = vmatpush1.msra.mxu0 0.0
        %1439 = vmatprep.subr.mxu0 0.0
        %1440 = vmatpush1.msra.mxu0 0.0
        %1441 = vmatprep.subr.mxu0 0.0
        %1442 = vmatpush1.msra.mxu0 0.0
        %1443 = vmatprep.subr.mxu0 0.0
        %1444 = vmatpush1.msra.mxu0 0.0
        %1445 = vmatprep.subr.mxu0 0.0
        %1446 = vmatpush1.msra.mxu0 %v1372
        %1447 = vmatprep.subr.mxu0 0.0
        %1448 = vmatpush1.msra.mxu0 %v1371
        %1449 = vmatprep.subr.mxu0 0.0
        %1450 = vmatpush1.msra.mxu0 %v1370
        %1451 = vmatprep.subr.mxu0 0.0
        %1452 = vmatpush1.msra.mxu0 %v1369
        %1453 = vmatprep.subr.mxu0 0.0
        %1454 = vmatpush2.msra.mxu0 0.0
        %1455 = vmatprep.subr.mxu0 0.0
        %1456 = vmatpush2.msra.mxu0 0.0
        %1457 = vmatprep.subr.mxu0 0.0
        %1458 = vmatpush2.msra.mxu0 0.0
        %1459 = vmatprep.subr.mxu0 0.0
        %1460 = vmatpush2.msra.mxu0 0.0
        %1461 = vmatprep.subr.mxu0 0.0
        %1462 = vmatpush2.msra.mxu0 0.0
        %1463 = vmatprep.subr.mxu0 0.0
        %1464 = vmatpush2.msra.mxu0 0.0
        %1465 = vmatprep.subr.mxu0 0.0
        %1466 = vmatpush2.msra.mxu0 0.0
        %1467 = vmatprep.subr.mxu0 0.0
        %1468 = vmatpush2.msra.mxu0 0.0
        %1469 = vmatprep.subr.mxu0 0.0
        %1470 = vmatpush2.msra.mxu0 0.0
        %1471 = vmatprep.subr.mxu0 0.0
        %1472 = vmatpush2.msra.mxu0 0.0
        %1473 = vmatprep.subr.mxu0 0.0
        %1474 = vmatpush2.msra.mxu0 0.0
        %1475 = vmatprep.subr.mxu0 0.0
        %1476 = vmatpush2.msra.mxu0 0.0
        %1477 = vmatprep.subr.mxu0 0.0
        %1478 = vmatpush2.msra.mxu0 0.0
        %1479 = vmatprep.subr.mxu0 0.0
        %1480 = vmatpush2.msra.mxu0 0.0
        %1481 = vmatprep.subr.mxu0 0.0
        %1482 = vmatpush2.msra.mxu0 0.0
        %1483 = vmatprep.subr.mxu0 0.0
        %1484 = vmatpush2.msra.mxu0 0.0
        %1485 = vmatprep.mubr.f32.mxu0 0.0
        %1486 = vmatmul.mubr.f32.gmra.mxu0 %v1374
        %v1487 = vpop.f32.mrf.mxu0
        %v1488 = vadd.f32 0.0, %v1487
        %v1489 = vpop.f32.mrf.mxu0
        %1490 = vmatprep.mubr.f32.mxu0 0.0
        %1491 = vmatmul.mubr.f32.gmra.mxu0 %v1377
        %v1492 = vpop.f32.mrf.mxu0
        %v1493 = vadd.f32 0.0, %v1492
        %v1494 = vpop.f32.mrf.mxu0
        %1495 = vmatprep.mubr.f32.mxu0 0.0
        %1496 = vmatmul.mubr.f32.gmra.mxu0 %v1380
        %v1497 = vpop.f32.mrf.mxu0
        %v1498 = vadd.f32 0.0, %v1497
        %v1499 = vpop.f32.mrf.mxu0
        %1500 = vmatprep.mubr.f32.mxu0 0.0
        %1501 = vmatmul.mubr.f32.gmra.mxu0 %v1383
        %v1502 = vpop.f32.mrf.mxu0
        %v1503 = vadd.f32 0.0, %v1502
        %v1504 = vpop.f32.mrf.mxu0
        %1505 = vmatprep.mubr.f32.mxu0 0.0
        %1506 = vmatmul.mubr.f32.gmra.mxu0 %v1386
        %v1507 = vpop.f32.mrf.mxu0
        %v1508 = vadd.f32 0.0, %v1507
        %v1509 = vpop.f32.mrf.mxu0
        %1510 = vmatprep.mubr.f32.mxu0 0.0
        %1511 = vmatmul.mubr.f32.gmra.mxu0 %v1389
        %v1512 = vpop.f32.mrf.mxu0
        %v1513 = vadd.f32 0.0, %v1512
        %v1514 = vpop.f32.mrf.mxu0
        %1515 = vmatprep.mubr.f32.mxu0 0.0
        %1516 = vmatmul.mubr.f32.gmra.mxu0 %v1392
        %v1517 = vpop.f32.mrf.mxu0
        %v1518 = vadd.f32 0.0, %v1517
        %v1519 = vpop.f32.mrf.mxu0
        %1520 = vmatprep.mubr.f32.mxu0 0.0
        %1521 = vmatmul.mubr.f32.gmra.mxu0 %v1395
        %v1522 = vpop.f32.mrf.mxu0
        %v1523 = vadd.f32 0.0, %v1522
        %v1524 = vpop.f32.mrf.mxu0
        %1525 = vmatprep.mubr.f32.mxu0 0.0
        %1526 = vmatmul.mubr.f32.gmra.mxu0 %v1398
        %v1527 = vpop.f32.mrf.mxu0
        %v1528 = vadd.f32 0.0, %v1527
        %v1529 = vpop.f32.mrf.mxu0
        %1530 = vmatprep.mubr.f32.mxu0 0.0
        %1531 = vmatmul.mubr.f32.gmra.mxu0 %v1401
        %v1532 = vpop.f32.mrf.mxu0
        %v1533 = vadd.f32 0.0, %v1532
        %v1534 = vpop.f32.mrf.mxu0
        %1535 = vmatprep.mubr.f32.mxu0 0.0
        %1536 = vmatmul.mubr.f32.gmra.mxu0 %v1404
        %v1537 = vpop.f32.mrf.mxu0
        %v1538 = vadd.f32 0.0, %v1537
        %v1539 = vpop.f32.mrf.mxu0
        %1540 = vmatprep.mubr.f32.mxu0 0.0
        %1541 = vmatmul.mubr.f32.gmra.mxu0 %v1407
        %v1542 = vpop.f32.mrf.mxu0
        %v1543 = vadd.f32 0.0, %v1542
        %v1544 = vpop.f32.mrf.mxu0
        %1545 = vmatprep.mubr.f32.mxu0 0.0
        %1546 = vmatmul.mubr.f32.gmra.mxu0 %v1410
        %v1547 = vpop.f32.mrf.mxu0
        %v1548 = vadd.f32 0.0, %v1547
        %v1549 = vpop.f32.mrf.mxu0
        %1550 = vmatprep.mubr.f32.mxu0 0.0
        %1551 = vmatmul.mubr.f32.gmra.mxu0 %v1413
        %v1552 = vpop.f32.mrf.mxu0
        %v1553 = vadd.f32 0.0, %v1552
        %v1554 = vpop.f32.mrf.mxu0
        %1555 = vmatprep.mubr.f32.mxu0 0.0
        %1556 = vmatmul.mubr.f32.gmra.mxu0 %v1416
        %v1557 = vpop.f32.mrf.mxu0
        %v1558 = vadd.f32 0.0, %v1557
        %v1559 = vpop.f32.mrf.mxu0
        %1560 = vmatprep.mubr.f32.mxu0 0.0
        %1561 = vmatmul.mubr.f32.gmra.mxu0 %v1419
        %v1562 = vpop.f32.mrf.mxu0
        %v1563 = vadd.f32 0.0, %v1562
        %v1564 = vpop.f32.mrf.mxu0
        %1565 = vdwg.mxu0
        %v1566 = vrot.slane %v1488, 7
        %v1567 = vrot.slane %v1493, 7
        %v1568 = vrot.slane %v1498, 7
        %v1569 = vrot.slane %v1503, 7
        %v1570 = vrot.slane %v1508, 7
        %v1571 = vrot.slane %v1513, 7
        %v1572 = vrot.slane %v1518, 7
        %v1573 = vrot.slane %v1523, 7
        %v1574 = vrot.slane %v1528, 7
        %v1575 = vrot.slane %v1533, 7
        %v1576 = vrot.slane %v1538, 7
        %v1577 = vrot.slane %v1543, 7
        %v1578 = vrot.slane %v1548, 7
        %v1579 = vrot.slane %v1553, 7
        %v1580 = vrot.slane %v1558, 7
        %v1581 = vrot.slane %v1563, 7
        %v1582 = vsel %vm575, %v1580, %v1581
        %v1583 = vsel %vm575, %v1579, %v1580
        %v1584 = vsel %vm575, %v1578, %v1579
        %v1585 = vsel %vm575, %v1577, %v1578
        %v1586 = vsel %vm575, %v1576, %v1577
        %v1587 = vsel %vm575, %v1575, %v1576
        %v1588 = vsel %vm575, %v1574, %v1575
        %v1589 = vsel %vm575, %v1573, %v1574
        %v1590 = vsel %vm575, %v1572, %v1573
        %v1591 = vsel %vm575, %v1571, %v1572
        %v1592 = vsel %vm575, %v1570, %v1571
        %v1593 = vsel %vm575, %v1569, %v1570
        %v1594 = vsel %vm575, %v1568, %v1569
        %v1595 = vsel %vm575, %v1567, %v1568
        %v1596 = vsel %vm575, %v1566, %v1567
        %v1597 = vsel %vm575, %v1581, %v1566
        %v1598 = vsel %vm329, %v1597, 0.0
        %v1599 = vsel %vm330, %v1596, 0.0
        %v1600 = vsel %vm331, %v1595, 0.0
        %v1601 = vsel %vm332, %v1594, 0.0
        %v1602 = vsel %vm333, %v1593, 0.0
        %v1603 = vsel %vm334, %v1592, 0.0
        %v1604 = vsel %vm335, %v1591, 0.0
        %v1605 = vsel %vm336, %v1590, 0.0
        %v1606 = vsel %vm337, %v1589, 0.0
        %v1607 = vsel %vm338, %v1588, 0.0
        %v1608 = vsel %vm339, %v1587, 0.0
        %v1609 = vsel %vm340, %v1586, 0.0
        %v1610 = vsel %vm341, %v1585, 0.0
        %v1611 = vsel %vm342, %v1584, 0.0
        %v1612 = vsel %vm343, %v1583, 0.0
        %v1613 = vsel %vm344, %v1582, 0.0
        %1630 = vrot.lane.b32.xlu0 %v1488, 64
        %v1631 = vpop.permute.xlu0 %1630
        %1632 = vrot.lane.b32.xlu0 %v1493, 64
        %v1633 = vpop.permute.xlu0 %1632
        %1634 = vrot.lane.b32.xlu0 %v1498, 64
        %v1635 = vpop.permute.xlu0 %1634
        %1636 = vrot.lane.b32.xlu0 %v1503, 64
        %v1637 = vpop.permute.xlu0 %1636
        %1638 = vrot.lane.b32.xlu0 %v1508, 64
        %v1639 = vpop.permute.xlu0 %1638
        %1640 = vrot.lane.b32.xlu0 %v1513, 64
        %v1641 = vpop.permute.xlu0 %1640
        %1642 = vrot.lane.b32.xlu0 %v1518, 64
        %v1643 = vpop.permute.xlu0 %1642
        %1644 = vrot.lane.b32.xlu0 %v1523, 64
        %v1645 = vpop.permute.xlu0 %1644
        %1646 = vrot.lane.b32.xlu0 %v1528, 64
        %v1647 = vpop.permute.xlu0 %1646
        %1648 = vrot.lane.b32.xlu0 %v1533, 64
        %v1649 = vpop.permute.xlu0 %1648
        %1650 = vrot.lane.b32.xlu0 %v1538, 64
        %v1651 = vpop.permute.xlu0 %1650
        %1652 = vrot.lane.b32.xlu0 %v1543, 64
        %v1653 = vpop.permute.xlu0 %1652
        %1654 = vrot.lane.b32.xlu0 %v1548, 64
        %v1655 = vpop.permute.xlu0 %1654
        %1656 = vrot.lane.b32.xlu0 %v1553, 64
        %v1657 = vpop.permute.xlu0 %1656
        %1658 = vrot.lane.b32.xlu0 %v1558, 64
        %v1659 = vpop.permute.xlu0 %1658
        %1660 = vrot.lane.b32.xlu0 %v1563, 64
        %v1661 = vpop.permute.xlu0 %1660
        %v1678 = vrot.slane %v1631, 1
        %v1679 = vrot.slane %v1633, 1
        %v1680 = vrot.slane %v1635, 1
        %v1681 = vrot.slane %v1637, 1
        %v1682 = vrot.slane %v1639, 1
        %v1683 = vrot.slane %v1641, 1
        %v1684 = vrot.slane %v1643, 1
        %v1685 = vrot.slane %v1645, 1
        %v1686 = vrot.slane %v1647, 1
        %v1687 = vrot.slane %v1649, 1
        %v1688 = vrot.slane %v1651, 1
        %v1689 = vrot.slane %v1653, 1
        %v1690 = vrot.slane %v1655, 1
        %v1691 = vrot.slane %v1657, 1
        %v1692 = vrot.slane %v1659, 1
        %v1693 = vrot.slane %v1661, 1
        %v1694 = vsel %vm688, %v1692, %v1693
        %v1695 = vsel %vm688, %v1691, %v1692
        %v1696 = vsel %vm688, %v1690, %v1691
        %v1697 = vsel %vm688, %v1689, %v1690
        %v1698 = vsel %vm688, %v1688, %v1689
        %v1699 = vsel %vm688, %v1687, %v1688
        %v1700 = vsel %vm688, %v1686, %v1687
        %v1701 = vsel %vm688, %v1685, %v1686
        %v1702 = vsel %vm688, %v1684, %v1685
        %v1703 = vsel %vm688, %v1683, %v1684
        %v1704 = vsel %vm688, %v1682, %v1683
        %v1705 = vsel %vm688, %v1681, %v1682
        %v1706 = vsel %vm688, %v1680, %v1681
        %v1707 = vsel %vm688, %v1679, %v1680
        %v1708 = vsel %vm688, %v1678, %v1679
        %v1709 = vsel %vm688, %v1693, %v1678
        %v1710 = vsel %vm345, %v1708, 0.0
        %v1711 = vsel %vm346, %v1707, 0.0
        %v1712 = vsel %vm347, %v1706, 0.0
        %v1713 = vsel %vm348, %v1705, 0.0
        %v1714 = vsel %vm349, %v1704, 0.0
        %v1715 = vsel %vm350, %v1703, 0.0
        %v1716 = vsel %vm351, %v1702, 0.0
        %v1717 = vsel %vm352, %v1701, 0.0
        %v1718 = vsel %vm353, %v1700, 0.0
        %v1719 = vsel %vm354, %v1699, 0.0
        %v1720 = vsel %vm355, %v1698, 0.0
        %v1721 = vsel %vm356, %v1697, 0.0
        %v1722 = vsel %vm357, %v1696, 0.0
        %v1723 = vsel %vm358, %v1695, 0.0
        %v1724 = vsel %vm359, %v1694, 0.0
        %v1725 = vsel %vm360, %v1709, 0.0
        %1726 = vrot.lane.b32.xlu0 %v1488, 96
        %v1727 = vpop.permute.xlu0 %1726
        %1728 = vrot.lane.b32.xlu0 %v1493, 96
        %v1729 = vpop.permute.xlu0 %1728
        %1730 = vrot.lane.b32.xlu0 %v1498, 96
        %v1731 = vpop.permute.xlu0 %1730
        %1732 = vrot.lane.b32.xlu0 %v1503, 96
        %v1733 = vpop.permute.xlu0 %1732
        %1734 = vrot.lane.b32.xlu0 %v1508, 96
        %v1735 = vpop.permute.xlu0 %1734
        %1736 = vrot.lane.b32.xlu0 %v1513, 96
        %v1737 = vpop.permute.xlu0 %1736
        %1738 = vrot.lane.b32.xlu0 %v1518, 96
        %v1739 = vpop.permute.xlu0 %1738
        %1740 = vrot.lane.b32.xlu0 %v1523, 96
        %v1741 = vpop.permute.xlu0 %1740
        %1742 = vrot.lane.b32.xlu0 %v1528, 96
        %v1743 = vpop.permute.xlu0 %1742
        %1744 = vrot.lane.b32.xlu0 %v1533, 96
        %v1745 = vpop.permute.xlu0 %1744
        %1746 = vrot.lane.b32.xlu0 %v1538, 96
        %v1747 = vpop.permute.xlu0 %1746
        %1748 = vrot.lane.b32.xlu0 %v1543, 96
        %v1749 = vpop.permute.xlu0 %1748
        %1750 = vrot.lane.b32.xlu0 %v1548, 96
        %v1751 = vpop.permute.xlu0 %1750
        %1752 = vrot.lane.b32.xlu0 %v1553, 96
        %v1753 = vpop.permute.xlu0 %1752
        %1754 = vrot.lane.b32.xlu0 %v1558, 96
        %v1755 = vpop.permute.xlu0 %1754
        %1756 = vrot.lane.b32.xlu0 %v1563, 96
        %v1757 = vpop.permute.xlu0 %1756
        %v1774 = vadd.f32 %v1598, %v1727
        %v1775 = vadd.f32 %v1599, %v1729
        %v1776 = vadd.f32 %v1600, %v1731
        %v1777 = vadd.f32 %v1601, %v1733
        %v1778 = vadd.f32 %v1602, %v1735
        %v1779 = vadd.f32 %v1603, %v1737
        %v1780 = vadd.f32 %v1604, %v1739
        %v1781 = vadd.f32 %v1605, %v1741
        %v1782 = vadd.f32 %v1606, %v1743
        %v1783 = vadd.f32 %v1607, %v1745
        %v1784 = vadd.f32 %v1608, %v1747
        %v1785 = vadd.f32 %v1609, %v1749
        %v1786 = vadd.f32 %v1610, %v1751
        %v1787 = vadd.f32 %v1611, %v1753
        %v1788 = vadd.f32 %v1612, %v1755
        %v1789 = vadd.f32 %v1613, %v1757
        %v1790 = vadd.f32 %v1774, %v1710
        %v1791 = vadd.f32 %v1775, %v1711
        %v1792 = vadd.f32 %v1776, %v1712
        %v1793 = vadd.f32 %v1777, %v1713
        %v1794 = vadd.f32 %v1778, %v1714
        %v1795 = vadd.f32 %v1779, %v1715
        %v1796 = vadd.f32 %v1780, %v1716
        %v1797 = vadd.f32 %v1781, %v1717
        %v1798 = vadd.f32 %v1782, %v1718
        %v1799 = vadd.f32 %v1783, %v1719
        %v1800 = vadd.f32 %v1784, %v1720
        %v1801 = vadd.f32 %v1785, %v1721
        %v1802 = vadd.f32 %v1786, %v1722
        %v1803 = vadd.f32 %v1787, %v1723
        %v1804 = vadd.f32 %v1788, %v1724
        %v1805 = vadd.f32 %v1789, %v1725
        %s1806 = scalar_lea.vmem %s2, 256
        %v1807 = vld [vmem:[%s1806] sm:$0xff]
        %v1808 = vld [vmem:[%s1806 + $0x8] sm:$0xff]
        %v1809 = vld [vmem:[%s1806 + $0x10] sm:$0xff]
        %v1810 = vld [vmem:[%s1806 + $0x18] sm:$0xff]
        %v1811 = vld [vmem:[%s1806 + $0x20] sm:$0xff]
        %v1812 = vld [vmem:[%s1806 + $0x28] sm:$0xff]
        %v1813 = vld [vmem:[%s1806 + $0x30] sm:$0xff]
        %v1814 = vld [vmem:[%s1806 + $0x38] sm:$0xff]
        %v1815 = vld [vmem:[%s1806 + $0x40] sm:$0xff]
        %v1816 = vld [vmem:[%s1806 + $0x48] sm:$0xff]
        %v1817 = vld [vmem:[%s1806 + $0x50] sm:$0xff]
        %v1818 = vld [vmem:[%s1806 + $0x58] sm:$0xff]
        %v1819 = vld [vmem:[%s1806 + $0x60] sm:$0xff]
        %v1820 = vld [vmem:[%s1806 + $0x68] sm:$0xff]
        %v1821 = vld [vmem:[%s1806 + $0x70] sm:$0xff]
        %v1822 = vld [vmem:[%s1806 + $0x78] sm:$0xff]
        %v1823 = vadd.f32 %v1790, %v1807
        %v1824 = vadd.f32 %v1791, %v1808
        %v1825 = vadd.f32 %v1792, %v1809
        %v1826 = vadd.f32 %v1793, %v1810
        %v1827 = vadd.f32 %v1794, %v1811
        %v1828 = vadd.f32 %v1795, %v1812
        %v1829 = vadd.f32 %v1796, %v1813
        %v1830 = vadd.f32 %v1797, %v1814
        %v1831 = vadd.f32 %v1798, %v1815
        %v1832 = vadd.f32 %v1799, %v1816
        %v1833 = vadd.f32 %v1800, %v1817
        %v1834 = vadd.f32 %v1801, %v1818
        %v1835 = vadd.f32 %v1802, %v1819
        %v1836 = vadd.f32 %v1803, %v1820
        %v1837 = vadd.f32 %v1804, %v1821
        %v1838 = vadd.f32 %v1805, %v1822
        %v1839 = vmul.f32 %v1823, 0.02
        %v1840 = vmul.f32 %v1824, 0.02
        %v1841 = vmul.f32 %v1825, 0.02
        %v1842 = vmul.f32 %v1826, 0.02
        %v1843 = vmul.f32 %v1827, 0.02
        %v1844 = vmul.f32 %v1828, 0.02
        %v1845 = vmul.f32 %v1829, 0.02
        %v1846 = vmul.f32 %v1830, 0.02
        %v1847 = vmul.f32 %v1831, 0.02
        %v1848 = vmul.f32 %v1832, 0.02
        %v1849 = vmul.f32 %v1833, 0.02
        %v1850 = vmul.f32 %v1834, 0.02
        %v1851 = vmul.f32 %v1835, 0.02
        %v1852 = vmul.f32 %v1836, 0.02
        %v1853 = vmul.f32 %v1837, 0.02
        %v1854 = vmul.f32 %v1838, 0.02
        %v1855 = vmax.f32 %v1823, %v1839
        %v1856 = vmax.f32 %v1824, %v1840
        %v1857 = vmax.f32 %v1825, %v1841
        %v1858 = vmax.f32 %v1826, %v1842
        %v1859 = vmax.f32 %v1827, %v1843
        %v1860 = vmax.f32 %v1828, %v1844
        %v1861 = vmax.f32 %v1829, %v1845
        %v1862 = vmax.f32 %v1830, %v1846
        %v1863 = vmax.f32 %v1831, %v1847
        %v1864 = vmax.f32 %v1832, %v1848
        %v1865 = vmax.f32 %v1833, %v1849
        %v1866 = vmax.f32 %v1834, %v1850
        %v1867 = vmax.f32 %v1835, %v1851
        %v1868 = vmax.f32 %v1836, %v1852
        %v1869 = vmax.f32 %v1837, %v1853
        %v1870 = vmax.f32 %v1838, %v1854
        %s1871 = scalar_lea.vmem %s1, 96
        %v1872 = vld [vmem:[%s1871] sm:$0xff]
        %v1873 = vld [vmem:[%s1871 + $0x8] sm:$0xff]
        %v1874 = vld [vmem:[%s1871 + $0x10] sm:$0xff]
        %v1875 = vld [vmem:[%s1871 + $0x18] sm:$0xff]
        %v1877 = vsel %vm365, %v1855, 0
        %v1880 = vsel %vm365, %v1856, 0
        %v1883 = vsel %vm365, %v1857, 0
        %v1886 = vsel %vm365, %v1858, 0
        %v1889 = vsel %vm365, %v1859, 0
        %v1892 = vsel %vm365, %v1860, 0
        %v1895 = vsel %vm365, %v1861, 0
        %v1898 = vsel %vm365, %v1862, 0
        %v1901 = vsel %vm365, %v1863, 0
        %v1904 = vsel %vm365, %v1864, 0
        %v1907 = vsel %vm365, %v1865, 0
        %v1910 = vsel %vm365, %v1866, 0
        %v1913 = vsel %vm365, %v1867, 0
        %v1916 = vsel %vm365, %v1868, 0
        %v1919 = vsel %vm365, %v1869, 0
        %v1922 = vsel %vm365, %v1870, 0
        %1924 = vmatprep.subr.mxu0 0.0
        %1925 = vmatpush1.msra.mxu0 0.0
        %1926 = vmatprep.subr.mxu0 0.0
        %1927 = vmatpush1.msra.mxu0 0.0
        %1928 = vmatprep.subr.mxu0 0.0
        %1929 = vmatpush1.msra.mxu0 0.0
        %1930 = vmatprep.subr.mxu0 0.0
        %1931 = vmatpush1.msra.mxu0 0.0
        %1932 = vmatprep.subr.mxu0 0.0
        %1933 = vmatpush1.msra.mxu0 0.0
        %1934 = vmatprep.subr.mxu0 0.0
        %1935 = vmatpush1.msra.mxu0 0.0
        %1936 = vmatprep.subr.mxu0 0.0
        %1937 = vmatpush1.msra.mxu0 0.0
        %1938 = vmatprep.subr.mxu0 0.0
        %1939 = vmatpush1.msra.mxu0 0.0
        %1940 = vmatprep.subr.mxu0 0.0
        %1941 = vmatpush1.msra.mxu0 0.0
        %1942 = vmatprep.subr.mxu0 0.0
        %1943 = vmatpush1.msra.mxu0 0.0
        %1944 = vmatprep.subr.mxu0 0.0
        %1945 = vmatpush1.msra.mxu0 0.0
        %1946 = vmatprep.subr.mxu0 0.0
        %1947 = vmatpush1.msra.mxu0 0.0
        %1948 = vmatprep.subr.mxu0 0.0
        %1949 = vmatpush1.msra.mxu0 %v1875
        %1950 = vmatprep.subr.mxu0 0.0
        %1951 = vmatpush1.msra.mxu0 %v1874
        %1952 = vmatprep.subr.mxu0 0.0
        %1953 = vmatpush1.msra.mxu0 %v1873
        %1954 = vmatprep.subr.mxu0 0.0
        %1955 = vmatpush1.msra.mxu0 %v1872
        %1956 = vmatprep.subr.mxu0 0.0
        %1957 = vmatpush2.msra.mxu0 0.0
        %1958 = vmatprep.subr.mxu0 0.0
        %1959 = vmatpush2.msra.mxu0 0.0
        %1960 = vmatprep.subr.mxu0 0.0
        %1961 = vmatpush2.msra.mxu0 0.0
        %1962 = vmatprep.subr.mxu0 0.0
        %1963 = vmatpush2.msra.mxu0 0.0
        %1964 = vmatprep.subr.mxu0 0.0
        %1965 = vmatpush2.msra.mxu0 0.0
        %1966 = vmatprep.subr.mxu0 0.0
        %1967 = vmatpush2.msra.mxu0 0.0
        %1968 = vmatprep.subr.mxu0 0.0
        %1969 = vmatpush2.msra.mxu0 0.0
        %1970 = vmatprep.subr.mxu0 0.0
        %1971 = vmatpush2.msra.mxu0 0.0
        %1972 = vmatprep.subr.mxu0 0.0
        %1973 = vmatpush2.msra.mxu0 0.0
        %1974 = vmatprep.subr.mxu0 0.0
        %1975 = vmatpush2.msra.mxu0 0.0
        %1976 = vmatprep.subr.mxu0 0.0
        %1977 = vmatpush2.msra.mxu0 0.0
        %1978 = vmatprep.subr.mxu0 0.0
        %1979 = vmatpush2.msra.mxu0 0.0
        %1980 = vmatprep.subr.mxu0 0.0
        %1981 = vmatpush2.msra.mxu0 0.0
        %1982 = vmatprep.subr.mxu0 0.0
        %1983 = vmatpush2.msra.mxu0 0.0
        %1984 = vmatprep.subr.mxu0 0.0
        %1985 = vmatpush2.msra.mxu0 0.0
        %1986 = vmatprep.subr.mxu0 0.0
        %1987 = vmatpush2.msra.mxu0 0.0
        %1988 = vmatprep.mubr.f32.mxu0 0.0
        %1989 = vmatmul.mubr.f32.gmra.mxu0 %v1877
        %v1990 = vpop.f32.mrf.mxu0
        %v1991 = vadd.f32 0.0, %v1990
        %v1992 = vpop.f32.mrf.mxu0
        %1993 = vmatprep.mubr.f32.mxu0 0.0
        %1994 = vmatmul.mubr.f32.gmra.mxu0 %v1880
        %v1995 = vpop.f32.mrf.mxu0
        %v1996 = vadd.f32 0.0, %v1995
        %v1997 = vpop.f32.mrf.mxu0
        %1998 = vmatprep.mubr.f32.mxu0 0.0
        %1999 = vmatmul.mubr.f32.gmra.mxu0 %v1883
        %v2000 = vpop.f32.mrf.mxu0
        %v2001 = vadd.f32 0.0, %v2000
        %v2002 = vpop.f32.mrf.mxu0
        %2003 = vmatprep.mubr.f32.mxu0 0.0
        %2004 = vmatmul.mubr.f32.gmra.mxu0 %v1886
        %v2005 = vpop.f32.mrf.mxu0
        %v2006 = vadd.f32 0.0, %v2005
        %v2007 = vpop.f32.mrf.mxu0
        %2008 = vmatprep.mubr.f32.mxu0 0.0
        %2009 = vmatmul.mubr.f32.gmra.mxu0 %v1889
        %v2010 = vpop.f32.mrf.mxu0
        %v2011 = vadd.f32 0.0, %v2010
        %v2012 = vpop.f32.mrf.mxu0
        %2013 = vmatprep.mubr.f32.mxu0 0.0
        %2014 = vmatmul.mubr.f32.gmra.mxu0 %v1892
        %v2015 = vpop.f32.mrf.mxu0
        %v2016 = vadd.f32 0.0, %v2015
        %v2017 = vpop.f32.mrf.mxu0
        %2018 = vmatprep.mubr.f32.mxu0 0.0
        %2019 = vmatmul.mubr.f32.gmra.mxu0 %v1895
        %v2020 = vpop.f32.mrf.mxu0
        %v2021 = vadd.f32 0.0, %v2020
        %v2022 = vpop.f32.mrf.mxu0
        %2023 = vmatprep.mubr.f32.mxu0 0.0
        %2024 = vmatmul.mubr.f32.gmra.mxu0 %v1898
        %v2025 = vpop.f32.mrf.mxu0
        %v2026 = vadd.f32 0.0, %v2025
        %v2027 = vpop.f32.mrf.mxu0
        %2028 = vmatprep.mubr.f32.mxu0 0.0
        %2029 = vmatmul.mubr.f32.gmra.mxu0 %v1901
        %v2030 = vpop.f32.mrf.mxu0
        %v2031 = vadd.f32 0.0, %v2030
        %v2032 = vpop.f32.mrf.mxu0
        %2033 = vmatprep.mubr.f32.mxu0 0.0
        %2034 = vmatmul.mubr.f32.gmra.mxu0 %v1904
        %v2035 = vpop.f32.mrf.mxu0
        %v2036 = vadd.f32 0.0, %v2035
        %v2037 = vpop.f32.mrf.mxu0
        %2038 = vmatprep.mubr.f32.mxu0 0.0
        %2039 = vmatmul.mubr.f32.gmra.mxu0 %v1907
        %v2040 = vpop.f32.mrf.mxu0
        %v2041 = vadd.f32 0.0, %v2040
        %v2042 = vpop.f32.mrf.mxu0
        %2043 = vmatprep.mubr.f32.mxu0 0.0
        %2044 = vmatmul.mubr.f32.gmra.mxu0 %v1910
        %v2045 = vpop.f32.mrf.mxu0
        %v2046 = vadd.f32 0.0, %v2045
        %v2047 = vpop.f32.mrf.mxu0
        %2048 = vmatprep.mubr.f32.mxu0 0.0
        %2049 = vmatmul.mubr.f32.gmra.mxu0 %v1913
        %v2050 = vpop.f32.mrf.mxu0
        %v2051 = vadd.f32 0.0, %v2050
        %v2052 = vpop.f32.mrf.mxu0
        %2053 = vmatprep.mubr.f32.mxu0 0.0
        %2054 = vmatmul.mubr.f32.gmra.mxu0 %v1916
        %v2055 = vpop.f32.mrf.mxu0
        %v2056 = vadd.f32 0.0, %v2055
        %v2057 = vpop.f32.mrf.mxu0
        %2058 = vmatprep.mubr.f32.mxu0 0.0
        %2059 = vmatmul.mubr.f32.gmra.mxu0 %v1919
        %v2060 = vpop.f32.mrf.mxu0
        %v2061 = vadd.f32 0.0, %v2060
        %v2062 = vpop.f32.mrf.mxu0
        %2063 = vmatprep.mubr.f32.mxu0 0.0
        %2064 = vmatmul.mubr.f32.gmra.mxu0 %v1922
        %v2065 = vpop.f32.mrf.mxu0
        %v2066 = vadd.f32 0.0, %v2065
        %v2067 = vpop.f32.mrf.mxu0
        %2068 = vdwg.mxu0
        %v2069 = vrot.slane %v1991, 7
        %v2070 = vrot.slane %v1996, 7
        %v2071 = vrot.slane %v2001, 7
        %v2072 = vrot.slane %v2006, 7
        %v2073 = vrot.slane %v2011, 7
        %v2074 = vrot.slane %v2016, 7
        %v2075 = vrot.slane %v2021, 7
        %v2076 = vrot.slane %v2026, 7
        %v2077 = vrot.slane %v2031, 7
        %v2078 = vrot.slane %v2036, 7
        %v2079 = vrot.slane %v2041, 7
        %v2080 = vrot.slane %v2046, 7
        %v2081 = vrot.slane %v2051, 7
        %v2082 = vrot.slane %v2056, 7
        %v2083 = vrot.slane %v2061, 7
        %v2084 = vrot.slane %v2066, 7
        %v2085 = vsel %vm575, %v2083, %v2084
        %v2086 = vsel %vm575, %v2082, %v2083
        %v2087 = vsel %vm575, %v2081, %v2082
        %v2088 = vsel %vm575, %v2080, %v2081
        %v2089 = vsel %vm575, %v2079, %v2080
        %v2090 = vsel %vm575, %v2078, %v2079
        %v2091 = vsel %vm575, %v2077, %v2078
        %v2092 = vsel %vm575, %v2076, %v2077
        %v2093 = vsel %vm575, %v2075, %v2076
        %v2094 = vsel %vm575, %v2074, %v2075
        %v2095 = vsel %vm575, %v2073, %v2074
        %v2096 = vsel %vm575, %v2072, %v2073
        %v2097 = vsel %vm575, %v2071, %v2072
        %v2098 = vsel %vm575, %v2070, %v2071
        %v2099 = vsel %vm575, %v2069, %v2070
        %v2100 = vsel %vm575, %v2084, %v2069
        %v2101 = vsel %vm329, %v2100, 0.0
        %v2102 = vsel %vm330, %v2099, 0.0
        %v2103 = vsel %vm331, %v2098, 0.0
        %v2104 = vsel %vm332, %v2097, 0.0
        %v2105 = vsel %vm333, %v2096, 0.0
        %v2106 = vsel %vm334, %v2095, 0.0
        %v2107 = vsel %vm335, %v2094, 0.0
        %v2108 = vsel %vm336, %v2093, 0.0
        %v2109 = vsel %vm337, %v2092, 0.0
        %v2110 = vsel %vm338, %v2091, 0.0
        %v2111 = vsel %vm339, %v2090, 0.0
        %v2112 = vsel %vm340, %v2089, 0.0
        %v2113 = vsel %vm341, %v2088, 0.0
        %v2114 = vsel %vm342, %v2087, 0.0
        %v2115 = vsel %vm343, %v2086, 0.0
        %v2116 = vsel %vm344, %v2085, 0.0
        %2133 = vrot.lane.b32.xlu0 %v1991, 64
        %v2134 = vpop.permute.xlu0 %2133
        %2135 = vrot.lane.b32.xlu0 %v1996, 64
        %v2136 = vpop.permute.xlu0 %2135
        %2137 = vrot.lane.b32.xlu0 %v2001, 64
        %v2138 = vpop.permute.xlu0 %2137
        %2139 = vrot.lane.b32.xlu0 %v2006, 64
        %v2140 = vpop.permute.xlu0 %2139
        %2141 = vrot.lane.b32.xlu0 %v2011, 64
        %v2142 = vpop.permute.xlu0 %2141
        %2143 = vrot.lane.b32.xlu0 %v2016, 64
        %v2144 = vpop.permute.xlu0 %2143
        %2145 = vrot.lane.b32.xlu0 %v2021, 64
        %v2146 = vpop.permute.xlu0 %2145
        %2147 = vrot.lane.b32.xlu0 %v2026, 64
        %v2148 = vpop.permute.xlu0 %2147
        %2149 = vrot.lane.b32.xlu0 %v2031, 64
        %v2150 = vpop.permute.xlu0 %2149
        %2151 = vrot.lane.b32.xlu0 %v2036, 64
        %v2152 = vpop.permute.xlu0 %2151
        %2153 = vrot.lane.b32.xlu0 %v2041, 64
        %v2154 = vpop.permute.xlu0 %2153
        %2155 = vrot.lane.b32.xlu0 %v2046, 64
        %v2156 = vpop.permute.xlu0 %2155
        %2157 = vrot.lane.b32.xlu0 %v2051, 64
        %v2158 = vpop.permute.xlu0 %2157
        %2159 = vrot.lane.b32.xlu0 %v2056, 64
        %v2160 = vpop.permute.xlu0 %2159
        %2161 = vrot.lane.b32.xlu0 %v2061, 64
        %v2162 = vpop.permute.xlu0 %2161
        %2163 = vrot.lane.b32.xlu0 %v2066, 64
        %v2164 = vpop.permute.xlu0 %2163
        %v2181 = vrot.slane %v2134, 1
        %v2182 = vrot.slane %v2136, 1
        %v2183 = vrot.slane %v2138, 1
        %v2184 = vrot.slane %v2140, 1
        %v2185 = vrot.slane %v2142, 1
        %v2186 = vrot.slane %v2144, 1
        %v2187 = vrot.slane %v2146, 1
        %v2188 = vrot.slane %v2148, 1
        %v2189 = vrot.slane %v2150, 1
        %v2190 = vrot.slane %v2152, 1
        %v2191 = vrot.slane %v2154, 1
        %v2192 = vrot.slane %v2156, 1
        %v2193 = vrot.slane %v2158, 1
        %v2194 = vrot.slane %v2160, 1
        %v2195 = vrot.slane %v2162, 1
        %v2196 = vrot.slane %v2164, 1
        %v2197 = vsel %vm688, %v2195, %v2196
        %v2198 = vsel %vm688, %v2194, %v2195
        %v2199 = vsel %vm688, %v2193, %v2194
        %v2200 = vsel %vm688, %v2192, %v2193
        %v2201 = vsel %vm688, %v2191, %v2192
        %v2202 = vsel %vm688, %v2190, %v2191
        %v2203 = vsel %vm688, %v2189, %v2190
        %v2204 = vsel %vm688, %v2188, %v2189
        %v2205 = vsel %vm688, %v2187, %v2188
        %v2206 = vsel %vm688, %v2186, %v2187
        %v2207 = vsel %vm688, %v2185, %v2186
        %v2208 = vsel %vm688, %v2184, %v2185
        %v2209 = vsel %vm688, %v2183, %v2184
        %v2210 = vsel %vm688, %v2182, %v2183
        %v2211 = vsel %vm688, %v2181, %v2182
        %v2212 = vsel %vm688, %v2196, %v2181
        %v2213 = vsel %vm345, %v2211, 0.0
        %v2214 = vsel %vm346, %v2210, 0.0
        %v2215 = vsel %vm347, %v2209, 0.0
        %v2216 = vsel %vm348, %v2208, 0.0
        %v2217 = vsel %vm349, %v2207, 0.0
        %v2218 = vsel %vm350, %v2206, 0.0
        %v2219 = vsel %vm351, %v2205, 0.0
        %v2220 = vsel %vm352, %v2204, 0.0
        %v2221 = vsel %vm353, %v2203, 0.0
        %v2222 = vsel %vm354, %v2202, 0.0
        %v2223 = vsel %vm355, %v2201, 0.0
        %v2224 = vsel %vm356, %v2200, 0.0
        %v2225 = vsel %vm357, %v2199, 0.0
        %v2226 = vsel %vm358, %v2198, 0.0
        %v2227 = vsel %vm359, %v2197, 0.0
        %v2228 = vsel %vm360, %v2212, 0.0
        %2229 = vrot.lane.b32.xlu0 %v1991, 96
        %v2230 = vpop.permute.xlu0 %2229
        %2231 = vrot.lane.b32.xlu0 %v1996, 96
        %v2232 = vpop.permute.xlu0 %2231
        %2233 = vrot.lane.b32.xlu0 %v2001, 96
        %v2234 = vpop.permute.xlu0 %2233
        %2235 = vrot.lane.b32.xlu0 %v2006, 96
        %v2236 = vpop.permute.xlu0 %2235
        %2237 = vrot.lane.b32.xlu0 %v2011, 96
        %v2238 = vpop.permute.xlu0 %2237
        %2239 = vrot.lane.b32.xlu0 %v2016, 96
        %v2240 = vpop.permute.xlu0 %2239
        %2241 = vrot.lane.b32.xlu0 %v2021, 96
        %v2242 = vpop.permute.xlu0 %2241
        %2243 = vrot.lane.b32.xlu0 %v2026, 96
        %v2244 = vpop.permute.xlu0 %2243
        %2245 = vrot.lane.b32.xlu0 %v2031, 96
        %v2246 = vpop.permute.xlu0 %2245
        %2247 = vrot.lane.b32.xlu0 %v2036, 96
        %v2248 = vpop.permute.xlu0 %2247
        %2249 = vrot.lane.b32.xlu0 %v2041, 96
        %v2250 = vpop.permute.xlu0 %2249
        %2251 = vrot.lane.b32.xlu0 %v2046, 96
        %v2252 = vpop.permute.xlu0 %2251
        %2253 = vrot.lane.b32.xlu0 %v2051, 96
        %v2254 = vpop.permute.xlu0 %2253
        %2255 = vrot.lane.b32.xlu0 %v2056, 96
        %v2256 = vpop.permute.xlu0 %2255
        %2257 = vrot.lane.b32.xlu0 %v2061, 96
        %v2258 = vpop.permute.xlu0 %2257
        %2259 = vrot.lane.b32.xlu0 %v2066, 96
        %v2260 = vpop.permute.xlu0 %2259
        %v2277 = vadd.f32 %v2101, %v2230
        %v2278 = vadd.f32 %v2102, %v2232
        %v2279 = vadd.f32 %v2103, %v2234
        %v2280 = vadd.f32 %v2104, %v2236
        %v2281 = vadd.f32 %v2105, %v2238
        %v2282 = vadd.f32 %v2106, %v2240
        %v2283 = vadd.f32 %v2107, %v2242
        %v2284 = vadd.f32 %v2108, %v2244
        %v2285 = vadd.f32 %v2109, %v2246
        %v2286 = vadd.f32 %v2110, %v2248
        %v2287 = vadd.f32 %v2111, %v2250
        %v2288 = vadd.f32 %v2112, %v2252
        %v2289 = vadd.f32 %v2113, %v2254
        %v2290 = vadd.f32 %v2114, %v2256
        %v2291 = vadd.f32 %v2115, %v2258
        %v2292 = vadd.f32 %v2116, %v2260
        %v2293 = vadd.f32 %v2277, %v2213
        %v2294 = vadd.f32 %v2278, %v2214
        %v2295 = vadd.f32 %v2279, %v2215
        %v2296 = vadd.f32 %v2280, %v2216
        %v2297 = vadd.f32 %v2281, %v2217
        %v2298 = vadd.f32 %v2282, %v2218
        %v2299 = vadd.f32 %v2283, %v2219
        %v2300 = vadd.f32 %v2284, %v2220
        %v2301 = vadd.f32 %v2285, %v2221
        %v2302 = vadd.f32 %v2286, %v2222
        %v2303 = vadd.f32 %v2287, %v2223
        %v2304 = vadd.f32 %v2288, %v2224
        %v2305 = vadd.f32 %v2289, %v2225
        %v2306 = vadd.f32 %v2290, %v2226
        %v2307 = vadd.f32 %v2291, %v2227
        %v2308 = vadd.f32 %v2292, %v2228
        %s2309 = scalar_lea.vmem %s2, 384
        %v2310 = vld [vmem:[%s2309] sm:$0xff]
        %v2311 = vld [vmem:[%s2309 + $0x8] sm:$0xff]
        %v2312 = vld [vmem:[%s2309 + $0x10] sm:$0xff]
        %v2313 = vld [vmem:[%s2309 + $0x18] sm:$0xff]
        %v2314 = vld [vmem:[%s2309 + $0x20] sm:$0xff]
        %v2315 = vld [vmem:[%s2309 + $0x28] sm:$0xff]
        %v2316 = vld [vmem:[%s2309 + $0x30] sm:$0xff]
        %v2317 = vld [vmem:[%s2309 + $0x38] sm:$0xff]
        %v2318 = vld [vmem:[%s2309 + $0x40] sm:$0xff]
        %v2319 = vld [vmem:[%s2309 + $0x48] sm:$0xff]
        %v2320 = vld [vmem:[%s2309 + $0x50] sm:$0xff]
        %v2321 = vld [vmem:[%s2309 + $0x58] sm:$0xff]
        %v2322 = vld [vmem:[%s2309 + $0x60] sm:$0xff]
        %v2323 = vld [vmem:[%s2309 + $0x68] sm:$0xff]
        %v2324 = vld [vmem:[%s2309 + $0x70] sm:$0xff]
        %v2325 = vld [vmem:[%s2309 + $0x78] sm:$0xff]
        %v2326 = vadd.f32 %v2293, %v2310
        %v2327 = vadd.f32 %v2294, %v2311
        %v2328 = vadd.f32 %v2295, %v2312
        %v2329 = vadd.f32 %v2296, %v2313
        %v2330 = vadd.f32 %v2297, %v2314
        %v2331 = vadd.f32 %v2298, %v2315
        %v2332 = vadd.f32 %v2299, %v2316
        %v2333 = vadd.f32 %v2300, %v2317
        %v2334 = vadd.f32 %v2301, %v2318
        %v2335 = vadd.f32 %v2302, %v2319
        %v2336 = vadd.f32 %v2303, %v2320
        %v2337 = vadd.f32 %v2304, %v2321
        %v2338 = vadd.f32 %v2305, %v2322
        %v2339 = vadd.f32 %v2306, %v2323
        %v2340 = vadd.f32 %v2307, %v2324
        %v2341 = vadd.f32 %v2308, %v2325
        %v2342 = vmul.f32 %v2326, 0.02
        %v2343 = vmul.f32 %v2327, 0.02
        %v2344 = vmul.f32 %v2328, 0.02
        %v2345 = vmul.f32 %v2329, 0.02
        %v2346 = vmul.f32 %v2330, 0.02
        %v2347 = vmul.f32 %v2331, 0.02
        %v2348 = vmul.f32 %v2332, 0.02
        %v2349 = vmul.f32 %v2333, 0.02
        %v2350 = vmul.f32 %v2334, 0.02
        %v2351 = vmul.f32 %v2335, 0.02
        %v2352 = vmul.f32 %v2336, 0.02
        %v2353 = vmul.f32 %v2337, 0.02
        %v2354 = vmul.f32 %v2338, 0.02
        %v2355 = vmul.f32 %v2339, 0.02
        %v2356 = vmul.f32 %v2340, 0.02
        %v2357 = vmul.f32 %v2341, 0.02
        %v2358 = vmax.f32 %v2326, %v2342
        %v2359 = vmax.f32 %v2327, %v2343
        %v2360 = vmax.f32 %v2328, %v2344
        %v2361 = vmax.f32 %v2329, %v2345
        %v2362 = vmax.f32 %v2330, %v2346
        %v2363 = vmax.f32 %v2331, %v2347
        %v2364 = vmax.f32 %v2332, %v2348
        %v2365 = vmax.f32 %v2333, %v2349
        %v2366 = vmax.f32 %v2334, %v2350
        %v2367 = vmax.f32 %v2335, %v2351
        %v2368 = vmax.f32 %v2336, %v2352
        %v2369 = vmax.f32 %v2337, %v2353
        %v2370 = vmax.f32 %v2338, %v2354
        %v2371 = vmax.f32 %v2339, %v2355
        %v2372 = vmax.f32 %v2340, %v2356
        %v2373 = vmax.f32 %v2341, %v2357
        %s2374 = scalar_lea.vmem %s1, 128
        %v2375 = vld [vmem:[%s2374] sm:$0xff]
        %v2376 = vld [vmem:[%s2374 + $0x8] sm:$0xff]
        %v2377 = vld [vmem:[%s2374 + $0x10] sm:$0xff]
        %v2378 = vld [vmem:[%s2374 + $0x18] sm:$0xff]
        %v2380 = vsel %vm365, %v2358, 0
        %v2383 = vsel %vm365, %v2359, 0
        %v2386 = vsel %vm365, %v2360, 0
        %v2389 = vsel %vm365, %v2361, 0
        %v2392 = vsel %vm365, %v2362, 0
        %v2395 = vsel %vm365, %v2363, 0
        %v2398 = vsel %vm365, %v2364, 0
        %v2401 = vsel %vm365, %v2365, 0
        %v2404 = vsel %vm365, %v2366, 0
        %v2407 = vsel %vm365, %v2367, 0
        %v2410 = vsel %vm365, %v2368, 0
        %v2413 = vsel %vm365, %v2369, 0
        %v2416 = vsel %vm365, %v2370, 0
        %v2419 = vsel %vm365, %v2371, 0
        %v2422 = vsel %vm365, %v2372, 0
        %v2425 = vsel %vm365, %v2373, 0
        %2427 = vmatprep.subr.mxu0 0.0
        %2428 = vmatpush1.msra.mxu0 0.0
        %2429 = vmatprep.subr.mxu0 0.0
        %2430 = vmatpush1.msra.mxu0 0.0
        %2431 = vmatprep.subr.mxu0 0.0
        %2432 = vmatpush1.msra.mxu0 0.0
        %2433 = vmatprep.subr.mxu0 0.0
        %2434 = vmatpush1.msra.mxu0 0.0
        %2435 = vmatprep.subr.mxu0 0.0
        %2436 = vmatpush1.msra.mxu0 0.0
        %2437 = vmatprep.subr.mxu0 0.0
        %2438 = vmatpush1.msra.mxu0 0.0
        %2439 = vmatprep.subr.mxu0 0.0
        %2440 = vmatpush1.msra.mxu0 0.0
        %2441 = vmatprep.subr.mxu0 0.0
        %2442 = vmatpush1.msra.mxu0 0.0
        %2443 = vmatprep.subr.mxu0 0.0
        %2444 = vmatpush1.msra.mxu0 0.0
        %2445 = vmatprep.subr.mxu0 0.0
        %2446 = vmatpush1.msra.mxu0 0.0
        %2447 = vmatprep.subr.mxu0 0.0
        %2448 = vmatpush1.msra.mxu0 0.0
        %2449 = vmatprep.subr.mxu0 0.0
        %2450 = vmatpush1.msra.mxu0 0.0
        %2451 = vmatprep.subr.mxu0 0.0
        %2452 = vmatpush1.msra.mxu0 %v2378
        %2453 = vmatprep.subr.mxu0 0.0
        %2454 = vmatpush1.msra.mxu0 %v2377
        %2455 = vmatprep.subr.mxu0 0.0
        %2456 = vmatpush1.msra.mxu0 %v2376
        %2457 = vmatprep.subr.mxu0 0.0
        %2458 = vmatpush1.msra.mxu0 %v2375
        %2459 = vmatprep.subr.mxu0 0.0
        %2460 = vmatpush2.msra.mxu0 0.0
        %2461 = vmatprep.subr.mxu0 0.0
        %2462 = vmatpush2.msra.mxu0 0.0
        %2463 = vmatprep.subr.mxu0 0.0
        %2464 = vmatpush2.msra.mxu0 0.0
        %2465 = vmatprep.subr.mxu0 0.0
        %2466 = vmatpush2.msra.mxu0 0.0
        %2467 = vmatprep.subr.mxu0 0.0
        %2468 = vmatpush2.msra.mxu0 0.0
        %2469 = vmatprep.subr.mxu0 0.0
        %2470 = vmatpush2.msra.mxu0 0.0
        %2471 = vmatprep.subr.mxu0 0.0
        %2472 = vmatpush2.msra.mxu0 0.0
        %2473 = vmatprep.subr.mxu0 0.0
        %2474 = vmatpush2.msra.mxu0 0.0
        %2475 = vmatprep.subr.mxu0 0.0
        %2476 = vmatpush2.msra.mxu0 0.0
        %2477 = vmatprep.subr.mxu0 0.0
        %2478 = vmatpush2.msra.mxu0 0.0
        %2479 = vmatprep.subr.mxu0 0.0
        %2480 = vmatpush2.msra.mxu0 0.0
        %2481 = vmatprep.subr.mxu0 0.0
        %2482 = vmatpush2.msra.mxu0 0.0
        %2483 = vmatprep.subr.mxu0 0.0
        %2484 = vmatpush2.msra.mxu0 0.0
        %2485 = vmatprep.subr.mxu0 0.0
        %2486 = vmatpush2.msra.mxu0 0.0
        %2487 = vmatprep.subr.mxu0 0.0
        %2488 = vmatpush2.msra.mxu0 0.0
        %2489 = vmatprep.subr.mxu0 0.0
        %2490 = vmatpush2.msra.mxu0 0.0
        %2491 = vmatprep.mubr.f32.mxu0 0.0
        %2492 = vmatmul.mubr.f32.gmra.mxu0 %v2380
        %v2493 = vpop.f32.mrf.mxu0
        %v2494 = vadd.f32 0.0, %v2493
        %v2495 = vpop.f32.mrf.mxu0
        %2496 = vmatprep.mubr.f32.mxu0 0.0
        %2497 = vmatmul.mubr.f32.gmra.mxu0 %v2383
        %v2498 = vpop.f32.mrf.mxu0
        %v2499 = vadd.f32 0.0, %v2498
        %v2500 = vpop.f32.mrf.mxu0
        %2501 = vmatprep.mubr.f32.mxu0 0.0
        %2502 = vmatmul.mubr.f32.gmra.mxu0 %v2386
        %v2503 = vpop.f32.mrf.mxu0
        %v2504 = vadd.f32 0.0, %v2503
        %v2505 = vpop.f32.mrf.mxu0
        %2506 = vmatprep.mubr.f32.mxu0 0.0
        %2507 = vmatmul.mubr.f32.gmra.mxu0 %v2389
        %v2508 = vpop.f32.mrf.mxu0
        %v2509 = vadd.f32 0.0, %v2508
        %v2510 = vpop.f32.mrf.mxu0
        %2511 = vmatprep.mubr.f32.mxu0 0.0
        %2512 = vmatmul.mubr.f32.gmra.mxu0 %v2392
        %v2513 = vpop.f32.mrf.mxu0
        %v2514 = vadd.f32 0.0, %v2513
        %v2515 = vpop.f32.mrf.mxu0
        %2516 = vmatprep.mubr.f32.mxu0 0.0
        %2517 = vmatmul.mubr.f32.gmra.mxu0 %v2395
        %v2518 = vpop.f32.mrf.mxu0
        %v2519 = vadd.f32 0.0, %v2518
        %v2520 = vpop.f32.mrf.mxu0
        %2521 = vmatprep.mubr.f32.mxu0 0.0
        %2522 = vmatmul.mubr.f32.gmra.mxu0 %v2398
        %v2523 = vpop.f32.mrf.mxu0
        %v2524 = vadd.f32 0.0, %v2523
        %v2525 = vpop.f32.mrf.mxu0
        %2526 = vmatprep.mubr.f32.mxu0 0.0
        %2527 = vmatmul.mubr.f32.gmra.mxu0 %v2401
        %v2528 = vpop.f32.mrf.mxu0
        %v2529 = vadd.f32 0.0, %v2528
        %v2530 = vpop.f32.mrf.mxu0
        %2531 = vmatprep.mubr.f32.mxu0 0.0
        %2532 = vmatmul.mubr.f32.gmra.mxu0 %v2404
        %v2533 = vpop.f32.mrf.mxu0
        %v2534 = vadd.f32 0.0, %v2533
        %v2535 = vpop.f32.mrf.mxu0
        %2536 = vmatprep.mubr.f32.mxu0 0.0
        %2537 = vmatmul.mubr.f32.gmra.mxu0 %v2407
        %v2538 = vpop.f32.mrf.mxu0
        %v2539 = vadd.f32 0.0, %v2538
        %v2540 = vpop.f32.mrf.mxu0
        %2541 = vmatprep.mubr.f32.mxu0 0.0
        %2542 = vmatmul.mubr.f32.gmra.mxu0 %v2410
        %v2543 = vpop.f32.mrf.mxu0
        %v2544 = vadd.f32 0.0, %v2543
        %v2545 = vpop.f32.mrf.mxu0
        %2546 = vmatprep.mubr.f32.mxu0 0.0
        %2547 = vmatmul.mubr.f32.gmra.mxu0 %v2413
        %v2548 = vpop.f32.mrf.mxu0
        %v2549 = vadd.f32 0.0, %v2548
        %v2550 = vpop.f32.mrf.mxu0
        %2551 = vmatprep.mubr.f32.mxu0 0.0
        %2552 = vmatmul.mubr.f32.gmra.mxu0 %v2416
        %v2553 = vpop.f32.mrf.mxu0
        %v2554 = vadd.f32 0.0, %v2553
        %v2555 = vpop.f32.mrf.mxu0
        %2556 = vmatprep.mubr.f32.mxu0 0.0
        %2557 = vmatmul.mubr.f32.gmra.mxu0 %v2419
        %v2558 = vpop.f32.mrf.mxu0
        %v2559 = vadd.f32 0.0, %v2558
        %v2560 = vpop.f32.mrf.mxu0
        %2561 = vmatprep.mubr.f32.mxu0 0.0
        %2562 = vmatmul.mubr.f32.gmra.mxu0 %v2422
        %v2563 = vpop.f32.mrf.mxu0
        %v2564 = vadd.f32 0.0, %v2563
        %v2565 = vpop.f32.mrf.mxu0
        %2566 = vmatprep.mubr.f32.mxu0 0.0
        %2567 = vmatmul.mubr.f32.gmra.mxu0 %v2425
        %v2568 = vpop.f32.mrf.mxu0
        %v2569 = vadd.f32 0.0, %v2568
        %v2570 = vpop.f32.mrf.mxu0
        %2571 = vdwg.mxu0
        %v2572 = vrot.slane %v2494, 7
        %v2573 = vrot.slane %v2499, 7
        %v2574 = vrot.slane %v2504, 7
        %v2575 = vrot.slane %v2509, 7
        %v2576 = vrot.slane %v2514, 7
        %v2577 = vrot.slane %v2519, 7
        %v2578 = vrot.slane %v2524, 7
        %v2579 = vrot.slane %v2529, 7
        %v2580 = vrot.slane %v2534, 7
        %v2581 = vrot.slane %v2539, 7
        %v2582 = vrot.slane %v2544, 7
        %v2583 = vrot.slane %v2549, 7
        %v2584 = vrot.slane %v2554, 7
        %v2585 = vrot.slane %v2559, 7
        %v2586 = vrot.slane %v2564, 7
        %v2587 = vrot.slane %v2569, 7
        %v2588 = vsel %vm575, %v2586, %v2587
        %v2589 = vsel %vm575, %v2585, %v2586
        %v2590 = vsel %vm575, %v2584, %v2585
        %v2591 = vsel %vm575, %v2583, %v2584
        %v2592 = vsel %vm575, %v2582, %v2583
        %v2593 = vsel %vm575, %v2581, %v2582
        %v2594 = vsel %vm575, %v2580, %v2581
        %v2595 = vsel %vm575, %v2579, %v2580
        %v2596 = vsel %vm575, %v2578, %v2579
        %v2597 = vsel %vm575, %v2577, %v2578
        %v2598 = vsel %vm575, %v2576, %v2577
        %v2599 = vsel %vm575, %v2575, %v2576
        %v2600 = vsel %vm575, %v2574, %v2575
        %v2601 = vsel %vm575, %v2573, %v2574
        %v2602 = vsel %vm575, %v2572, %v2573
        %v2603 = vsel %vm575, %v2587, %v2572
        %v2604 = vsel %vm329, %v2603, 0.0
        %v2605 = vsel %vm330, %v2602, 0.0
        %v2606 = vsel %vm331, %v2601, 0.0
        %v2607 = vsel %vm332, %v2600, 0.0
        %v2608 = vsel %vm333, %v2599, 0.0
        %v2609 = vsel %vm334, %v2598, 0.0
        %v2610 = vsel %vm335, %v2597, 0.0
        %v2611 = vsel %vm336, %v2596, 0.0
        %v2612 = vsel %vm337, %v2595, 0.0
        %v2613 = vsel %vm338, %v2594, 0.0
        %v2614 = vsel %vm339, %v2593, 0.0
        %v2615 = vsel %vm340, %v2592, 0.0
        %v2616 = vsel %vm341, %v2591, 0.0
        %v2617 = vsel %vm342, %v2590, 0.0
        %v2618 = vsel %vm343, %v2589, 0.0
        %v2619 = vsel %vm344, %v2588, 0.0
        %2636 = vrot.lane.b32.xlu0 %v2494, 64
        %v2637 = vpop.permute.xlu0 %2636
        %2638 = vrot.lane.b32.xlu0 %v2499, 64
        %v2639 = vpop.permute.xlu0 %2638
        %2640 = vrot.lane.b32.xlu0 %v2504, 64
        %v2641 = vpop.permute.xlu0 %2640
        %2642 = vrot.lane.b32.xlu0 %v2509, 64
        %v2643 = vpop.permute.xlu0 %2642
        %2644 = vrot.lane.b32.xlu0 %v2514, 64
        %v2645 = vpop.permute.xlu0 %2644
        %2646 = vrot.lane.b32.xlu0 %v2519, 64
        %v2647 = vpop.permute.xlu0 %2646
        %2648 = vrot.lane.b32.xlu0 %v2524, 64
        %v2649 = vpop.permute.xlu0 %2648
        %2650 = vrot.lane.b32.xlu0 %v2529, 64
        %v2651 = vpop.permute.xlu0 %2650
        %2652 = vrot.lane.b32.xlu0 %v2534, 64
        %v2653 = vpop.permute.xlu0 %2652
        %2654 = vrot.lane.b32.xlu0 %v2539, 64
        %v2655 = vpop.permute.xlu0 %2654
        %2656 = vrot.lane.b32.xlu0 %v2544, 64
        %v2657 = vpop.permute.xlu0 %2656
        %2658 = vrot.lane.b32.xlu0 %v2549, 64
        %v2659 = vpop.permute.xlu0 %2658
        %2660 = vrot.lane.b32.xlu0 %v2554, 64
        %v2661 = vpop.permute.xlu0 %2660
        %2662 = vrot.lane.b32.xlu0 %v2559, 64
        %v2663 = vpop.permute.xlu0 %2662
        %2664 = vrot.lane.b32.xlu0 %v2564, 64
        %v2665 = vpop.permute.xlu0 %2664
        %2666 = vrot.lane.b32.xlu0 %v2569, 64
        %v2667 = vpop.permute.xlu0 %2666
        %v2684 = vrot.slane %v2637, 1
        %v2685 = vrot.slane %v2639, 1
        %v2686 = vrot.slane %v2641, 1
        %v2687 = vrot.slane %v2643, 1
        %v2688 = vrot.slane %v2645, 1
        %v2689 = vrot.slane %v2647, 1
        %v2690 = vrot.slane %v2649, 1
        %v2691 = vrot.slane %v2651, 1
        %v2692 = vrot.slane %v2653, 1
        %v2693 = vrot.slane %v2655, 1
        %v2694 = vrot.slane %v2657, 1
        %v2695 = vrot.slane %v2659, 1
        %v2696 = vrot.slane %v2661, 1
        %v2697 = vrot.slane %v2663, 1
        %v2698 = vrot.slane %v2665, 1
        %v2699 = vrot.slane %v2667, 1
        %v2700 = vsel %vm688, %v2698, %v2699
        %v2701 = vsel %vm688, %v2697, %v2698
        %v2702 = vsel %vm688, %v2696, %v2697
        %v2703 = vsel %vm688, %v2695, %v2696
        %v2704 = vsel %vm688, %v2694, %v2695
        %v2705 = vsel %vm688, %v2693, %v2694
        %v2706 = vsel %vm688, %v2692, %v2693
        %v2707 = vsel %vm688, %v2691, %v2692
        %v2708 = vsel %vm688, %v2690, %v2691
        %v2709 = vsel %vm688, %v2689, %v2690
        %v2710 = vsel %vm688, %v2688, %v2689
        %v2711 = vsel %vm688, %v2687, %v2688
        %v2712 = vsel %vm688, %v2686, %v2687
        %v2713 = vsel %vm688, %v2685, %v2686
        %v2714 = vsel %vm688, %v2684, %v2685
        %v2715 = vsel %vm688, %v2699, %v2684
        %v2716 = vsel %vm345, %v2714, 0.0
        %v2717 = vsel %vm346, %v2713, 0.0
        %v2718 = vsel %vm347, %v2712, 0.0
        %v2719 = vsel %vm348, %v2711, 0.0
        %v2720 = vsel %vm349, %v2710, 0.0
        %v2721 = vsel %vm350, %v2709, 0.0
        %v2722 = vsel %vm351, %v2708, 0.0
        %v2723 = vsel %vm352, %v2707, 0.0
        %v2724 = vsel %vm353, %v2706, 0.0
        %v2725 = vsel %vm354, %v2705, 0.0
        %v2726 = vsel %vm355, %v2704, 0.0
        %v2727 = vsel %vm356, %v2703, 0.0
        %v2728 = vsel %vm357, %v2702, 0.0
        %v2729 = vsel %vm358, %v2701, 0.0
        %v2730 = vsel %vm359, %v2700, 0.0
        %v2731 = vsel %vm360, %v2715, 0.0
        %2732 = vrot.lane.b32.xlu0 %v2494, 96
        %v2733 = vpop.permute.xlu0 %2732
        %2734 = vrot.lane.b32.xlu0 %v2499, 96
        %v2735 = vpop.permute.xlu0 %2734
        %2736 = vrot.lane.b32.xlu0 %v2504, 96
        %v2737 = vpop.permute.xlu0 %2736
        %2738 = vrot.lane.b32.xlu0 %v2509, 96
        %v2739 = vpop.permute.xlu0 %2738
        %2740 = vrot.lane.b32.xlu0 %v2514, 96
        %v2741 = vpop.permute.xlu0 %2740
        %2742 = vrot.lane.b32.xlu0 %v2519, 96
        %v2743 = vpop.permute.xlu0 %2742
        %2744 = vrot.lane.b32.xlu0 %v2524, 96
        %v2745 = vpop.permute.xlu0 %2744
        %2746 = vrot.lane.b32.xlu0 %v2529, 96
        %v2747 = vpop.permute.xlu0 %2746
        %2748 = vrot.lane.b32.xlu0 %v2534, 96
        %v2749 = vpop.permute.xlu0 %2748
        %2750 = vrot.lane.b32.xlu0 %v2539, 96
        %v2751 = vpop.permute.xlu0 %2750
        %2752 = vrot.lane.b32.xlu0 %v2544, 96
        %v2753 = vpop.permute.xlu0 %2752
        %2754 = vrot.lane.b32.xlu0 %v2549, 96
        %v2755 = vpop.permute.xlu0 %2754
        %2756 = vrot.lane.b32.xlu0 %v2554, 96
        %v2757 = vpop.permute.xlu0 %2756
        %2758 = vrot.lane.b32.xlu0 %v2559, 96
        %v2759 = vpop.permute.xlu0 %2758
        %2760 = vrot.lane.b32.xlu0 %v2564, 96
        %v2761 = vpop.permute.xlu0 %2760
        %2762 = vrot.lane.b32.xlu0 %v2569, 96
        %v2763 = vpop.permute.xlu0 %2762
        %v2780 = vadd.f32 %v2604, %v2733
        %v2781 = vadd.f32 %v2605, %v2735
        %v2782 = vadd.f32 %v2606, %v2737
        %v2783 = vadd.f32 %v2607, %v2739
        %v2784 = vadd.f32 %v2608, %v2741
        %v2785 = vadd.f32 %v2609, %v2743
        %v2786 = vadd.f32 %v2610, %v2745
        %v2787 = vadd.f32 %v2611, %v2747
        %v2788 = vadd.f32 %v2612, %v2749
        %v2789 = vadd.f32 %v2613, %v2751
        %v2790 = vadd.f32 %v2614, %v2753
        %v2791 = vadd.f32 %v2615, %v2755
        %v2792 = vadd.f32 %v2616, %v2757
        %v2793 = vadd.f32 %v2617, %v2759
        %v2794 = vadd.f32 %v2618, %v2761
        %v2795 = vadd.f32 %v2619, %v2763
        %v2796 = vadd.f32 %v2780, %v2716
        %v2797 = vadd.f32 %v2781, %v2717
        %v2798 = vadd.f32 %v2782, %v2718
        %v2799 = vadd.f32 %v2783, %v2719
        %v2800 = vadd.f32 %v2784, %v2720
        %v2801 = vadd.f32 %v2785, %v2721
        %v2802 = vadd.f32 %v2786, %v2722
        %v2803 = vadd.f32 %v2787, %v2723
        %v2804 = vadd.f32 %v2788, %v2724
        %v2805 = vadd.f32 %v2789, %v2725
        %v2806 = vadd.f32 %v2790, %v2726
        %v2807 = vadd.f32 %v2791, %v2727
        %v2808 = vadd.f32 %v2792, %v2728
        %v2809 = vadd.f32 %v2793, %v2729
        %v2810 = vadd.f32 %v2794, %v2730
        %v2811 = vadd.f32 %v2795, %v2731
        %s2812 = scalar_lea.vmem %s2, 512
        %v2813 = vld [vmem:[%s2812] sm:$0xff]
        %v2814 = vld [vmem:[%s2812 + $0x8] sm:$0xff]
        %v2815 = vld [vmem:[%s2812 + $0x10] sm:$0xff]
        %v2816 = vld [vmem:[%s2812 + $0x18] sm:$0xff]
        %v2817 = vld [vmem:[%s2812 + $0x20] sm:$0xff]
        %v2818 = vld [vmem:[%s2812 + $0x28] sm:$0xff]
        %v2819 = vld [vmem:[%s2812 + $0x30] sm:$0xff]
        %v2820 = vld [vmem:[%s2812 + $0x38] sm:$0xff]
        %v2821 = vld [vmem:[%s2812 + $0x40] sm:$0xff]
        %v2822 = vld [vmem:[%s2812 + $0x48] sm:$0xff]
        %v2823 = vld [vmem:[%s2812 + $0x50] sm:$0xff]
        %v2824 = vld [vmem:[%s2812 + $0x58] sm:$0xff]
        %v2825 = vld [vmem:[%s2812 + $0x60] sm:$0xff]
        %v2826 = vld [vmem:[%s2812 + $0x68] sm:$0xff]
        %v2827 = vld [vmem:[%s2812 + $0x70] sm:$0xff]
        %v2828 = vld [vmem:[%s2812 + $0x78] sm:$0xff]
        %v2829 = vadd.f32 %v2796, %v2813
        %v2830 = vadd.f32 %v2797, %v2814
        %v2831 = vadd.f32 %v2798, %v2815
        %v2832 = vadd.f32 %v2799, %v2816
        %v2833 = vadd.f32 %v2800, %v2817
        %v2834 = vadd.f32 %v2801, %v2818
        %v2835 = vadd.f32 %v2802, %v2819
        %v2836 = vadd.f32 %v2803, %v2820
        %v2837 = vadd.f32 %v2804, %v2821
        %v2838 = vadd.f32 %v2805, %v2822
        %v2839 = vadd.f32 %v2806, %v2823
        %v2840 = vadd.f32 %v2807, %v2824
        %v2841 = vadd.f32 %v2808, %v2825
        %v2842 = vadd.f32 %v2809, %v2826
        %v2843 = vadd.f32 %v2810, %v2827
        %v2844 = vadd.f32 %v2811, %v2828
        %v2845 = vmul.f32 %v2829, 0.02
        %v2846 = vmul.f32 %v2830, 0.02
        %v2847 = vmul.f32 %v2831, 0.02
        %v2848 = vmul.f32 %v2832, 0.02
        %v2849 = vmul.f32 %v2833, 0.02
        %v2850 = vmul.f32 %v2834, 0.02
        %v2851 = vmul.f32 %v2835, 0.02
        %v2852 = vmul.f32 %v2836, 0.02
        %v2853 = vmul.f32 %v2837, 0.02
        %v2854 = vmul.f32 %v2838, 0.02
        %v2855 = vmul.f32 %v2839, 0.02
        %v2856 = vmul.f32 %v2840, 0.02
        %v2857 = vmul.f32 %v2841, 0.02
        %v2858 = vmul.f32 %v2842, 0.02
        %v2859 = vmul.f32 %v2843, 0.02
        %v2860 = vmul.f32 %v2844, 0.02
        %v2861 = vmax.f32 %v2829, %v2845
        %v2862 = vmax.f32 %v2830, %v2846
        %v2863 = vmax.f32 %v2831, %v2847
        %v2864 = vmax.f32 %v2832, %v2848
        %v2865 = vmax.f32 %v2833, %v2849
        %v2866 = vmax.f32 %v2834, %v2850
        %v2867 = vmax.f32 %v2835, %v2851
        %v2868 = vmax.f32 %v2836, %v2852
        %v2869 = vmax.f32 %v2837, %v2853
        %v2870 = vmax.f32 %v2838, %v2854
        %v2871 = vmax.f32 %v2839, %v2855
        %v2872 = vmax.f32 %v2840, %v2856
        %v2873 = vmax.f32 %v2841, %v2857
        %v2874 = vmax.f32 %v2842, %v2858
        %v2875 = vmax.f32 %v2843, %v2859
        %v2876 = vmax.f32 %v2844, %v2860
        %v2877 = vld [vmem:[%s4] sm:$0xff]
        %v2878 = vld [vmem:[%s4 + $0x8] sm:$0xff]
        %v2879 = vld [vmem:[%s4 + $0x10] sm:$0xff]
        %v2880 = vld [vmem:[%s4 + $0x18] sm:$0xff]
        %v2881 = vld [vmem:[%s4 + $0x20] sm:$0xff]
        %v2882 = vld [vmem:[%s4 + $0x28] sm:$0xff]
        %v2883 = vld [vmem:[%s4 + $0x30] sm:$0xff]
        %v2884 = vld [vmem:[%s4 + $0x38] sm:$0xff]
        %v2885 = vld [vmem:[%s4 + $0x40] sm:$0xff]
        %v2886 = vld [vmem:[%s4 + $0x48] sm:$0xff]
        %v2887 = vld [vmem:[%s4 + $0x50] sm:$0xff]
        %v2888 = vld [vmem:[%s4 + $0x58] sm:$0xff]
        %v2889 = vld [vmem:[%s4 + $0x60] sm:$0xff]
        %v2890 = vld [vmem:[%s4 + $0x68] sm:$0xff]
        %v2891 = vld [vmem:[%s4 + $0x70] sm:$0xff]
        %v2892 = vld [vmem:[%s4 + $0x78] sm:$0xff]
        %2894 = vset.pattern.permute.xlu0 0
        %2895 = vperm.xlu0 %2894, %v2861
        %v2896 = vpop.permute.xlu0 %2895
        %2899 = vset.pattern.permute.xlu0 0
        %2900 = vperm.xlu0 %2899, %v2862
        %v2901 = vpop.permute.xlu0 %2900
        %2904 = vset.pattern.permute.xlu0 0
        %2905 = vperm.xlu0 %2904, %v2863
        %v2906 = vpop.permute.xlu0 %2905
        %2909 = vset.pattern.permute.xlu0 0
        %2910 = vperm.xlu0 %2909, %v2864
        %v2911 = vpop.permute.xlu0 %2910
        %2914 = vset.pattern.permute.xlu0 0
        %2915 = vperm.xlu0 %2914, %v2865
        %v2916 = vpop.permute.xlu0 %2915
        %2919 = vset.pattern.permute.xlu0 0
        %2920 = vperm.xlu0 %2919, %v2866
        %v2921 = vpop.permute.xlu0 %2920
        %2924 = vset.pattern.permute.xlu0 0
        %2925 = vperm.xlu0 %2924, %v2867
        %v2926 = vpop.permute.xlu0 %2925
        %2929 = vset.pattern.permute.xlu0 0
        %2930 = vperm.xlu0 %2929, %v2868
        %v2931 = vpop.permute.xlu0 %2930
        %2934 = vset.pattern.permute.xlu0 0
        %2935 = vperm.xlu0 %2934, %v2869
        %v2936 = vpop.permute.xlu0 %2935
        %2939 = vset.pattern.permute.xlu0 0
        %2940 = vperm.xlu0 %2939, %v2870
        %v2941 = vpop.permute.xlu0 %2940
        %2944 = vset.pattern.permute.xlu0 0
        %2945 = vperm.xlu0 %2944, %v2871
        %v2946 = vpop.permute.xlu0 %2945
        %2949 = vset.pattern.permute.xlu0 0
        %2950 = vperm.xlu0 %2949, %v2872
        %v2951 = vpop.permute.xlu0 %2950
        %2954 = vset.pattern.permute.xlu0 0
        %2955 = vperm.xlu0 %2954, %v2873
        %v2956 = vpop.permute.xlu0 %2955
        %2959 = vset.pattern.permute.xlu0 0
        %2960 = vperm.xlu0 %2959, %v2874
        %v2961 = vpop.permute.xlu0 %2960
        %2964 = vset.pattern.permute.xlu0 0
        %2965 = vperm.xlu0 %2964, %v2875
        %v2966 = vpop.permute.xlu0 %2965
        %2969 = vset.pattern.permute.xlu0 0
        %2970 = vperm.xlu0 %2969, %v2876
        %v2971 = vpop.permute.xlu0 %2970
        %v2973 = vmul.f32 %v2896, %v2877
        %v2974 = vmul.f32 %v2901, %v2878
        %v2975 = vmul.f32 %v2906, %v2879
        %v2976 = vmul.f32 %v2911, %v2880
        %v2977 = vmul.f32 %v2916, %v2881
        %v2978 = vmul.f32 %v2921, %v2882
        %v2979 = vmul.f32 %v2926, %v2883
        %v2980 = vmul.f32 %v2931, %v2884
        %v2981 = vmul.f32 %v2936, %v2885
        %v2982 = vmul.f32 %v2941, %v2886
        %v2983 = vmul.f32 %v2946, %v2887
        %v2984 = vmul.f32 %v2951, %v2888
        %v2985 = vmul.f32 %v2956, %v2889
        %v2986 = vmul.f32 %v2961, %v2890
        %v2987 = vmul.f32 %v2966, %v2891
        %v2988 = vmul.f32 %v2971, %v2892
        %v2989 = vld [vmem:[%s6] sm:$0xff]
        %v2990 = vld [vmem:[%s6 + $0x8] sm:$0xff]
        %2991 = vmatprep.subr.mxu0 0.0
        %2992 = vmatpush1.msra.mxu0 %v2988
        %2993 = vmatprep.subr.mxu0 0.0
        %2994 = vmatpush1.msra.mxu0 %v2987
        %2995 = vmatprep.subr.mxu0 0.0
        %2996 = vmatpush1.msra.mxu0 %v2986
        %2997 = vmatprep.subr.mxu0 0.0
        %2998 = vmatpush1.msra.mxu0 %v2985
        %2999 = vmatprep.subr.mxu0 0.0
        %3000 = vmatpush1.msra.mxu0 %v2984
        %3001 = vmatprep.subr.mxu0 0.0
        %3002 = vmatpush1.msra.mxu0 %v2983
        %3003 = vmatprep.subr.mxu0 0.0
        %3004 = vmatpush1.msra.mxu0 %v2982
        %3005 = vmatprep.subr.mxu0 0.0
        %3006 = vmatpush1.msra.mxu0 %v2981
        %3007 = vmatprep.subr.mxu0 0.0
        %3008 = vmatpush1.msra.mxu0 %v2980
        %3009 = vmatprep.subr.mxu0 0.0
        %3010 = vmatpush1.msra.mxu0 %v2979
        %3011 = vmatprep.subr.mxu0 0.0
        %3012 = vmatpush1.msra.mxu0 %v2978
        %3013 = vmatprep.subr.mxu0 0.0
        %3014 = vmatpush1.msra.mxu0 %v2977
        %3015 = vmatprep.subr.mxu0 0.0
        %3016 = vmatpush1.msra.mxu0 %v2976
        %3017 = vmatprep.subr.mxu0 0.0
        %3018 = vmatpush1.msra.mxu0 %v2975
        %3019 = vmatprep.subr.mxu0 0.0
        %3020 = vmatpush1.msra.mxu0 %v2974
        %3021 = vmatprep.subr.mxu0 0.0
        %3022 = vmatpush1.msra.mxu0 %v2973
        %3023 = vmatprep.subr.mxu0 0.0
        %3024 = vmatpush2.msra.mxu0 0.0
        %3025 = vmatprep.subr.mxu0 0.0
        %3026 = vmatpush2.msra.mxu0 0.0
        %3027 = vmatprep.subr.mxu0 0.0
        %3028 = vmatpush2.msra.mxu0 0.0
        %3029 = vmatprep.subr.mxu0 0.0
        %3030 = vmatpush2.msra.mxu0 0.0
        %3031 = vmatprep.subr.mxu0 0.0
        %3032 = vmatpush2.msra.mxu0 0.0
        %3033 = vmatprep.subr.mxu0 0.0
        %3034 = vmatpush2.msra.mxu0 0.0
        %3035 = vmatprep.subr.mxu0 0.0
        %3036 = vmatpush2.msra.mxu0 0.0
        %3037 = vmatprep.subr.mxu0 0.0
        %3038 = vmatpush2.msra.mxu0 0.0
        %3039 = vmatprep.subr.mxu0 0.0
        %3040 = vmatpush2.msra.mxu0 0.0
        %3041 = vmatprep.subr.mxu0 0.0
        %3042 = vmatpush2.msra.mxu0 0.0
        %3043 = vmatprep.subr.mxu0 0.0
        %3044 = vmatpush2.msra.mxu0 0.0
        %3045 = vmatprep.subr.mxu0 0.0
        %3046 = vmatpush2.msra.mxu0 0.0
        %3047 = vmatprep.subr.mxu0 0.0
        %3048 = vmatpush2.msra.mxu0 0.0
        %3049 = vmatprep.subr.mxu0 0.0
        %3050 = vmatpush2.msra.mxu0 0.0
        %3051 = vmatprep.subr.mxu0 0.0
        %3052 = vmatpush2.msra.mxu0 0.0
        %3053 = vmatprep.subr.mxu0 0.0
        %3054 = vmatpush2.msra.mxu0 0.0
        %3055 = vmatprep.mubr.f32.mxu0 0.0
        %3056 = vmatmul.mubr.f32.gmra.mxu0 %v2989
        %v3057 = vpop.f32.mrf.mxu0
        %v3058 = vadd.f32 0.0, %v3057
        %v3059 = vpop.f32.mrf.mxu0
        %3060 = vmatprep.mubr.f32.mxu0 0.0
        %3061 = vmatmul.mubr.f32.gmra.mxu0 %v2990
        %v3062 = vpop.f32.mrf.mxu0
        %v3063 = vadd.f32 0.0, %v3062
        %v3064 = vpop.f32.mrf.mxu0
        %3065 = vdwg.mxu0
        %v3066 = vld [vmem:[%s3] sm:$0xff]
        %v3067 = vld [vmem:[%s3 + $0x8] sm:$0x1]
        %v3068 = vlaneseq
        %v3069 = vshrl.u32 %v3068, 7
        %v3070 = vsub.s32 0, %v3069
        %v3071 = vrot.slane %v3067, %v3070
        %vm3072 = vcmask 64512
        %v3074 = vsel %vm3072, %v3058, 0
        %v3077 = vsel %vm3072, %v3063, 0
        %3079 = vmatprep.subr.mxu0 0.0
        %3080 = vmatpush1.msra.mxu0 0.0
        %3081 = vmatprep.subr.mxu0 0.0
        %3082 = vmatpush1.msra.mxu0 0.0
        %3083 = vmatprep.subr.mxu0 0.0
        %3084 = vmatpush1.msra.mxu0 0.0
        %3085 = vmatprep.subr.mxu0 0.0
        %3086 = vmatpush1.msra.mxu0 0.0
        %3087 = vmatprep.subr.mxu0 0.0
        %3088 = vmatpush1.msra.mxu0 0.0
        %3089 = vmatprep.subr.mxu0 0.0
        %3090 = vmatpush1.msra.mxu0 0.0
        %3091 = vmatprep.subr.mxu0 0.0
        %3092 = vmatpush1.msra.mxu0 0.0
        %3093 = vmatprep.subr.mxu0 0.0
        %3094 = vmatpush1.msra.mxu0 0.0
        %3095 = vmatprep.subr.mxu0 0.0
        %3096 = vmatpush1.msra.mxu0 0.0
        %3097 = vmatprep.subr.mxu0 0.0
        %3098 = vmatpush1.msra.mxu0 0.0
        %3099 = vmatprep.subr.mxu0 0.0
        %3100 = vmatpush1.msra.mxu0 0.0
        %3101 = vmatprep.subr.mxu0 0.0
        %3102 = vmatpush1.msra.mxu0 0.0
        %3103 = vmatprep.subr.mxu0 0.0
        %3104 = vmatpush1.msra.mxu0 0.0
        %3105 = vmatprep.subr.mxu0 0.0
        %3106 = vmatpush1.msra.mxu0 0.0
        %3107 = vmatprep.subr.mxu0 0.0
        %3108 = vmatpush1.msra.mxu0 0.0
        %3109 = vmatprep.subr.mxu0 0.0
        %3110 = vmatpush1.msra.mxu0 %v3066
        %3111 = vmatprep.subr.mxu0 0.0
        %3112 = vmatpush2.msra.mxu0 0.0
        %3113 = vmatprep.subr.mxu0 0.0
        %3114 = vmatpush2.msra.mxu0 0.0
        %3115 = vmatprep.subr.mxu0 0.0
        %3116 = vmatpush2.msra.mxu0 0.0
        %3117 = vmatprep.subr.mxu0 0.0
        %3118 = vmatpush2.msra.mxu0 0.0
        %3119 = vmatprep.subr.mxu0 0.0
        %3120 = vmatpush2.msra.mxu0 0.0
        %3121 = vmatprep.subr.mxu0 0.0
        %3122 = vmatpush2.msra.mxu0 0.0
        %3123 = vmatprep.subr.mxu0 0.0
        %3124 = vmatpush2.msra.mxu0 0.0
        %3125 = vmatprep.subr.mxu0 0.0
        %3126 = vmatpush2.msra.mxu0 0.0
        %3127 = vmatprep.subr.mxu0 0.0
        %3128 = vmatpush2.msra.mxu0 0.0
        %3129 = vmatprep.subr.mxu0 0.0
        %3130 = vmatpush2.msra.mxu0 0.0
        %3131 = vmatprep.subr.mxu0 0.0
        %3132 = vmatpush2.msra.mxu0 0.0
        %3133 = vmatprep.subr.mxu0 0.0
        %3134 = vmatpush2.msra.mxu0 0.0
        %3135 = vmatprep.subr.mxu0 0.0
        %3136 = vmatpush2.msra.mxu0 0.0
        %3137 = vmatprep.subr.mxu0 0.0
        %3138 = vmatpush2.msra.mxu0 0.0
        %3139 = vmatprep.subr.mxu0 0.0
        %3140 = vmatpush2.msra.mxu0 0.0
        %3141 = vmatprep.subr.mxu0 0.0
        %3142 = vmatpush2.msra.mxu0 0.0
        %3143 = vmatprep.mubr.f32.mxu0 0.0
        %3144 = vmatmul.mubr.f32.gmra.mxu0 %v3074
        %v3145 = vpop.f32.mrf.mxu0
        %v3146 = vadd.f32 %v3071, %v3145
        %v3147 = vpop.f32.mrf.mxu0
        %3148 = vmatprep.mubr.f32.mxu0 0.0
        %3149 = vmatmul.mubr.f32.gmra.mxu0 %v3077
        %v3150 = vpop.f32.mrf.mxu0
        %v3151 = vadd.f32 %v3071, %v3150
        %v3152 = vpop.f32.mrf.mxu0
        %3153 = vdwg.mxu0
        %v3154 = vsel %vm3072, %v3146, -inf
        %3155 = vmax.xlane.f32.xlu0 %v3154
        %v3156 = vpop.xlane.xlu0 %3155
        %v3157 = vsel %vm3072, %v3151, -inf
        %3158 = vmax.xlane.f32.xlu0 %v3157
        %v3159 = vpop.xlane.xlu0 %3158
        %v3160 = vsub.f32 %v3146, %v3156
        %v3161 = vsub.f32 %v3151, %v3159
        %v3162 = vmul.f32 %v3160, 1.442695
        %v3163 = vpow.pop %v3162
        %v3164 = vmul.f32 %v3161, 1.442695
        %v3165 = vpow.pop %v3164
        %v3166 = vsel %vm3072, %v3163, 0.0
        %3167 = vadd.xlane.f32.xlu0 %v3166
        %v3168 = vpop.xlane.xlu0 %3167
        %v3169 = vsel %vm3072, %v3165, 0.0
        %3170 = vadd.xlane.f32.xlu0 %v3169
        %v3171 = vpop.xlane.xlu0 %3170
        %v3172 = vrcp.pop %v3168
        %v3173 = vmul.f32 %v3163, %v3172
        %v3174 = vrcp.pop %v3171
        %v3175 = vmul.f32 %v3165, %v3174
        %v3176 = vld [vmem:[%s5] sm:$0xff]
        %v3177 = vld [vmem:[%s5 + $0x8] sm:$0xff]
        %v3178 = vld [vmem:[%s5 + $0x10] sm:$0xff]
        %v3179 = vld [vmem:[%s5 + $0x18] sm:$0xff]
        %v3180 = vld [vmem:[%s5 + $0x20] sm:$0xff]
        %v3181 = vld [vmem:[%s5 + $0x28] sm:$0xff]
        %v3182 = vld [vmem:[%s5 + $0x30] sm:$0xff]
        %v3183 = vld [vmem:[%s5 + $0x38] sm:$0xff]
        %v3184 = vld [vmem:[%s5 + $0x40] sm:$0xff]
        %v3185 = vld [vmem:[%s5 + $0x48] sm:$0xff]
        %v3186 = vld [vmem:[%s5 + $0x50] sm:$0xff]
        %v3187 = vld [vmem:[%s5 + $0x58] sm:$0xff]
        %v3188 = vld [vmem:[%s5 + $0x60] sm:$0xff]
        %v3189 = vld [vmem:[%s5 + $0x68] sm:$0xff]
        %v3190 = vld [vmem:[%s5 + $0x70] sm:$0xff]
        %v3191 = vld [vmem:[%s5 + $0x78] sm:$0xff]
        %vm3192 = vcmask 130048
        %v3194 = vsel %vm3192, %v3176, 0
        %v3197 = vsel %vm3192, %v3177, 0
        %v3200 = vsel %vm3192, %v3178, 0
        %v3203 = vsel %vm3192, %v3179, 0
        %v3206 = vsel %vm3192, %v3180, 0
        %v3209 = vsel %vm3192, %v3181, 0
        %v3212 = vsel %vm3192, %v3182, 0
        %v3215 = vsel %vm3192, %v3183, 0
        %v3218 = vsel %vm3192, %v3184, 0
        %v3221 = vsel %vm3192, %v3185, 0
        %v3224 = vsel %vm3192, %v3186, 0
        %v3227 = vsel %vm3192, %v3187, 0
        %v3230 = vsel %vm3192, %v3188, 0
        %v3233 = vsel %vm3192, %v3189, 0
        %v3236 = vsel %vm3192, %v3190, 0
        %v3239 = vsel %vm3192, %v3191, 0
        %3241 = vmatprep.subr.mxu0 0.0
        %3242 = vmatpush1.msra.mxu0 0.0
        %3243 = vmatprep.subr.mxu0 0.0
        %3244 = vmatpush1.msra.mxu0 0.0
        %3245 = vmatprep.subr.mxu0 0.0
        %3246 = vmatpush1.msra.mxu0 0.0
        %3247 = vmatprep.subr.mxu0 0.0
        %3248 = vmatpush1.msra.mxu0 0.0
        %3249 = vmatprep.subr.mxu0 0.0
        %3250 = vmatpush1.msra.mxu0 0.0
        %3251 = vmatprep.subr.mxu0 0.0
        %3252 = vmatpush1.msra.mxu0 0.0
        %3253 = vmatprep.subr.mxu0 0.0
        %3254 = vmatpush1.msra.mxu0 0.0
        %3255 = vmatprep.subr.mxu0 0.0
        %3256 = vmatpush1.msra.mxu0 0.0
        %3257 = vmatprep.subr.mxu0 0.0
        %3258 = vmatpush1.msra.mxu0 0.0
        %3259 = vmatprep.subr.mxu0 0.0
        %3260 = vmatpush1.msra.mxu0 0.0
        %3261 = vmatprep.subr.mxu0 0.0
        %3262 = vmatpush1.msra.mxu0 0.0
        %3263 = vmatprep.subr.mxu0 0.0
        %3264 = vmatpush1.msra.mxu0 0.0
        %3265 = vmatprep.subr.mxu0 0.0
        %3266 = vmatpush1.msra.mxu0 0.0
        %3267 = vmatprep.subr.mxu0 0.0
        %3268 = vmatpush1.msra.mxu0 0.0
        %3269 = vmatprep.subr.mxu0 0.0
        %3270 = vmatpush1.msra.mxu0 %v3175
        %3271 = vmatprep.subr.mxu0 0.0
        %3272 = vmatpush1.msra.mxu0 %v3173
        %3273 = vmatprep.subr.mxu0 0.0
        %3274 = vmatpush2.msra.mxu0 0.0
        %3275 = vmatprep.subr.mxu0 0.0
        %3276 = vmatpush2.msra.mxu0 0.0
        %3277 = vmatprep.subr.mxu0 0.0
        %3278 = vmatpush2.msra.mxu0 0.0
        %3279 = vmatprep.subr.mxu0 0.0
        %3280 = vmatpush2.msra.mxu0 0.0
        %3281 = vmatprep.subr.mxu0 0.0
        %3282 = vmatpush2.msra.mxu0 0.0
        %3283 = vmatprep.subr.mxu0 0.0
        %3284 = vmatpush2.msra.mxu0 0.0
        %3285 = vmatprep.subr.mxu0 0.0
        %3286 = vmatpush2.msra.mxu0 0.0
        %3287 = vmatprep.subr.mxu0 0.0
        %3288 = vmatpush2.msra.mxu0 0.0
        %3289 = vmatprep.subr.mxu0 0.0
        %3290 = vmatpush2.msra.mxu0 0.0
        %3291 = vmatprep.subr.mxu0 0.0
        %3292 = vmatpush2.msra.mxu0 0.0
        %3293 = vmatprep.subr.mxu0 0.0
        %3294 = vmatpush2.msra.mxu0 0.0
        %3295 = vmatprep.subr.mxu0 0.0
        %3296 = vmatpush2.msra.mxu0 0.0
        %3297 = vmatprep.subr.mxu0 0.0
        %3298 = vmatpush2.msra.mxu0 0.0
        %3299 = vmatprep.subr.mxu0 0.0
        %3300 = vmatpush2.msra.mxu0 0.0
        %3301 = vmatprep.subr.mxu0 0.0
        %3302 = vmatpush2.msra.mxu0 0.0
        %3303 = vmatprep.subr.mxu0 0.0
        %3304 = vmatpush2.msra.mxu0 0.0
        %3305 = vmatprep.mubr.f32.mxu0 0.0
        %3306 = vmatmul.mubr.f32.gmra.mxu0 %v3194
        %v3307 = vpop.f32.mrf.mxu0
        %v3308 = vadd.f32 0.0, %v3307
        %v3309 = vpop.f32.mrf.mxu0
        %3310 = vmatprep.mubr.f32.mxu0 0.0
        %3311 = vmatmul.mubr.f32.gmra.mxu0 %v3197
        %v3312 = vpop.f32.mrf.mxu0
        %v3313 = vadd.f32 0.0, %v3312
        %v3314 = vpop.f32.mrf.mxu0
        %3315 = vmatprep.mubr.f32.mxu0 0.0
        %3316 = vmatmul.mubr.f32.gmra.mxu0 %v3200
        %v3317 = vpop.f32.mrf.mxu0
        %v3318 = vadd.f32 0.0, %v3317
        %v3319 = vpop.f32.mrf.mxu0
        %3320 = vmatprep.mubr.f32.mxu0 0.0
        %3321 = vmatmul.mubr.f32.gmra.mxu0 %v3203
        %v3322 = vpop.f32.mrf.mxu0
        %v3323 = vadd.f32 0.0, %v3322
        %v3324 = vpop.f32.mrf.mxu0
        %3325 = vmatprep.mubr.f32.mxu0 0.0
        %3326 = vmatmul.mubr.f32.gmra.mxu0 %v3206
        %v3327 = vpop.f32.mrf.mxu0
        %v3328 = vadd.f32 0.0, %v3327
        %v3329 = vpop.f32.mrf.mxu0
        %3330 = vmatprep.mubr.f32.mxu0 0.0
        %3331 = vmatmul.mubr.f32.gmra.mxu0 %v3209
        %v3332 = vpop.f32.mrf.mxu0
        %v3333 = vadd.f32 0.0, %v3332
        %v3334 = vpop.f32.mrf.mxu0
        %3335 = vmatprep.mubr.f32.mxu0 0.0
        %3336 = vmatmul.mubr.f32.gmra.mxu0 %v3212
        %v3337 = vpop.f32.mrf.mxu0
        %v3338 = vadd.f32 0.0, %v3337
        %v3339 = vpop.f32.mrf.mxu0
        %3340 = vmatprep.mubr.f32.mxu0 0.0
        %3341 = vmatmul.mubr.f32.gmra.mxu0 %v3215
        %v3342 = vpop.f32.mrf.mxu0
        %v3343 = vadd.f32 0.0, %v3342
        %v3344 = vpop.f32.mrf.mxu0
        %3345 = vmatprep.mubr.f32.mxu0 0.0
        %3346 = vmatmul.mubr.f32.gmra.mxu0 %v3218
        %v3347 = vpop.f32.mrf.mxu0
        %v3348 = vadd.f32 0.0, %v3347
        %v3349 = vpop.f32.mrf.mxu0
        %3350 = vmatprep.mubr.f32.mxu0 0.0
        %3351 = vmatmul.mubr.f32.gmra.mxu0 %v3221
        %v3352 = vpop.f32.mrf.mxu0
        %v3353 = vadd.f32 0.0, %v3352
        %v3354 = vpop.f32.mrf.mxu0
        %3355 = vmatprep.mubr.f32.mxu0 0.0
        %3356 = vmatmul.mubr.f32.gmra.mxu0 %v3224
        %v3357 = vpop.f32.mrf.mxu0
        %v3358 = vadd.f32 0.0, %v3357
        %v3359 = vpop.f32.mrf.mxu0
        %3360 = vmatprep.mubr.f32.mxu0 0.0
        %3361 = vmatmul.mubr.f32.gmra.mxu0 %v3227
        %v3362 = vpop.f32.mrf.mxu0
        %v3363 = vadd.f32 0.0, %v3362
        %v3364 = vpop.f32.mrf.mxu0
        %3365 = vmatprep.mubr.f32.mxu0 0.0
        %3366 = vmatmul.mubr.f32.gmra.mxu0 %v3230
        %v3367 = vpop.f32.mrf.mxu0
        %v3368 = vadd.f32 0.0, %v3367
        %v3369 = vpop.f32.mrf.mxu0
        %3370 = vmatprep.mubr.f32.mxu0 0.0
        %3371 = vmatmul.mubr.f32.gmra.mxu0 %v3233
        %v3372 = vpop.f32.mrf.mxu0
        %v3373 = vadd.f32 0.0, %v3372
        %v3374 = vpop.f32.mrf.mxu0
        %3375 = vmatprep.mubr.f32.mxu0 0.0
        %3376 = vmatmul.mubr.f32.gmra.mxu0 %v3236
        %v3377 = vpop.f32.mrf.mxu0
        %v3378 = vadd.f32 0.0, %v3377
        %v3379 = vpop.f32.mrf.mxu0
        %3380 = vmatprep.mubr.f32.mxu0 0.0
        %3381 = vmatmul.mubr.f32.gmra.mxu0 %v3239
        %v3382 = vpop.f32.mrf.mxu0
        %v3383 = vadd.f32 0.0, %v3382
        %v3384 = vpop.f32.mrf.mxu0
        %3385 = vdwg.mxu0
        %v3386 = vmul.f32 %v2877, %v3308
        %v3387 = vmul.f32 %v2878, %v3313
        %v3388 = vmul.f32 %v2879, %v3318
        %v3389 = vmul.f32 %v2880, %v3323
        %v3390 = vmul.f32 %v2881, %v3328
        %v3391 = vmul.f32 %v2882, %v3333
        %v3392 = vmul.f32 %v2883, %v3338
        %v3393 = vmul.f32 %v2884, %v3343
        %v3394 = vmul.f32 %v2885, %v3348
        %v3395 = vmul.f32 %v2886, %v3353
        %v3396 = vmul.f32 %v2887, %v3358
        %v3397 = vmul.f32 %v2888, %v3363
        %v3398 = vmul.f32 %v2889, %v3368
        %v3399 = vmul.f32 %v2890, %v3373
        %v3400 = vmul.f32 %v2891, %v3378
        %v3401 = vmul.f32 %v2892, %v3383
        %v3402 = vsel %vm3072, %v3386, 0.0
        %3403 = vadd.xlane.f32.xlu0 %v3402
        %v3404 = vpop.xlane.xlu0 %3403
        %v3405 = vsel %vm3072, %v3387, 0.0
        %3406 = vadd.xlane.f32.xlu0 %v3405
        %v3407 = vpop.xlane.xlu0 %3406
        %v3408 = vsel %vm3072, %v3388, 0.0
        %3409 = vadd.xlane.f32.xlu0 %v3408
        %v3410 = vpop.xlane.xlu0 %3409
        %v3411 = vsel %vm3072, %v3389, 0.0
        %3412 = vadd.xlane.f32.xlu0 %v3411
        %v3413 = vpop.xlane.xlu0 %3412
        %v3414 = vsel %vm3072, %v3390, 0.0
        %3415 = vadd.xlane.f32.xlu0 %v3414
        %v3416 = vpop.xlane.xlu0 %3415
        %v3417 = vsel %vm3072, %v3391, 0.0
        %3418 = vadd.xlane.f32.xlu0 %v3417
        %v3419 = vpop.xlane.xlu0 %3418
        %v3420 = vsel %vm3072, %v3392, 0.0
        %3421 = vadd.xlane.f32.xlu0 %v3420
        %v3422 = vpop.xlane.xlu0 %3421
        %v3423 = vsel %vm3072, %v3393, 0.0
        %3424 = vadd.xlane.f32.xlu0 %v3423
        %v3425 = vpop.xlane.xlu0 %3424
        %v3426 = vsel %vm3072, %v3394, 0.0
        %3427 = vadd.xlane.f32.xlu0 %v3426
        %v3428 = vpop.xlane.xlu0 %3427
        %v3429 = vsel %vm3072, %v3395, 0.0
        %3430 = vadd.xlane.f32.xlu0 %v3429
        %v3431 = vpop.xlane.xlu0 %3430
        %v3432 = vsel %vm3072, %v3396, 0.0
        %3433 = vadd.xlane.f32.xlu0 %v3432
        %v3434 = vpop.xlane.xlu0 %3433
        %v3435 = vsel %vm3072, %v3397, 0.0
        %3436 = vadd.xlane.f32.xlu0 %v3435
        %v3437 = vpop.xlane.xlu0 %3436
        %v3438 = vsel %vm3072, %v3398, 0.0
        %3439 = vadd.xlane.f32.xlu0 %v3438
        %v3440 = vpop.xlane.xlu0 %3439
        %v3441 = vsel %vm3072, %v3399, 0.0
        %3442 = vadd.xlane.f32.xlu0 %v3441
        %v3443 = vpop.xlane.xlu0 %3442
        %v3444 = vsel %vm3072, %v3400, 0.0
        %3445 = vadd.xlane.f32.xlu0 %v3444
        %v3446 = vpop.xlane.xlu0 %3445
        %v3447 = vsel %vm3072, %v3401, 0.0
        %3448 = vadd.xlane.f32.xlu0 %v3447
        %v3449 = vpop.xlane.xlu0 %3448
        %v3450 = vmul.f32 %v280, %v3404
        %v3451 = vmul.f32 %v281, %v3407
        %v3452 = vmul.f32 %v282, %v3410
        %v3453 = vmul.f32 %v283, %v3413
        %v3454 = vmul.f32 %v284, %v3416
        %v3455 = vmul.f32 %v285, %v3419
        %v3456 = vmul.f32 %v286, %v3422
        %v3457 = vmul.f32 %v287, %v3425
        %v3458 = vmul.f32 %v288, %v3428
        %v3459 = vmul.f32 %v289, %v3431
        %v3460 = vmul.f32 %v290, %v3434
        %v3461 = vmul.f32 %v291, %v3437
        %v3462 = vmul.f32 %v292, %v3440
        %v3463 = vmul.f32 %v293, %v3443
        %v3464 = vmul.f32 %v294, %v3446
        %v3465 = vmul.f32 %v295, %v3449
        %3466 = vmatprep.subr.mxu0 0.0
        %3467 = vmatpush1.msra.mxu0 %v3465
        %3468 = vmatprep.subr.mxu0 0.0
        %3469 = vmatpush1.msra.mxu0 %v3464
        %3470 = vmatprep.subr.mxu0 0.0
        %3471 = vmatpush1.msra.mxu0 %v3463
        %3472 = vmatprep.subr.mxu0 0.0
        %3473 = vmatpush1.msra.mxu0 %v3462
        %3474 = vmatprep.subr.mxu0 0.0
        %3475 = vmatpush1.msra.mxu0 %v3461
        %3476 = vmatprep.subr.mxu0 0.0
        %3477 = vmatpush1.msra.mxu0 %v3460
        %3478 = vmatprep.subr.mxu0 0.0
        %3479 = vmatpush1.msra.mxu0 %v3459
        %3480 = vmatprep.subr.mxu0 0.0
        %3481 = vmatpush1.msra.mxu0 %v3458
        %3482 = vmatprep.subr.mxu0 0.0
        %3483 = vmatpush1.msra.mxu0 %v3457
        %3484 = vmatprep.subr.mxu0 0.0
        %3485 = vmatpush1.msra.mxu0 %v3456
        %3486 = vmatprep.subr.mxu0 0.0
        %3487 = vmatpush1.msra.mxu0 %v3455
        %3488 = vmatprep.subr.mxu0 0.0
        %3489 = vmatpush1.msra.mxu0 %v3454
        %3490 = vmatprep.subr.mxu0 0.0
        %3491 = vmatpush1.msra.mxu0 %v3453
        %3492 = vmatprep.subr.mxu0 0.0
        %3493 = vmatpush1.msra.mxu0 %v3452
        %3494 = vmatprep.subr.mxu0 0.0
        %3495 = vmatpush1.msra.mxu0 %v3451
        %3496 = vmatprep.subr.mxu0 0.0
        %3497 = vmatpush1.msra.mxu0 %v3450
        %3498 = vmatprep.subr.mxu0 0.0
        %3499 = vmatpush2.msra.mxu0 0.0
        %3500 = vmatprep.subr.mxu0 0.0
        %3501 = vmatpush2.msra.mxu0 0.0
        %3502 = vmatprep.subr.mxu0 0.0
        %3503 = vmatpush2.msra.mxu0 0.0
        %3504 = vmatprep.subr.mxu0 0.0
        %3505 = vmatpush2.msra.mxu0 0.0
        %3506 = vmatprep.subr.mxu0 0.0
        %3507 = vmatpush2.msra.mxu0 0.0
        %3508 = vmatprep.subr.mxu0 0.0
        %3509 = vmatpush2.msra.mxu0 0.0
        %3510 = vmatprep.subr.mxu0 0.0
        %3511 = vmatpush2.msra.mxu0 0.0
        %3512 = vmatprep.subr.mxu0 0.0
        %3513 = vmatpush2.msra.mxu0 0.0
        %3514 = vmatprep.subr.mxu0 0.0
        %3515 = vmatpush2.msra.mxu0 0.0
        %3516 = vmatprep.subr.mxu0 0.0
        %3517 = vmatpush2.msra.mxu0 0.0
        %3518 = vmatprep.subr.mxu0 0.0
        %3519 = vmatpush2.msra.mxu0 0.0
        %3520 = vmatprep.subr.mxu0 0.0
        %3521 = vmatpush2.msra.mxu0 0.0
        %3522 = vmatprep.subr.mxu0 0.0
        %3523 = vmatpush2.msra.mxu0 0.0
        %3524 = vmatprep.subr.mxu0 0.0
        %3525 = vmatpush2.msra.mxu0 0.0
        %3526 = vmatprep.subr.mxu0 0.0
        %3527 = vmatpush2.msra.mxu0 0.0
        %3528 = vmatprep.subr.mxu0 0.0
        %3529 = vmatpush2.msra.mxu0 0.0
        %3530 = vmatprep.mubr.f32.mxu0 0.0
        %3531 = vmatmul.mubr.f32.gmra.mxu0 %v2989
        %v3532 = vpop.f32.mrf.mxu0
        %v3533 = vadd.f32 0.0, %v3532
        %v3534 = vpop.f32.mrf.mxu0
        %3535 = vmatprep.mubr.f32.mxu0 0.0
        %3536 = vmatmul.mubr.f32.gmra.mxu0 %v2990
        %v3537 = vpop.f32.mrf.mxu0
        %v3538 = vadd.f32 0.0, %v3537
        %v3539 = vpop.f32.mrf.mxu0
        %3540 = vdwg.mxu0
        %3541 = vst.msk [vmem:[%s272] sm:$0xff] %vm365, %v3533
        %3542 = vst.msk [vmem:[%s272 + $0x8] sm:$0xff] %vm365, %v3538
        %s3543 = sand.u32 %s181, 1
        %s3544 = scalar_lea.sflag [#allocation3], %s3543
        %s3545 = sand.u32 %s181, 1
        %s3546 = smul.addr %s3545, 16
        %s3547 = scalar_lea.vmem [#allocation2], %s3546
        // Predicated region
        $region49: #{_run_packed.1} parent=47 // pred_check
          %p3548 = pneg %p191
        $region50: #{_run_packed.1} parent=47 // pred_check_branch
          %3550 = sbr.rel (%p3548) target = $region52
        $region51: #{_run_packed.1} parent=47 // pred_region
          %s3551 = smul.u32 2, %s21
          %s3553 = ssub.s32 256, 256
          %3554 = vsyncadd %s3544, %s3553
          %s3555 = smul.addr %s3551, 128
          %s3556 = scalar_lea.hbm %s7, %s3555
          %s3557 = sshll.u32 %s3547, 4
          %s3558 = int_to_ptr.vmem [resolvable:$true] %s3557
          %3563 = dma.vmem_to_hbm [thread:$0]  %s3558, 256, %s3556, %s3544, 128, 128, 8
        $region52: #{_run_packed.1} parent=47 // pred_fallthru
          _
      $region48: #{_run_packed.1} parent=5 // pred_fallthru
        _
      %p3564 = scmp.le.s32.totalorder 2, %s16
      // Predicated region
      $region53: #{_run_packed.1} parent=5 // pred_check
        %p3565 = pneg %p3564
      $region54: #{_run_packed.1} parent=5 // pred_check_branch
        %3567 = sbr.rel (%p3565) target = $region56
      $region55: #{_run_packed.1} parent=5 // pred_region
        %s3568 = ssub.s32 %s16, 2
        // Predicated region
        $region57: #{_run_packed.1} parent=55 // pred_check
          %p3569 = pneg %p197
        $region58: #{_run_packed.1} parent=55 // pred_check_branch
          %3571 = sbr.rel (%p3569) target = $region60
        $region59: #{_run_packed.1} parent=55 // pred_region
          %s3572 = sand.u32 %s182, 1
          %s3573 = scalar_lea.sflag [#allocation3], %s3572
          %s3574 = sand.u32 %s182, 1
          %s3575 = smul.addr %s3574, 16
          %s3576 = scalar_lea.vmem [#allocation2], %s3575
          %3577 = dma.done %s3573, 256
        $region60: #{_run_packed.1} parent=55 // pred_fallthru
          _
      $region56: #{_run_packed.1} parent=5 // pred_fallthru
        _
    $region6: #{_run_packed.1} parent=1 // loop_footer
      %s20 = sadd.s32 1, %s16
    $region7: #{_run_packed.1} parent=1 // loop_footer_branch
      %15 = sbr.rel target = $region3
    $region8: #{_run_packed.1} parent=1 // loop_exit
      _
    %3578 = vsyncpa [#allocation3], 1
    %s3579 = scalar_lea.sflag [#allocation3], 1
    %3580 = vsyncpa %s3579, 1

</llo_original>
